<compile_context>
chip_gen: v7x
topology: tpu7x:2x2x1
jax: 0.10.0
libtpu: 0.0.40
codegen_flags: <defaults>
</compile_context>

<pallas_src>
import functools

import jax
import jax.numpy as jnp
from jax.experimental import pallas as pl
from jax.experimental.pallas import tpu as pltpu

LANE = 128
SUBLANE = 8
TB_MAX = 1024  # max batch-tile rows; VMEM stays in the low-MB range even at 1024


def _round_up(x, m):
    return ((x + m - 1) // m) * m


def _pick_batch_tile(b):
    """Large tiles to amortize per-step overhead; >=2 tiles when batch allows (v7x)."""
    b128 = _round_up(max(b, 1), LANE)
    n_tiles = max(1, b128 // TB_MAX)
    if b128 >= 2 * LANE:
        n_tiles = max(n_tiles, 2)          # keep both v7x TensorCores busy
    return _round_up((b128 + n_tiles - 1) // n_tiles, LANE)


# ----------------------------- Pallas kernel ------------------------------ #
def critic_ensemble_kernel(compute_dtype,
                           state_ref, action_ref, wfs_ref, wfa_ref,
                           b1_ref, wq_ref, bq_ref, out_ref):
    """Fused CriticEnsemble forward for one batch tile.

    state  : [TB, S]      raw f32 states   (unpadded last dim)
    action : [TB, A]      raw f32 actions  (unpadded last dim)
    wfs    : [S, ED_pad]  fused (encoder @ decoder-L1) weight, state rows
    wfa    : [A, ED_pad]  fused weight, action rows
    b1     : [1, ED_pad]  fused layer-1 bias (f32)
    wq     : [8, ED_pad]  row 0 = concat_e(w2_e) / E (final layers + mean), rows 1..7 zero
    bq     : [1, 1] SMEM  mean_e(b2_e)
    out    : [8, TB]      row 0 = ensemble-mean Q, batch on the LANE axis
    """
    x_s = state_ref[...].astype(compute_dtype)
    x_a = action_ref[...].astype(compute_dtype)

    # Fused encoder + decoder layer-1:  z = ReLU(sa @ W_fused + b_fused)   [TB, ED_pad]
    z = (jnp.dot(x_s, wfs_ref[...], preferred_element_type=jnp.float32)
         + jnp.dot(x_a, wfa_ref[...], preferred_element_type=jnp.float32)
         + b1_ref[...])
    z = jnp.maximum(z, 0.0)

    # Final Linear of all E ensembles + ensemble mean, with the batch moved onto the
    # lane axis (NT matmul, same pattern as q @ k^T) -> output is 8 rows, not [TB,128].
    q = jax.lax.dot_general(wq_ref[...], z.astype(compute_dtype),
                            dimension_numbers=(((1,), (1,)), ((), ())),
                            preferred_element_type=jnp.float32)        # [8, TB]
    out_ref[...] = q + bq_ref[0, 0]


# ------------------------- wrapper / weight packing ------------------------ #
def pack_params(params, state_dim, action_dim, net_dims, num_ensembles,
                compute_dtype=jnp.bfloat16):
    """Fuse encoder+decoder-L1 in f32, stack the E decoders on lanes, cast once."""
    w_enc, b_enc, w1s, b1s, w2s, b2s = params
    h0, h1 = net_dims[0], net_dims[1]
    ed = num_ensembles * h1
    ed_p = _round_up(ed, LANE)

    # Stack decoder layer-1 of all ensembles along the lane axis (zero-padded cols
    # are numerically inert: weight=0, bias=0, wq=0).
    w1_all = jnp.zeros((h0, ed_p), jnp.float32)
    b1_all = jnp.zeros((1, ed_p), jnp.float32)
    wq_vec = jnp.zeros((ed_p,), jnp.float32)
    for e in range(num_ensembles):
        lo = e * h1
        w1_all = w1_all.at[:, lo:lo + h1].set(w1s[e])
        b1_all = b1_all.at[:, lo:lo + h1].set(b1s[e])
        # fold the final Linear of ensemble e AND the 1/E ensemble mean into one vector
        wq_vec = wq_vec.at[lo:lo + h1].set(w2s[e][:, 0] / num_ensembles)

    # Algebraic fusion (exact: encoder_sa has no activation): form the product in f32
    # with highest precision, cast to compute_dtype exactly once.
    w_fused = jnp.dot(w_enc, w1_all, precision=jax.lax.Precision.HIGHEST)   # [din, ED_pad]
    b_fused = jnp.dot(b_enc, w1_all, precision=jax.lax.Precision.HIGHEST) + b1_all

    wfs = w_fused[:state_dim].astype(compute_dtype)                          # [S, ED_pad]
    wfa = w_fused[state_dim:state_dim + action_dim].astype(compute_dtype)    # [A, ED_pad]
    wq8 = (jnp.zeros((SUBLANE, ed_p), jnp.float32)
           .at[0].set(wq_vec).astype(compute_dtype))                         # [8, ED_pad]
    bq = jnp.mean(jnp.stack([b.reshape(()) for b in b2s])).reshape(1, 1)     # [1, 1] f32

    return wfs, wfa, b_fused, wq8, bq


def critic_ensemble_forward(state, action, packed, *, force_pallas=False,
                            min_pallas_batch=128):
    """forward(state, action) -> ensemble-mean Q value, shape [B, 1]."""
    wfs, wfa, b1f, wq8, bq = packed
    compute_dtype = wfs.dtype
    b = state.shape[0]
    s_dim, a_dim = state.shape[1], action.shape[1]
    ed_p = wfs.shape[1]

    # Tiny batches: pallas_call fixed overhead dominates -> plain XLA path.
    if b < min_pallas_batch and not force_pallas:
        z = jnp.maximum(state @ wfs.astype(jnp.float32)
                        + action @ wfa.astype(jnp.float32) + b1f, 0.0)
        return (z @ wq8.astype(jnp.float32).T[:, :1]) + bq[0, 0]

    tb = _pick_batch_tile(b)
    b_pad = _round_up(b, tb)
    if b_pad != b:  # only the batch axis is padded; input last dims stay unpadded
        state = jnp.pad(state, ((0, b_pad - b), (0, 0)))
        action = jnp.pad(action, ((0, b_pad - b), (0, 0)))

    const = lambda i: (0, 0)  # weights stay resident across batch tiles
    # NOTE: if an xprof trace ever shows exposed input DMA at very large batches,
    # add pipeline_mode=pl.Buffered(3) on the state/action BlockSpecs only.
    out = pl.pallas_call(
        functools.partial(critic_ensemble_kernel, compute_dtype),
        out_shape=jax.ShapeDtypeStruct((SUBLANE, b_pad), jnp.float32),
        grid=(b_pad // tb,),
        in_specs=[
            pl.BlockSpec((tb, s_dim), lambda i: (i, 0)),
            pl.BlockSpec((tb, a_dim), lambda i: (i, 0)),
            pl.BlockSpec((s_dim, ed_p), const),
            pl.BlockSpec((a_dim, ed_p), const),
            pl.BlockSpec((1, ed_p), const),
            pl.BlockSpec((SUBLANE, ed_p), const),
            pl.BlockSpec(memory_space=pltpu.MemorySpace.SMEM),   # bq scalar
        ],
        out_specs=pl.BlockSpec((SUBLANE, tb), lambda i: (0, i)),
        compiler_params=pltpu.CompilerParams(
            dimension_semantics=("parallel",)),  # v7x: batch tiles split across TCs
    )(state, action, wfs, wfa, b1f, wq8, bq)

    # Row 0 of the lane-major output holds Q for every batch element.
    return out[0, :b].reshape(b, 1)


# --------------------------- parameter building ---------------------------- #
def init_params(key, state_dim, action_dim, net_dims, num_ensembles):
    """Deterministic synthetic parameters with the same shapes as the PyTorch module
    (Linear weights stored transposed as [in, out]); orthogonal init of the final
    layer is approximated by a scaled normal (init-time detail, not forward math)."""
    h0, h1 = net_dims
    din = state_dim + action_dim
    keys = jax.random.split(key, 2 + 3 * num_ensembles)
    w_enc = jax.random.normal(keys[0], (din, h0), jnp.float32) * 0.1
    b_enc = jax.random.normal(keys[1], (1, h0), jnp.float32) * 0.01
    w1s, b1s, w2s, b2s = [], [], [], []
    for e in range(num_ensembles):
        k1, k2, k3 = keys[2 + 3 * e: 5 + 3 * e]
        w1s.append(jax.random.normal(k1, (h0, h1), jnp.float32) * 0.1)
        b1s.append(jax.random.normal(k2, (1, h1), jnp.float32) * 0.01)
        w2s.append(jax.random.normal(k3, (h1, 1), jnp.float32) * (0.5 / float(h1) ** 0.5))
        b2s.append(jnp.zeros((1, 1), jnp.float32))
    return (w_enc, b_enc, w1s, b1s, w2s, b2s)


def reference_forward(state, action, params):
    """Pure-JAX reference matching the PyTorch CriticEnsemble.forward semantics."""
    w_enc, b_enc, w1s, b1s, w2s, b2s = params
    sa = jnp.concatenate([state, action], axis=1)
    h = sa @ w_enc + b_enc                      # encoder_sa: raw Linear (no ReLU)
    qs = []
    for e in range(len(w1s)):
        z = jnp.maximum(h @ w1s[e] + b1s[e], 0.0)
        qs.append(z @ w2s[e] + b2s[e])
    values = jnp.concatenate(qs, axis=-1)       # get_q_values -> [B, E]
    return values.mean(axis=-1, keepdims=True)  # forward -> [B, 1]


# ---------------------------------- main ----------------------------------- #
if __name__ == "__main__":
    jax.config.update("jax_default_matmul_precision", "highest")

    key = jax.random.PRNGKey(0)
    state_dim, action_dim = 16, 4
    net_dims = [32, 32]
    num_ensembles = 4

    k_p, k_s1, k_a1, k_s2, k_a2 = jax.random.split(key, 5)
    params = init_params(k_p, state_dim, action_dim, net_dims, num_ensembles)
    packed_f32 = pack_params(params, state_dim, action_dim, net_dims, num_ensembles,
                             compute_dtype=jnp.float32)
    packed_bf16 = pack_params(params, state_dim, action_dim, net_dims, num_ensembles,
                              compute_dtype=jnp.bfloat16)

    # --- small batch (8): force the Pallas path to exercise the single-tile kernel ---
    b_small = 8
    s1 = jax.random.normal(k_s1, (b_small, state_dim), jnp.float32)
    a1 = jax.random.normal(k_a1, (b_small, action_dim), jnp.float32)
    ref1 = reference_forward(s1, a1, params)
    out1 = jax.block_until_ready(
        critic_ensemble_forward(s1, a1, packed_f32, force_pallas=True))
    assert out1.shape == (b_small, 1)
    assert jnp.allclose(out1, ref1, atol=5e-3, rtol=5e-3), "f32 Pallas kernel mismatch (small batch)"

    # small batch, default dispatch -> plain XLA fallback (overhead-dominated regime)
    out1_xla = jax.block_until_ready(critic_ensemble_forward(s1, a1, packed_f32))
    assert jnp.allclose(out1_xla, ref1, atol=5e-3, rtol=5e-3), "XLA fallback mismatch"

    # --- larger batch (256): default dispatch -> Pallas kernel, two batch tiles ------
    b_big = 256
    s2 = jax.random.normal(k_s2, (b_big, state_dim), jnp.float32)
    a2 = jax.random.normal(k_a2, (b_big, action_dim), jnp.float32)
    ref2 = reference_forward(s2, a2, params)

    out2_f32 = jax.block_until_ready(critic_ensemble_forward(s2, a2, packed_f32))
    assert out2_f32.shape == (b_big, 1)
    assert jnp.allclose(out2_f32, ref2, atol=5e-3, rtol=5e-3), "f32 Pallas kernel mismatch"

    # bf16 weights/activations (v5e/v6e/v7x MXU path), f32 accumulation + f32 epilogue
    out2_bf16 = jax.block_until_ready(critic_ensemble_forward(s2, a2, packed_bf16))
    assert out2_bf16.shape == (b_big, 1)
    assert jnp.allclose(out2_bf16, ref2, atol=3e-2, rtol=3e-2), "bf16 Pallas kernel mismatch"

    print("KERNEL_OK")
</pallas_src>

<mosaic_0001>
module attributes {stable_mosaic.version = 11 : i64} {
  func.func @critic_ensemble_kernel(%arg0: i32, %arg1: memref<128x16xf32, #tpu.memory_space<vmem>>, %arg2: memref<128x4xf32, #tpu.memory_space<vmem>>, %arg3: memref<16x128xf32, #tpu.memory_space<vmem>>, %arg4: memref<4x128xf32, #tpu.memory_space<vmem>>, %arg5: memref<1x128xf32, #tpu.memory_space<vmem>>, %arg6: memref<8x128xf32, #tpu.memory_space<vmem>>, %arg7: memref<1x1xf32, #tpu.memory_space<smem>>, %arg8: memref<8x128xf32, #tpu.memory_space<vmem>>) attributes {dimension_semantics = [#tpu.dimension_semantics<parallel>], iteration_bounds = array<i64: 1>, scalar_prefetch = 0 : i64, scratch_operands = 0 : i64, tpu.core_type = #tpu.core_type<tc>, window_params = [{transform_indices = @transform_0, window_bounds = array<i64: 128, 16>}, {transform_indices = @transform_1, window_bounds = array<i64: 128, 4>}, {pipeline_mode = #tpu.pipeline_mode<synchronous>, transform_indices = @transform_2, window_bounds = array<i64: 16, 128>}, {pipeline_mode = #tpu.pipeline_mode<synchronous>, transform_indices = @transform_3, window_bounds = array<i64: 4, 128>}, {pipeline_mode = #tpu.pipeline_mode<synchronous>, transform_indices = @transform_4, window_bounds = array<i64: 1, 128>}, {pipeline_mode = #tpu.pipeline_mode<synchronous>, transform_indices = @transform_5, window_bounds = array<i64: 8, 128>}, {transform_indices = @transform_6, window_bounds = array<i64: 1, 1>}, {transform_indices = @transform_7, window_bounds = array<i64: 8, 128>}]} {
    %c0 = arith.constant 0 : index
    %c0_0 = arith.constant 0 : index
    %0 = vector.load %arg1[%c0, %c0_0] : memref<128x16xf32, #tpu.memory_space<vmem>>, vector<128x16xf32>
    %c0_1 = arith.constant 0 : index
    %c0_2 = arith.constant 0 : index
    %1 = vector.load %arg2[%c0_1, %c0_2] : memref<128x4xf32, #tpu.memory_space<vmem>>, vector<128x4xf32>
    %c0_3 = arith.constant 0 : index
    %c0_4 = arith.constant 0 : index
    %2 = vector.load %arg3[%c0_3, %c0_4] : memref<16x128xf32, #tpu.memory_space<vmem>>, vector<16x128xf32>
    %cst = arith.constant dense<0.000000e+00> : vector<128x128xf32>
    %3 = tpu.matmul %0, %2, %cst {dimension_numbers = #tpu.dot_dimension_numbers<[1], [0], [0], [1], [0, 0, 1, 1], [], []>, precision = #tpu.contract_precision<fp32>} : vector<128x16xf32>, vector<16x128xf32>, vector<128x128xf32> -> vector<128x128xf32>
    %c0_5 = arith.constant 0 : index
    %c0_6 = arith.constant 0 : index
    %4 = vector.load %arg4[%c0_5, %c0_6] : memref<4x128xf32, #tpu.memory_space<vmem>>, vector<4x128xf32>
    %cst_7 = arith.constant dense<0.000000e+00> : vector<128x128xf32>
    %5 = tpu.matmul %1, %4, %cst_7 {dimension_numbers = #tpu.dot_dimension_numbers<[1], [0], [0], [1], [0, 0, 1, 1], [], []>, precision = #tpu.contract_precision<fp32>} : vector<128x4xf32>, vector<4x128xf32>, vector<128x128xf32> -> vector<128x128xf32>
    %6 = arith.addf %3, %5 : vector<128x128xf32>
    %c0_8 = arith.constant 0 : index
    %c0_9 = arith.constant 0 : index
    %7 = vector.load %arg5[%c0_8, %c0_9] : memref<1x128xf32, #tpu.memory_space<vmem>>, vector<1x128xf32>
    %8 = vector.broadcast %7 : vector<1x128xf32> to vector<128x128xf32>
    %9 = arith.addf %6, %8 : vector<128x128xf32>
    %cst_10 = arith.constant 0.000000e+00 : f32
    %10 = vector.broadcast %cst_10 : f32 to vector<128x128xf32>
    %11 = arith.maximumf %9, %10 : vector<128x128xf32>
    %c0_11 = arith.constant 0 : index
    %c0_12 = arith.constant 0 : index
    %12 = vector.load %arg6[%c0_11, %c0_12] : memref<8x128xf32, #tpu.memory_space<vmem>>, vector<8x128xf32>
    %cst_13 = arith.constant dense<0.000000e+00> : vector<8x128xf32>
    %13 = tpu.matmul %12, %11, %cst_13 {dimension_numbers = #tpu.dot_dimension_numbers<[1], [1], [0], [0], [0, 0, 1, 0], [], []>, precision = #tpu.contract_precision<fp32>} : vector<8x128xf32>, vector<128x128xf32>, vector<8x128xf32> -> vector<8x128xf32>
    %c0_14 = arith.constant 0 : index
    %c0_15 = arith.constant 0 : index
    %14 = memref.load %arg7[%c0_14, %c0_15] : memref<1x1xf32, #tpu.memory_space<smem>>
    %15 = vector.broadcast %14 : f32 to vector<8x128xf32>
    %16 = arith.addf %13, %15 : vector<8x128xf32>
    %c0_16 = arith.constant 0 : index
    %c0_17 = arith.constant 0 : index
    %17 = vector.load %arg8[%c0_16, %c0_17] : memref<8x128xf32, #tpu.memory_space<vmem>>, vector<8x128xf32>
    tpu.vector_store %arg8[%c0_16, %c0_17], %16 {strides = array<i32>} : memref<8x128xf32, #tpu.memory_space<vmem>>, vector<8x128xf32>,
    return
  }
  func.func @transform_0(%arg0: i32) -> (i32, i32) {
    %c0_i32 = arith.constant 0 : i32
    %c0_i32_0 = arith.constant 0 : i32
    return %arg0, %c0_i32 : i32, i32
  }
  func.func @transform_1(%arg0: i32) -> (i32, i32) {
    %c0_i32 = arith.constant 0 : i32
    %c0_i32_0 = arith.constant 0 : i32
    return %arg0, %c0_i32 : i32, i32
  }
  func.func @transform_2(%arg0: i32) -> (i32, i32) {
    %c0_i32 = arith.constant 0 : i32
    %c0_i32_0 = arith.constant 0 : i32
    %c0_i32_1 = arith.constant 0 : i32
    return %c0_i32, %c0_i32_0 : i32, i32
  }
  func.func @transform_3(%arg0: i32) -> (i32, i32) {
    %c0_i32 = arith.constant 0 : i32
    %c0_i32_0 = arith.constant 0 : i32
    %c0_i32_1 = arith.constant 0 : i32
    return %c0_i32, %c0_i32_0 : i32, i32
  }
  func.func @transform_4(%arg0: i32) -> (i32, i32) {
    %c0_i32 = arith.constant 0 : i32
    %c0_i32_0 = arith.constant 0 : i32
    %c0_i32_1 = arith.constant 0 : i32
    return %c0_i32, %c0_i32_0 : i32, i32
  }
  func.func @transform_5(%arg0: i32) -> (i32, i32) {
    %c0_i32 = arith.constant 0 : i32
    %c0_i32_0 = arith.constant 0 : i32
    %c0_i32_1 = arith.constant 0 : i32
    return %c0_i32, %c0_i32_0 : i32, i32
  }
  func.func @transform_6(%arg0: i32) -> (i32, i32) {
    %c0_i32 = arith.constant 0 : i32
    %c0_i32_0 = arith.constant 0 : i32
    %c0_i32_1 = arith.constant 0 : i32
    return %c0_i32, %c0_i32_0 : i32, i32
  }
  func.func @transform_7(%arg0: i32) -> (i32, i32) {
    %c0_i32 = arith.constant 0 : i32
    %c0_i32_0 = arith.constant 0 : i32
    return %c0_i32, %arg0 : i32, i32
  }
}

</mosaic_0001>

<llo_original>
// kernel: tpu_custom_call.1
$region0: #{tpu_custom_call.1}
  #allocation0 [shape = 'u32[]', space=smem, size = 0x4, offset = 0x4, fixed_abs, tag = 'smem constant byte address 0x4 - core index']
  #allocation1 [shape = 'u32[144,128]{1,0:T(1,128)}', space=vmem, size = 0x12000, scoped, tag = 'internal scratch']
  #allocation2 [shape = 'f32[1,1]{1,0:T(1,128)S(6)}', space=smem, size = 0x200, scoped, tag = 'scoped memory for tpu_custom_call.1']
  %s0 = inlined_call_operand.vmem [shape: f32[128,16], index: 0, kind: input, shape index: {}]
  %s1 = inlined_call_operand.vmem [shape: f32[128,4], index: 1, kind: input, shape index: {}]
  %s2 = inlined_call_operand.vmem [shape: f32[16,128], index: 2, kind: input, shape index: {}]
  %s3 = inlined_call_operand.vmem [shape: f32[4,128], index: 3, kind: input, shape index: {}]
  %s4 = inlined_call_operand.vmem [shape: f32[1,128], index: 4, kind: input, shape index: {}]
  %s5 = inlined_call_operand.vmem [shape: f32[8,128], index: 5, kind: input, shape index: {}]
  %s6 = inlined_call_operand.<no memory space> [shape: f32[1,1], index: 6, kind: input, shape index: {}]
  %s7 = inlined_call_operand.hbm [shape: f32[8,128], index: 7, kind: output, shape index: {}]
  %s8 = sld [smem:[#allocation0]]
  $region38: #{tpu_custom_call.1} parent=0
    _
  %s10 = ssub.s32 1, %s8
  %s11 = scalar_select 0, %s10, %s8
  %12 = sst [smem:[#allocation2]] %s6
  $region1: #{tpu_custom_call.1} parent=0
    #allocation3 [shape = 'u8[4096]{0}', space=vmem, size = 0x1000, scoped, tag = 'output window, operand 0, single buffered']
    #allocation4 [shape = 's32[1]{0}', space=sflag, size = 0x4, scoped, tag = 'scoped memory for tpu_custom_call.1']
    %13 = vsyncpa [#allocation4], 0
    // Predicated region
    $region2: #{tpu_custom_call.1} parent=1 // pred_check
      _
    $region3: #{tpu_custom_call.1} parent=1 // pred_check_branch
      %15 = sbr.rel (0) target = $region5
    $region4: #{tpu_custom_call.1} parent=1 // pred_region
      _
    $region5: #{tpu_custom_call.1} parent=1 // pred_fallthru
      _
    // Predicated region
    $region6: #{tpu_custom_call.1} parent=1 // pred_check
      _
    $region7: #{tpu_custom_call.1} parent=1 // pred_check_branch
      %17 = sbr.rel (0) target = $region9
    $region8: #{tpu_custom_call.1} parent=1 // pred_region
      _
    $region9: #{tpu_custom_call.1} parent=1 // pred_fallthru
      _
    // Predicated region
    $region10: #{tpu_custom_call.1} parent=1 // pred_check
      _
    $region11: #{tpu_custom_call.1} parent=1 // pred_check_branch
      %19 = sbr.rel (0) target = $region13
    $region12: #{tpu_custom_call.1} parent=1 // pred_region
      _
    $region13: #{tpu_custom_call.1} parent=1 // pred_fallthru
      _
    // Predicated region
    $region14: #{tpu_custom_call.1} parent=1 // pred_check
      _
    $region15: #{tpu_custom_call.1} parent=1 // pred_check_branch
      %21 = sbr.rel (0) target = $region17
    $region16: #{tpu_custom_call.1} parent=1 // pred_region
      _
    $region17: #{tpu_custom_call.1} parent=1 // pred_fallthru
      _
    // Predicated region
    $region18: #{tpu_custom_call.1} parent=1 // pred_check
      _
    $region19: #{tpu_custom_call.1} parent=1 // pred_check_branch
      %23 = sbr.rel (0) target = $region21
    $region20: #{tpu_custom_call.1} parent=1 // pred_region
      _
    $region21: #{tpu_custom_call.1} parent=1 // pred_fallthru
      _
    // Predicated region
    $region22: #{tpu_custom_call.1} parent=1 // pred_check
      _
    $region23: #{tpu_custom_call.1} parent=1 // pred_check_branch
      %25 = sbr.rel (0) target = $region25
    $region24: #{tpu_custom_call.1} parent=1 // pred_region
      _
    $region25: #{tpu_custom_call.1} parent=1 // pred_fallthru
      _
    // Predicated region
    $region26: #{tpu_custom_call.1} parent=1 // pred_check
      _
    $region27: #{tpu_custom_call.1} parent=1 // pred_check_branch
      %27 = sbr.rel (0) target = $region29
    $region28: #{tpu_custom_call.1} parent=1 // pred_region
      _
    $region29: #{tpu_custom_call.1} parent=1 // pred_fallthru
      _
    %v28 = vld [vmem:[%s0] sm:$0xff]
    %v29 = vld [vmem:[%s0 + $0x8] sm:$0xff]
    %v30 = vld [vmem:[%s0 + $0x10] sm:$0xff]
    %v31 = vld [vmem:[%s0 + $0x18] sm:$0xff]
    %v32 = vld [vmem:[%s0 + $0x20] sm:$0xff]
    %v33 = vld [vmem:[%s0 + $0x28] sm:$0xff]
    %v34 = vld [vmem:[%s0 + $0x30] sm:$0xff]
    %v35 = vld [vmem:[%s0 + $0x38] sm:$0xff]
    %v36 = vld [vmem:[%s0 + $0x40] sm:$0xff]
    %v37 = vld [vmem:[%s0 + $0x48] sm:$0xff]
    %v38 = vld [vmem:[%s0 + $0x50] sm:$0xff]
    %v39 = vld [vmem:[%s0 + $0x58] sm:$0xff]
    %v40 = vld [vmem:[%s0 + $0x60] sm:$0xff]
    %v41 = vld [vmem:[%s0 + $0x68] sm:$0xff]
    %v42 = vld [vmem:[%s0 + $0x70] sm:$0xff]
    %v43 = vld [vmem:[%s0 + $0x78] sm:$0xff]
    %v44 = vld [vmem:[%s1] sm:$0xff]
    %v45 = vld [vmem:[%s1 + $0x8] sm:$0xff]
    %v46 = vld [vmem:[%s1 + $0x10] sm:$0xff]
    %v47 = vld [vmem:[%s1 + $0x18] sm:$0xff]
    %v48 = vld [vmem:[%s1 + $0x20] sm:$0xff]
    %v49 = vld [vmem:[%s1 + $0x28] sm:$0xff]
    %v50 = vld [vmem:[%s1 + $0x30] sm:$0xff]
    %v51 = vld [vmem:[%s1 + $0x38] sm:$0xff]
    %v52 = vld [vmem:[%s1 + $0x40] sm:$0xff]
    %v53 = vld [vmem:[%s1 + $0x48] sm:$0xff]
    %v54 = vld [vmem:[%s1 + $0x50] sm:$0xff]
    %v55 = vld [vmem:[%s1 + $0x58] sm:$0xff]
    %v56 = vld [vmem:[%s1 + $0x60] sm:$0xff]
    %v57 = vld [vmem:[%s1 + $0x68] sm:$0xff]
    %v58 = vld [vmem:[%s1 + $0x70] sm:$0xff]
    %v59 = vld [vmem:[%s1 + $0x78] sm:$0xff]
    %v60 = vld [vmem:[%s2] sm:$0xff]
    %v61 = vld [vmem:[%s2 + $0x8] sm:$0xff]
    %v62 = vld [vmem:[%s3] sm:$0xf]
    %vm63 = vcmask 31744
    %v65 = vsel %vm63, %v44, 0
    %v68 = vsel %vm63, %v45, 0
    %v71 = vsel %vm63, %v46, 0
    %v74 = vsel %vm63, %v47, 0
    %v77 = vsel %vm63, %v48, 0
    %v80 = vsel %vm63, %v49, 0
    %v83 = vsel %vm63, %v50, 0
    %v86 = vsel %vm63, %v51, 0
    %v89 = vsel %vm63, %v52, 0
    %v92 = vsel %vm63, %v53, 0
    %v95 = vsel %vm63, %v54, 0
    %v98 = vsel %vm63, %v55, 0
    %v101 = vsel %vm63, %v56, 0
    %v104 = vsel %vm63, %v57, 0
    %v107 = vsel %vm63, %v58, 0
    %v110 = vsel %vm63, %v59, 0
    %vm112 = vcmask 1043456
    %v114 = vsel %vm112, %v62, 0
    %116 = vmatprep.subr.mxu0 0.0
    %v117 = vand.u32 %v114, 4294901760
    %118 = vmatpush1.msra.mxu0 %v117
    %119 = vmatprep.subr.mxu0 0.0
    %120 = vmatpush1.msra.mxu0 0.0
    %121 = vmatprep.subr.mxu0 0.0
    %122 = vmatpush1.msra.mxu0 0.0
    %123 = vmatprep.subr.mxu0 0.0
    %124 = vmatpush1.msra.mxu0 0.0
    %125 = vmatprep.subr.mxu0 0.0
    %126 = vmatpush1.msra.mxu0 0.0
    %127 = vmatprep.subr.mxu0 0.0
    %128 = vmatpush1.msra.mxu0 0.0
    %129 = vmatprep.subr.mxu0 0.0
    %130 = vmatpush1.msra.mxu0 0.0
    %131 = vmatprep.subr.mxu0 0.0
    %132 = vmatpush1.msra.mxu0 0.0
    %133 = vmatprep.subr.mxu0 0.0
    %134 = vmatpush1.msra.mxu0 0.0
    %135 = vmatprep.subr.mxu0 0.0
    %136 = vmatpush1.msra.mxu0 0.0
    %137 = vmatprep.subr.mxu0 0.0
    %138 = vmatpush1.msra.mxu0 0.0
    %139 = vmatprep.subr.mxu0 0.0
    %140 = vmatpush1.msra.mxu0 0.0
    %141 = vmatprep.subr.mxu0 0.0
    %142 = vmatpush1.msra.mxu0 0.0
    %143 = vmatprep.subr.mxu0 0.0
    %144 = vmatpush1.msra.mxu0 0.0
    %145 = vmatprep.subr.mxu0 0.0
    %146 = vmatpush1.msra.mxu0 0.0
    %147 = vmatprep.subr.mxu0 0.0
    %148 = vmatpush1.msra.mxu0 0.0
    %149 = vmatprep.subr.mxu0 0.0
    %150 = vmatpush1.msra.mxu0 0.0
    %151 = vmatprep.subr.mxu0 0.0
    %152 = vmatpush1.msra.mxu0 0.0
    %153 = vmatprep.subr.mxu0 0.0
    %154 = vmatpush1.msra.mxu0 0.0
    %155 = vmatprep.subr.mxu0 0.0
    %156 = vmatpush1.msra.mxu0 0.0
    %157 = vmatprep.subr.mxu0 0.0
    %158 = vmatpush1.msra.mxu0 0.0
    %159 = vmatprep.subr.mxu0 0.0
    %160 = vmatpush1.msra.mxu0 0.0
    %161 = vmatprep.subr.mxu0 0.0
    %162 = vmatpush1.msra.mxu0 0.0
    %163 = vmatprep.subr.mxu0 0.0
    %164 = vmatpush1.msra.mxu0 0.0
    %165 = vmatprep.subr.mxu0 0.0
    %166 = vmatpush1.msra.mxu0 0.0
    %167 = vmatprep.subr.mxu0 0.0
    %168 = vmatpush1.msra.mxu0 0.0
    %169 = vmatprep.subr.mxu0 0.0
    %170 = vmatpush1.msra.mxu0 0.0
    %171 = vmatprep.subr.mxu0 0.0
    %172 = vmatpush1.msra.mxu0 0.0
    %173 = vmatprep.subr.mxu0 0.0
    %174 = vmatpush1.msra.mxu0 0.0
    %175 = vmatprep.subr.mxu0 0.0
    %176 = vmatpush1.msra.mxu0 0.0
    %177 = vmatprep.subr.mxu0 0.0
    %178 = vmatpush1.msra.mxu0 0.0
    %179 = vmatprep.subr.mxu0 0.0
    %180 = vmatpush1.msra.mxu0 0.0
    %181 = vmatprep.mubr.f32.mxu0 0.0
    %v182 = vand.u32 %v65, 4294901760
    %v183 = vsub.f32 %v65, %v182
    %v184 = vand.u32 %v183, 4294901760
    %v185 = vsub.f32 %v183, %v184
    %v186 = vand.u32 %v185, 4294901760
    %187 = vmatmul.mubr.f32.gmra.mrb[0].mxu0 %v186
    %v188 = vpop.f32.mrb[0].mxu0
    %v189 = vadd.f32 0.0, %v188
    %v190 = vpop.f32.mrb[0].mxu0
    %191 = vmatprep.mubr.f32.mxu0 0.0
    %v192 = vand.u32 %v68, 4294901760
    %v193 = vsub.f32 %v68, %v192
    %v194 = vand.u32 %v193, 4294901760
    %v195 = vsub.f32 %v193, %v194
    %v196 = vand.u32 %v195, 4294901760
    %197 = vmatmul.mubr.f32.gmra.mrb[0].mxu0 %v196
    %v198 = vpop.f32.mrb[0].mxu0
    %v199 = vadd.f32 0.0, %v198
    %v200 = vpop.f32.mrb[0].mxu0
    %201 = vmatprep.mubr.f32.mxu0 0.0
    %v202 = vand.u32 %v71, 4294901760
    %v203 = vsub.f32 %v71, %v202
    %v204 = vand.u32 %v203, 4294901760
    %v205 = vsub.f32 %v203, %v204
    %v206 = vand.u32 %v205, 4294901760
    %207 = vmatmul.mubr.f32.gmra.mrb[0].mxu0 %v206
    %v208 = vpop.f32.mrb[0].mxu0
    %v209 = vadd.f32 0.0, %v208
    %v210 = vpop.f32.mrb[0].mxu0
    %211 = vmatprep.mubr.f32.mxu0 0.0
    %v212 = vand.u32 %v74, 4294901760
    %v213 = vsub.f32 %v74, %v212
    %v214 = vand.u32 %v213, 4294901760
    %v215 = vsub.f32 %v213, %v214
    %v216 = vand.u32 %v215, 4294901760
    %217 = vmatmul.mubr.f32.gmra.mrb[0].mxu0 %v216
    %v218 = vpop.f32.mrb[0].mxu0
    %v219 = vadd.f32 0.0, %v218
    %v220 = vpop.f32.mrb[0].mxu0
    %221 = vmatprep.mubr.f32.mxu0 0.0
    %v222 = vand.u32 %v77, 4294901760
    %v223 = vsub.f32 %v77, %v222
    %v224 = vand.u32 %v223, 4294901760
    %v225 = vsub.f32 %v223, %v224
    %v226 = vand.u32 %v225, 4294901760
    %227 = vmatmul.mubr.f32.gmra.mrb[0].mxu0 %v226
    %v228 = vpop.f32.mrb[0].mxu0
    %v229 = vadd.f32 0.0, %v228
    %v230 = vpop.f32.mrb[0].mxu0
    %231 = vmatprep.mubr.f32.mxu0 0.0
    %v232 = vand.u32 %v80, 4294901760
    %v233 = vsub.f32 %v80, %v232
    %v234 = vand.u32 %v233, 4294901760
    %v235 = vsub.f32 %v233, %v234
    %v236 = vand.u32 %v235, 4294901760
    %237 = vmatmul.mubr.f32.gmra.mrb[0].mxu0 %v236
    %v238 = vpop.f32.mrb[0].mxu0
    %v239 = vadd.f32 0.0, %v238
    %v240 = vpop.f32.mrb[0].mxu0
    %241 = vmatprep.mubr.f32.mxu0 0.0
    %v242 = vand.u32 %v83, 4294901760
    %v243 = vsub.f32 %v83, %v242
    %v244 = vand.u32 %v243, 4294901760
    %v245 = vsub.f32 %v243, %v244
    %v246 = vand.u32 %v245, 4294901760
    %247 = vmatmul.mubr.f32.gmra.mrb[0].mxu0 %v246
    %v248 = vpop.f32.mrb[0].mxu0
    %v249 = vadd.f32 0.0, %v248
    %v250 = vpop.f32.mrb[0].mxu0
    %251 = vmatprep.mubr.f32.mxu0 0.0
    %v252 = vand.u32 %v86, 4294901760
    %v253 = vsub.f32 %v86, %v252
    %v254 = vand.u32 %v253, 4294901760
    %v255 = vsub.f32 %v253, %v254
    %v256 = vand.u32 %v255, 4294901760
    %257 = vmatmul.mubr.f32.gmra.mrb[0].mxu0 %v256
    %v258 = vpop.f32.mrb[0].mxu0
    %v259 = vadd.f32 0.0, %v258
    %v260 = vpop.f32.mrb[0].mxu0
    %261 = vmatprep.mubr.f32.mxu0 0.0
    %v262 = vand.u32 %v89, 4294901760
    %v263 = vsub.f32 %v89, %v262
    %v264 = vand.u32 %v263, 4294901760
    %v265 = vsub.f32 %v263, %v264
    %v266 = vand.u32 %v265, 4294901760
    %267 = vmatmul.mubr.f32.gmra.mrb[0].mxu0 %v266
    %v268 = vpop.f32.mrb[0].mxu0
    %v269 = vadd.f32 0.0, %v268
    %v270 = vpop.f32.mrb[0].mxu0
    %271 = vmatprep.mubr.f32.mxu0 0.0
    %v272 = vand.u32 %v92, 4294901760
    %v273 = vsub.f32 %v92, %v272
    %v274 = vand.u32 %v273, 4294901760
    %v275 = vsub.f32 %v273, %v274
    %v276 = vand.u32 %v275, 4294901760
    %277 = vmatmul.mubr.f32.gmra.mrb[0].mxu0 %v276
    %v278 = vpop.f32.mrb[0].mxu0
    %v279 = vadd.f32 0.0, %v278
    %v280 = vpop.f32.mrb[0].mxu0
    %281 = vmatprep.mubr.f32.mxu0 0.0
    %v282 = vand.u32 %v95, 4294901760
    %v283 = vsub.f32 %v95, %v282
    %v284 = vand.u32 %v283, 4294901760
    %v285 = vsub.f32 %v283, %v284
    %v286 = vand.u32 %v285, 4294901760
    %287 = vmatmul.mubr.f32.gmra.mrb[0].mxu0 %v286
    %v288 = vpop.f32.mrb[0].mxu0
    %v289 = vadd.f32 0.0, %v288
    %v290 = vpop.f32.mrb[0].mxu0
    %291 = vmatprep.mubr.f32.mxu0 0.0
    %v292 = vand.u32 %v98, 4294901760
    %v293 = vsub.f32 %v98, %v292
    %v294 = vand.u32 %v293, 4294901760
    %v295 = vsub.f32 %v293, %v294
    %v296 = vand.u32 %v295, 4294901760
    %297 = vmatmul.mubr.f32.gmra.mrb[0].mxu0 %v296
    %v298 = vpop.f32.mrb[0].mxu0
    %v299 = vadd.f32 0.0, %v298
    %v300 = vpop.f32.mrb[0].mxu0
    %301 = vmatprep.mubr.f32.mxu0 0.0
    %v302 = vand.u32 %v101, 4294901760
    %v303 = vsub.f32 %v101, %v302
    %v304 = vand.u32 %v303, 4294901760
    %v305 = vsub.f32 %v303, %v304
    %v306 = vand.u32 %v305, 4294901760
    %307 = vmatmul.mubr.f32.gmra.mrb[0].mxu0 %v306
    %v308 = vpop.f32.mrb[0].mxu0
    %v309 = vadd.f32 0.0, %v308
    %v310 = vpop.f32.mrb[0].mxu0
    %311 = vmatprep.mubr.f32.mxu0 0.0
    %v312 = vand.u32 %v104, 4294901760
    %v313 = vsub.f32 %v104, %v312
    %v314 = vand.u32 %v313, 4294901760
    %v315 = vsub.f32 %v313, %v314
    %v316 = vand.u32 %v315, 4294901760
    %317 = vmatmul.mubr.f32.gmra.mrb[0].mxu0 %v316
    %v318 = vpop.f32.mrb[0].mxu0
    %v319 = vadd.f32 0.0, %v318
    %v320 = vpop.f32.mrb[0].mxu0
    %321 = vmatprep.mubr.f32.mxu0 0.0
    %v322 = vand.u32 %v107, 4294901760
    %v323 = vsub.f32 %v107, %v322
    %v324 = vand.u32 %v323, 4294901760
    %v325 = vsub.f32 %v323, %v324
    %v326 = vand.u32 %v325, 4294901760
    %327 = vmatmul.mubr.f32.gmra.mrb[0].mxu0 %v326
    %v328 = vpop.f32.mrb[0].mxu0
    %v329 = vadd.f32 0.0, %v328
    %v330 = vpop.f32.mrb[0].mxu0
    %331 = vmatprep.mubr.f32.mxu0 0.0
    %v332 = vand.u32 %v110, 4294901760
    %v333 = vsub.f32 %v110, %v332
    %v334 = vand.u32 %v333, 4294901760
    %v335 = vsub.f32 %v333, %v334
    %v336 = vand.u32 %v335, 4294901760
    %337 = vmatmul.mubr.f32.gmra.mrb[0].mxu0 %v336
    %v338 = vpop.f32.mrb[0].mxu0
    %v339 = vadd.f32 0.0, %v338
    %v340 = vpop.f32.mrb[0].mxu0
    %341 = vdwg.mxu0
    %342 = vmatprep.subr.mxu0 0.0
    %v343 = vand.u32 %v114, 4294901760
    %v344 = vsub.f32 %v114, %v343
    %v345 = vand.u32 %v344, 4294901760
    %v346 = vsub.f32 %v344, %v345
    %v347 = vand.u32 %v346, 4294901760
    %348 = vmatpush1.msra.mxu0 %v347
    %349 = vmatprep.subr.mxu0 0.0
    %350 = vmatpush1.msra.mxu0 0.0
    %351 = vmatprep.subr.mxu0 0.0
    %352 = vmatpush1.msra.mxu0 0.0
    %353 = vmatprep.subr.mxu0 0.0
    %354 = vmatpush1.msra.mxu0 0.0
    %355 = vmatprep.subr.mxu0 0.0
    %356 = vmatpush1.msra.mxu0 0.0
    %357 = vmatprep.subr.mxu0 0.0
    %358 = vmatpush1.msra.mxu0 0.0
    %359 = vmatprep.subr.mxu0 0.0
    %360 = vmatpush1.msra.mxu0 0.0
    %361 = vmatprep.subr.mxu0 0.0
    %362 = vmatpush1.msra.mxu0 0.0
    %363 = vmatprep.subr.mxu0 0.0
    %364 = vmatpush1.msra.mxu0 0.0
    %365 = vmatprep.subr.mxu0 0.0
    %366 = vmatpush1.msra.mxu0 0.0
    %367 = vmatprep.subr.mxu0 0.0
    %368 = vmatpush1.msra.mxu0 0.0
    %369 = vmatprep.subr.mxu0 0.0
    %370 = vmatpush1.msra.mxu0 0.0
    %371 = vmatprep.subr.mxu0 0.0
    %372 = vmatpush1.msra.mxu0 0.0
    %373 = vmatprep.subr.mxu0 0.0
    %374 = vmatpush1.msra.mxu0 0.0
    %375 = vmatprep.subr.mxu0 0.0
    %376 = vmatpush1.msra.mxu0 0.0
    %377 = vmatprep.subr.mxu0 0.0
    %378 = vmatpush1.msra.mxu0 0.0
    %379 = vmatprep.subr.mxu0 0.0
    %380 = vmatpush1.msra.mxu0 0.0
    %381 = vmatprep.subr.mxu0 0.0
    %382 = vmatpush1.msra.mxu0 0.0
    %383 = vmatprep.subr.mxu0 0.0
    %384 = vmatpush1.msra.mxu0 0.0
    %385 = vmatprep.subr.mxu0 0.0
    %386 = vmatpush1.msra.mxu0 0.0
    %387 = vmatprep.subr.mxu0 0.0
    %388 = vmatpush1.msra.mxu0 0.0
    %389 = vmatprep.subr.mxu0 0.0
    %390 = vmatpush1.msra.mxu0 0.0
    %391 = vmatprep.subr.mxu0 0.0
    %392 = vmatpush1.msra.mxu0 0.0
    %393 = vmatprep.subr.mxu0 0.0
    %394 = vmatpush1.msra.mxu0 0.0
    %395 = vmatprep.subr.mxu0 0.0
    %396 = vmatpush1.msra.mxu0 0.0
    %397 = vmatprep.subr.mxu0 0.0
    %398 = vmatpush1.msra.mxu0 0.0
    %399 = vmatprep.subr.mxu0 0.0
    %400 = vmatpush1.msra.mxu0 0.0
    %401 = vmatprep.subr.mxu0 0.0
    %402 = vmatpush1.msra.mxu0 0.0
    %403 = vmatprep.subr.mxu0 0.0
    %404 = vmatpush1.msra.mxu0 0.0
    %405 = vmatprep.subr.mxu0 0.0
    %406 = vmatpush1.msra.mxu0 0.0
    %407 = vmatprep.subr.mxu0 0.0
    %408 = vmatpush1.msra.mxu0 0.0
    %409 = vmatprep.subr.mxu0 0.0
    %410 = vmatpush1.msra.mxu0 0.0
    %411 = vmatprep.mubr.f32.mxu0 0.0
    %v412 = vand.u32 %v65, 4294901760
    %413 = vmatmul.mubr.f32.gmra.mrb[0].mxu0 %v412
    %v414 = vpop.f32.mrb[0].mxu0
    %v415 = vadd.f32 %v189, %v414
    %v416 = vpop.f32.mrb[0].mxu0
    %417 = vmatprep.mubr.f32.mxu0 0.0
    %v418 = vand.u32 %v68, 4294901760
    %419 = vmatmul.mubr.f32.gmra.mrb[0].mxu0 %v418
    %v420 = vpop.f32.mrb[0].mxu0
    %v421 = vadd.f32 %v199, %v420
    %v422 = vpop.f32.mrb[0].mxu0
    %423 = vmatprep.mubr.f32.mxu0 0.0
    %v424 = vand.u32 %v71, 4294901760
    %425 = vmatmul.mubr.f32.gmra.mrb[0].mxu0 %v424
    %v426 = vpop.f32.mrb[0].mxu0
    %v427 = vadd.f32 %v209, %v426
    %v428 = vpop.f32.mrb[0].mxu0
    %429 = vmatprep.mubr.f32.mxu0 0.0
    %v430 = vand.u32 %v74, 4294901760
    %431 = vmatmul.mubr.f32.gmra.mrb[0].mxu0 %v430
    %v432 = vpop.f32.mrb[0].mxu0
    %v433 = vadd.f32 %v219, %v432
    %v434 = vpop.f32.mrb[0].mxu0
    %435 = vmatprep.mubr.f32.mxu0 0.0
    %v436 = vand.u32 %v77, 4294901760
    %437 = vmatmul.mubr.f32.gmra.mrb[0].mxu0 %v436
    %v438 = vpop.f32.mrb[0].mxu0
    %v439 = vadd.f32 %v229, %v438
    %v440 = vpop.f32.mrb[0].mxu0
    %441 = vmatprep.mubr.f32.mxu0 0.0
    %v442 = vand.u32 %v80, 4294901760
    %443 = vmatmul.mubr.f32.gmra.mrb[0].mxu0 %v442
    %v444 = vpop.f32.mrb[0].mxu0
    %v445 = vadd.f32 %v239, %v444
    %v446 = vpop.f32.mrb[0].mxu0
    %447 = vmatprep.mubr.f32.mxu0 0.0
    %v448 = vand.u32 %v83, 4294901760
    %449 = vmatmul.mubr.f32.gmra.mrb[0].mxu0 %v448
    %v450 = vpop.f32.mrb[0].mxu0
    %v451 = vadd.f32 %v249, %v450
    %v452 = vpop.f32.mrb[0].mxu0
    %453 = vmatprep.mubr.f32.mxu0 0.0
    %v454 = vand.u32 %v86, 4294901760
    %455 = vmatmul.mubr.f32.gmra.mrb[0].mxu0 %v454
    %v456 = vpop.f32.mrb[0].mxu0
    %v457 = vadd.f32 %v259, %v456
    %v458 = vpop.f32.mrb[0].mxu0
    %459 = vmatprep.mubr.f32.mxu0 0.0
    %v460 = vand.u32 %v89, 4294901760
    %461 = vmatmul.mubr.f32.gmra.mrb[0].mxu0 %v460
    %v462 = vpop.f32.mrb[0].mxu0
    %v463 = vadd.f32 %v269, %v462
    %v464 = vpop.f32.mrb[0].mxu0
    %465 = vmatprep.mubr.f32.mxu0 0.0
    %v466 = vand.u32 %v92, 4294901760
    %467 = vmatmul.mubr.f32.gmra.mrb[0].mxu0 %v466
    %v468 = vpop.f32.mrb[0].mxu0
    %v469 = vadd.f32 %v279, %v468
    %v470 = vpop.f32.mrb[0].mxu0
    %471 = vmatprep.mubr.f32.mxu0 0.0
    %v472 = vand.u32 %v95, 4294901760
    %473 = vmatmul.mubr.f32.gmra.mrb[0].mxu0 %v472
    %v474 = vpop.f32.mrb[0].mxu0
    %v475 = vadd.f32 %v289, %v474
    %v476 = vpop.f32.mrb[0].mxu0
    %477 = vmatprep.mubr.f32.mxu0 0.0
    %v478 = vand.u32 %v98, 4294901760
    %479 = vmatmul.mubr.f32.gmra.mrb[0].mxu0 %v478
    %v480 = vpop.f32.mrb[0].mxu0
    %v481 = vadd.f32 %v299, %v480
    %v482 = vpop.f32.mrb[0].mxu0
    %483 = vmatprep.mubr.f32.mxu0 0.0
    %v484 = vand.u32 %v101, 4294901760
    %485 = vmatmul.mubr.f32.gmra.mrb[0].mxu0 %v484
    %v486 = vpop.f32.mrb[0].mxu0
    %v487 = vadd.f32 %v309, %v486
    %v488 = vpop.f32.mrb[0].mxu0
    %489 = vmatprep.mubr.f32.mxu0 0.0
    %v490 = vand.u32 %v104, 4294901760
    %491 = vmatmul.mubr.f32.gmra.mrb[0].mxu0 %v490
    %v492 = vpop.f32.mrb[0].mxu0
    %v493 = vadd.f32 %v319, %v492
    %v494 = vpop.f32.mrb[0].mxu0
    %495 = vmatprep.mubr.f32.mxu0 0.0
    %v496 = vand.u32 %v107, 4294901760
    %497 = vmatmul.mubr.f32.gmra.mrb[0].mxu0 %v496
    %v498 = vpop.f32.mrb[0].mxu0
    %v499 = vadd.f32 %v329, %v498
    %v500 = vpop.f32.mrb[0].mxu0
    %501 = vmatprep.mubr.f32.mxu0 0.0
    %v502 = vand.u32 %v110, 4294901760
    %503 = vmatmul.mubr.f32.gmra.mrb[0].mxu0 %v502
    %v504 = vpop.f32.mrb[0].mxu0
    %v505 = vadd.f32 %v339, %v504
    %v506 = vpop.f32.mrb[0].mxu0
    %507 = vdwg.mxu0
    %508 = vmatprep.subr.mxu0 0.0
    %v509 = vand.u32 %v114, 4294901760
    %v510 = vsub.f32 %v114, %v509
    %511 = vmatpush1.msra.mxu0 %v510
    %512 = vmatprep.subr.mxu0 0.0
    %513 = vmatpush1.msra.mxu0 0.0
    %514 = vmatprep.subr.mxu0 0.0
    %515 = vmatpush1.msra.mxu0 0.0
    %516 = vmatprep.subr.mxu0 0.0
    %517 = vmatpush1.msra.mxu0 0.0
    %518 = vmatprep.subr.mxu0 0.0
    %519 = vmatpush1.msra.mxu0 0.0
    %520 = vmatprep.subr.mxu0 0.0
    %521 = vmatpush1.msra.mxu0 0.0
    %522 = vmatprep.subr.mxu0 0.0
    %523 = vmatpush1.msra.mxu0 0.0
    %524 = vmatprep.subr.mxu0 0.0
    %525 = vmatpush1.msra.mxu0 0.0
    %526 = vmatprep.subr.mxu0 0.0
    %527 = vmatpush1.msra.mxu0 0.0
    %528 = vmatprep.subr.mxu0 0.0
    %529 = vmatpush1.msra.mxu0 0.0
    %530 = vmatprep.subr.mxu0 0.0
    %531 = vmatpush1.msra.mxu0 0.0
    %532 = vmatprep.subr.mxu0 0.0
    %533 = vmatpush1.msra.mxu0 0.0
    %534 = vmatprep.subr.mxu0 0.0
    %535 = vmatpush1.msra.mxu0 0.0
    %536 = vmatprep.subr.mxu0 0.0
    %537 = vmatpush1.msra.mxu0 0.0
    %538 = vmatprep.subr.mxu0 0.0
    %539 = vmatpush1.msra.mxu0 0.0
    %540 = vmatprep.subr.mxu0 0.0
    %541 = vmatpush1.msra.mxu0 0.0
    %542 = vmatprep.subr.mxu0 0.0
    %543 = vmatpush1.msra.mxu0 0.0
    %544 = vmatprep.subr.mxu0 0.0
    %545 = vmatpush1.msra.mxu0 0.0
    %546 = vmatprep.subr.mxu0 0.0
    %547 = vmatpush1.msra.mxu0 0.0
    %548 = vmatprep.subr.mxu0 0.0
    %549 = vmatpush1.msra.mxu0 0.0
    %550 = vmatprep.subr.mxu0 0.0
    %551 = vmatpush1.msra.mxu0 0.0
    %552 = vmatprep.subr.mxu0 0.0
    %553 = vmatpush1.msra.mxu0 0.0
    %554 = vmatprep.subr.mxu0 0.0
    %555 = vmatpush1.msra.mxu0 0.0
    %556 = vmatprep.subr.mxu0 0.0
    %557 = vmatpush1.msra.mxu0 0.0
    %558 = vmatprep.subr.mxu0 0.0
    %559 = vmatpush1.msra.mxu0 0.0
    %560 = vmatprep.subr.mxu0 0.0
    %561 = vmatpush1.msra.mxu0 0.0
    %562 = vmatprep.subr.mxu0 0.0
    %563 = vmatpush1.msra.mxu0 0.0
    %564 = vmatprep.subr.mxu0 0.0
    %565 = vmatpush1.msra.mxu0 0.0
    %566 = vmatprep.subr.mxu0 0.0
    %567 = vmatpush1.msra.mxu0 0.0
    %568 = vmatprep.subr.mxu0 0.0
    %569 = vmatpush1.msra.mxu0 0.0
    %570 = vmatprep.subr.mxu0 0.0
    %571 = vmatpush1.msra.mxu0 0.0
    %572 = vmatprep.subr.mxu0 0.0
    %573 = vmatpush1.msra.mxu0 0.0
    %574 = vmatprep.mubr.f32.mxu0 0.0
    %v575 = vand.u32 %v65, 4294901760
    %v576 = vsub.f32 %v65, %v575
    %577 = vmatmul.mubr.f32.gmra.mrb[0].mxu0 %v576
    %v578 = vpop.f32.mrb[0].mxu0
    %v579 = vadd.f32 %v415, %v578
    %v580 = vpop.f32.mrb[0].mxu0
    %581 = vmatprep.mubr.f32.mxu0 0.0
    %v582 = vand.u32 %v68, 4294901760
    %v583 = vsub.f32 %v68, %v582
    %584 = vmatmul.mubr.f32.gmra.mrb[0].mxu0 %v583
    %v585 = vpop.f32.mrb[0].mxu0
    %v586 = vadd.f32 %v421, %v585
    %v587 = vpop.f32.mrb[0].mxu0
    %588 = vmatprep.mubr.f32.mxu0 0.0
    %v589 = vand.u32 %v71, 4294901760
    %v590 = vsub.f32 %v71, %v589
    %591 = vmatmul.mubr.f32.gmra.mrb[0].mxu0 %v590
    %v592 = vpop.f32.mrb[0].mxu0
    %v593 = vadd.f32 %v427, %v592
    %v594 = vpop.f32.mrb[0].mxu0
    %595 = vmatprep.mubr.f32.mxu0 0.0
    %v596 = vand.u32 %v74, 4294901760
    %v597 = vsub.f32 %v74, %v596
    %598 = vmatmul.mubr.f32.gmra.mrb[0].mxu0 %v597
    %v599 = vpop.f32.mrb[0].mxu0
    %v600 = vadd.f32 %v433, %v599
    %v601 = vpop.f32.mrb[0].mxu0
    %602 = vmatprep.mubr.f32.mxu0 0.0
    %v603 = vand.u32 %v77, 4294901760
    %v604 = vsub.f32 %v77, %v603
    %605 = vmatmul.mubr.f32.gmra.mrb[0].mxu0 %v604
    %v606 = vpop.f32.mrb[0].mxu0
    %v607 = vadd.f32 %v439, %v606
    %v608 = vpop.f32.mrb[0].mxu0
    %609 = vmatprep.mubr.f32.mxu0 0.0
    %v610 = vand.u32 %v80, 4294901760
    %v611 = vsub.f32 %v80, %v610
    %612 = vmatmul.mubr.f32.gmra.mrb[0].mxu0 %v611
    %v613 = vpop.f32.mrb[0].mxu0
    %v614 = vadd.f32 %v445, %v613
    %v615 = vpop.f32.mrb[0].mxu0
    %616 = vmatprep.mubr.f32.mxu0 0.0
    %v617 = vand.u32 %v83, 4294901760
    %v618 = vsub.f32 %v83, %v617
    %619 = vmatmul.mubr.f32.gmra.mrb[0].mxu0 %v618
    %v620 = vpop.f32.mrb[0].mxu0
    %v621 = vadd.f32 %v451, %v620
    %v622 = vpop.f32.mrb[0].mxu0
    %623 = vmatprep.mubr.f32.mxu0 0.0
    %v624 = vand.u32 %v86, 4294901760
    %v625 = vsub.f32 %v86, %v624
    %626 = vmatmul.mubr.f32.gmra.mrb[0].mxu0 %v625
    %v627 = vpop.f32.mrb[0].mxu0
    %v628 = vadd.f32 %v457, %v627
    %v629 = vpop.f32.mrb[0].mxu0
    %630 = vmatprep.mubr.f32.mxu0 0.0
    %v631 = vand.u32 %v89, 4294901760
    %v632 = vsub.f32 %v89, %v631
    %633 = vmatmul.mubr.f32.gmra.mrb[0].mxu0 %v632
    %v634 = vpop.f32.mrb[0].mxu0
    %v635 = vadd.f32 %v463, %v634
    %v636 = vpop.f32.mrb[0].mxu0
    %637 = vmatprep.mubr.f32.mxu0 0.0
    %v638 = vand.u32 %v92, 4294901760
    %v639 = vsub.f32 %v92, %v638
    %640 = vmatmul.mubr.f32.gmra.mrb[0].mxu0 %v639
    %v641 = vpop.f32.mrb[0].mxu0
    %v642 = vadd.f32 %v469, %v641
    %v643 = vpop.f32.mrb[0].mxu0
    %644 = vmatprep.mubr.f32.mxu0 0.0
    %v645 = vand.u32 %v95, 4294901760
    %v646 = vsub.f32 %v95, %v645
    %647 = vmatmul.mubr.f32.gmra.mrb[0].mxu0 %v646
    %v648 = vpop.f32.mrb[0].mxu0
    %v649 = vadd.f32 %v475, %v648
    %v650 = vpop.f32.mrb[0].mxu0
    %651 = vmatprep.mubr.f32.mxu0 0.0
    %v652 = vand.u32 %v98, 4294901760
    %v653 = vsub.f32 %v98, %v652
    %654 = vmatmul.mubr.f32.gmra.mrb[0].mxu0 %v653
    %v655 = vpop.f32.mrb[0].mxu0
    %v656 = vadd.f32 %v481, %v655
    %v657 = vpop.f32.mrb[0].mxu0
    %658 = vmatprep.mubr.f32.mxu0 0.0
    %v659 = vand.u32 %v101, 4294901760
    %v660 = vsub.f32 %v101, %v659
    %661 = vmatmul.mubr.f32.gmra.mrb[0].mxu0 %v660
    %v662 = vpop.f32.mrb[0].mxu0
    %v663 = vadd.f32 %v487, %v662
    %v664 = vpop.f32.mrb[0].mxu0
    %665 = vmatprep.mubr.f32.mxu0 0.0
    %v666 = vand.u32 %v104, 4294901760
    %v667 = vsub.f32 %v104, %v666
    %668 = vmatmul.mubr.f32.gmra.mrb[0].mxu0 %v667
    %v669 = vpop.f32.mrb[0].mxu0
    %v670 = vadd.f32 %v493, %v669
    %v671 = vpop.f32.mrb[0].mxu0
    %672 = vmatprep.mubr.f32.mxu0 0.0
    %v673 = vand.u32 %v107, 4294901760
    %v674 = vsub.f32 %v107, %v673
    %675 = vmatmul.mubr.f32.gmra.mrb[0].mxu0 %v674
    %v676 = vpop.f32.mrb[0].mxu0
    %v677 = vadd.f32 %v499, %v676
    %v678 = vpop.f32.mrb[0].mxu0
    %679 = vmatprep.mubr.f32.mxu0 0.0
    %v680 = vand.u32 %v110, 4294901760
    %v681 = vsub.f32 %v110, %v680
    %682 = vmatmul.mubr.f32.gmra.mrb[0].mxu0 %v681
    %v683 = vpop.f32.mrb[0].mxu0
    %v684 = vadd.f32 %v505, %v683
    %v685 = vpop.f32.mrb[0].mxu0
    %686 = vdwg.mxu0
    %687 = vmatprep.subr.mxu0 0.0
    %v688 = vand.u32 %v114, 4294901760
    %689 = vmatpush1.msra.mxu0 %v688
    %690 = vmatprep.subr.mxu0 0.0
    %691 = vmatpush1.msra.mxu0 0.0
    %692 = vmatprep.subr.mxu0 0.0
    %693 = vmatpush1.msra.mxu0 0.0
    %694 = vmatprep.subr.mxu0 0.0
    %695 = vmatpush1.msra.mxu0 0.0
    %696 = vmatprep.subr.mxu0 0.0
    %697 = vmatpush1.msra.mxu0 0.0
    %698 = vmatprep.subr.mxu0 0.0
    %699 = vmatpush1.msra.mxu0 0.0
    %700 = vmatprep.subr.mxu0 0.0
    %701 = vmatpush1.msra.mxu0 0.0
    %702 = vmatprep.subr.mxu0 0.0
    %703 = vmatpush1.msra.mxu0 0.0
    %704 = vmatprep.subr.mxu0 0.0
    %705 = vmatpush1.msra.mxu0 0.0
    %706 = vmatprep.subr.mxu0 0.0
    %707 = vmatpush1.msra.mxu0 0.0
    %708 = vmatprep.subr.mxu0 0.0
    %709 = vmatpush1.msra.mxu0 0.0
    %710 = vmatprep.subr.mxu0 0.0
    %711 = vmatpush1.msra.mxu0 0.0
    %712 = vmatprep.subr.mxu0 0.0
    %713 = vmatpush1.msra.mxu0 0.0
    %714 = vmatprep.subr.mxu0 0.0
    %715 = vmatpush1.msra.mxu0 0.0
    %716 = vmatprep.subr.mxu0 0.0
    %717 = vmatpush1.msra.mxu0 0.0
    %718 = vmatprep.subr.mxu0 0.0
    %719 = vmatpush1.msra.mxu0 0.0
    %720 = vmatprep.subr.mxu0 0.0
    %721 = vmatpush1.msra.mxu0 0.0
    %722 = vmatprep.subr.mxu0 0.0
    %723 = vmatpush1.msra.mxu0 0.0
    %724 = vmatprep.subr.mxu0 0.0
    %725 = vmatpush1.msra.mxu0 0.0
    %726 = vmatprep.subr.mxu0 0.0
    %727 = vmatpush1.msra.mxu0 0.0
    %728 = vmatprep.subr.mxu0 0.0
    %729 = vmatpush1.msra.mxu0 0.0
    %730 = vmatprep.subr.mxu0 0.0
    %731 = vmatpush1.msra.mxu0 0.0
    %732 = vmatprep.subr.mxu0 0.0
    %733 = vmatpush1.msra.mxu0 0.0
    %734 = vmatprep.subr.mxu0 0.0
    %735 = vmatpush1.msra.mxu0 0.0
    %736 = vmatprep.subr.mxu0 0.0
    %737 = vmatpush1.msra.mxu0 0.0
    %738 = vmatprep.subr.mxu0 0.0
    %739 = vmatpush1.msra.mxu0 0.0
    %740 = vmatprep.subr.mxu0 0.0
    %741 = vmatpush1.msra.mxu0 0.0
    %742 = vmatprep.subr.mxu0 0.0
    %743 = vmatpush1.msra.mxu0 0.0
    %744 = vmatprep.subr.mxu0 0.0
    %745 = vmatpush1.msra.mxu0 0.0
    %746 = vmatprep.subr.mxu0 0.0
    %747 = vmatpush1.msra.mxu0 0.0
    %748 = vmatprep.subr.mxu0 0.0
    %749 = vmatpush1.msra.mxu0 0.0
    %750 = vmatprep.subr.mxu0 0.0
    %751 = vmatpush1.msra.mxu0 0.0
    %752 = vmatprep.mubr.f32.mxu0 0.0
    %v753 = vand.u32 %v65, 4294901760
    %v754 = vsub.f32 %v65, %v753
    %v755 = vand.u32 %v754, 4294901760
    %756 = vmatmul.mubr.f32.gmra.mrb[0].mxu0 %v755
    %v757 = vpop.f32.mrb[0].mxu0
    %v758 = vadd.f32 %v579, %v757
    %v759 = vpop.f32.mrb[0].mxu0
    %760 = vmatprep.mubr.f32.mxu0 0.0
    %v761 = vand.u32 %v68, 4294901760
    %v762 = vsub.f32 %v68, %v761
    %v763 = vand.u32 %v762, 4294901760
    %764 = vmatmul.mubr.f32.gmra.mrb[0].mxu0 %v763
    %v765 = vpop.f32.mrb[0].mxu0
    %v766 = vadd.f32 %v586, %v765
    %v767 = vpop.f32.mrb[0].mxu0
    %768 = vmatprep.mubr.f32.mxu0 0.0
    %v769 = vand.u32 %v71, 4294901760
    %v770 = vsub.f32 %v71, %v769
    %v771 = vand.u32 %v770, 4294901760
    %772 = vmatmul.mubr.f32.gmra.mrb[0].mxu0 %v771
    %v773 = vpop.f32.mrb[0].mxu0
    %v774 = vadd.f32 %v593, %v773
    %v775 = vpop.f32.mrb[0].mxu0
    %776 = vmatprep.mubr.f32.mxu0 0.0
    %v777 = vand.u32 %v74, 4294901760
    %v778 = vsub.f32 %v74, %v777
    %v779 = vand.u32 %v778, 4294901760
    %780 = vmatmul.mubr.f32.gmra.mrb[0].mxu0 %v779
    %v781 = vpop.f32.mrb[0].mxu0
    %v782 = vadd.f32 %v600, %v781
    %v783 = vpop.f32.mrb[0].mxu0
    %784 = vmatprep.mubr.f32.mxu0 0.0
    %v785 = vand.u32 %v77, 4294901760
    %v786 = vsub.f32 %v77, %v785
    %v787 = vand.u32 %v786, 4294901760
    %788 = vmatmul.mubr.f32.gmra.mrb[0].mxu0 %v787
    %v789 = vpop.f32.mrb[0].mxu0
    %v790 = vadd.f32 %v607, %v789
    %v791 = vpop.f32.mrb[0].mxu0
    %792 = vmatprep.mubr.f32.mxu0 0.0
    %v793 = vand.u32 %v80, 4294901760
    %v794 = vsub.f32 %v80, %v793
    %v795 = vand.u32 %v794, 4294901760
    %796 = vmatmul.mubr.f32.gmra.mrb[0].mxu0 %v795
    %v797 = vpop.f32.mrb[0].mxu0
    %v798 = vadd.f32 %v614, %v797
    %v799 = vpop.f32.mrb[0].mxu0
    %800 = vmatprep.mubr.f32.mxu0 0.0
    %v801 = vand.u32 %v83, 4294901760
    %v802 = vsub.f32 %v83, %v801
    %v803 = vand.u32 %v802, 4294901760
    %804 = vmatmul.mubr.f32.gmra.mrb[0].mxu0 %v803
    %v805 = vpop.f32.mrb[0].mxu0
    %v806 = vadd.f32 %v621, %v805
    %v807 = vpop.f32.mrb[0].mxu0
    %808 = vmatprep.mubr.f32.mxu0 0.0
    %v809 = vand.u32 %v86, 4294901760
    %v810 = vsub.f32 %v86, %v809
    %v811 = vand.u32 %v810, 4294901760
    %812 = vmatmul.mubr.f32.gmra.mrb[0].mxu0 %v811
    %v813 = vpop.f32.mrb[0].mxu0
    %v814 = vadd.f32 %v628, %v813
    %v815 = vpop.f32.mrb[0].mxu0
    %816 = vmatprep.mubr.f32.mxu0 0.0
    %v817 = vand.u32 %v89, 4294901760
    %v818 = vsub.f32 %v89, %v817
    %v819 = vand.u32 %v818, 4294901760
    %820 = vmatmul.mubr.f32.gmra.mrb[0].mxu0 %v819
    %v821 = vpop.f32.mrb[0].mxu0
    %v822 = vadd.f32 %v635, %v821
    %v823 = vpop.f32.mrb[0].mxu0
    %824 = vmatprep.mubr.f32.mxu0 0.0
    %v825 = vand.u32 %v92, 4294901760
    %v826 = vsub.f32 %v92, %v825
    %v827 = vand.u32 %v826, 4294901760
    %828 = vmatmul.mubr.f32.gmra.mrb[0].mxu0 %v827
    %v829 = vpop.f32.mrb[0].mxu0
    %v830 = vadd.f32 %v642, %v829
    %v831 = vpop.f32.mrb[0].mxu0
    %832 = vmatprep.mubr.f32.mxu0 0.0
    %v833 = vand.u32 %v95, 4294901760
    %v834 = vsub.f32 %v95, %v833
    %v835 = vand.u32 %v834, 4294901760
    %836 = vmatmul.mubr.f32.gmra.mrb[0].mxu0 %v835
    %v837 = vpop.f32.mrb[0].mxu0
    %v838 = vadd.f32 %v649, %v837
    %v839 = vpop.f32.mrb[0].mxu0
    %840 = vmatprep.mubr.f32.mxu0 0.0
    %v841 = vand.u32 %v98, 4294901760
    %v842 = vsub.f32 %v98, %v841
    %v843 = vand.u32 %v842, 4294901760
    %844 = vmatmul.mubr.f32.gmra.mrb[0].mxu0 %v843
    %v845 = vpop.f32.mrb[0].mxu0
    %v846 = vadd.f32 %v656, %v845
    %v847 = vpop.f32.mrb[0].mxu0
    %848 = vmatprep.mubr.f32.mxu0 0.0
    %v849 = vand.u32 %v101, 4294901760
    %v850 = vsub.f32 %v101, %v849
    %v851 = vand.u32 %v850, 4294901760
    %852 = vmatmul.mubr.f32.gmra.mrb[0].mxu0 %v851
    %v853 = vpop.f32.mrb[0].mxu0
    %v854 = vadd.f32 %v663, %v853
    %v855 = vpop.f32.mrb[0].mxu0
    %856 = vmatprep.mubr.f32.mxu0 0.0
    %v857 = vand.u32 %v104, 4294901760
    %v858 = vsub.f32 %v104, %v857
    %v859 = vand.u32 %v858, 4294901760
    %860 = vmatmul.mubr.f32.gmra.mrb[0].mxu0 %v859
    %v861 = vpop.f32.mrb[0].mxu0
    %v862 = vadd.f32 %v670, %v861
    %v863 = vpop.f32.mrb[0].mxu0
    %864 = vmatprep.mubr.f32.mxu0 0.0
    %v865 = vand.u32 %v107, 4294901760
    %v866 = vsub.f32 %v107, %v865
    %v867 = vand.u32 %v866, 4294901760
    %868 = vmatmul.mubr.f32.gmra.mrb[0].mxu0 %v867
    %v869 = vpop.f32.mrb[0].mxu0
    %v870 = vadd.f32 %v677, %v869
    %v871 = vpop.f32.mrb[0].mxu0
    %872 = vmatprep.mubr.f32.mxu0 0.0
    %v873 = vand.u32 %v110, 4294901760
    %v874 = vsub.f32 %v110, %v873
    %v875 = vand.u32 %v874, 4294901760
    %876 = vmatmul.mubr.f32.gmra.mrb[0].mxu0 %v875
    %v877 = vpop.f32.mrb[0].mxu0
    %v878 = vadd.f32 %v684, %v877
    %v879 = vpop.f32.mrb[0].mxu0
    %880 = vdwg.mxu0
    %881 = vmatprep.subr.mxu0 0.0
    %v882 = vand.u32 %v114, 4294901760
    %v883 = vsub.f32 %v114, %v882
    %v884 = vand.u32 %v883, 4294901760
    %885 = vmatpush1.msra.mxu0 %v884
    %886 = vmatprep.subr.mxu0 0.0
    %887 = vmatpush1.msra.mxu0 0.0
    %888 = vmatprep.subr.mxu0 0.0
    %889 = vmatpush1.msra.mxu0 0.0
    %890 = vmatprep.subr.mxu0 0.0
    %891 = vmatpush1.msra.mxu0 0.0
    %892 = vmatprep.subr.mxu0 0.0
    %893 = vmatpush1.msra.mxu0 0.0
    %894 = vmatprep.subr.mxu0 0.0
    %895 = vmatpush1.msra.mxu0 0.0
    %896 = vmatprep.subr.mxu0 0.0
    %897 = vmatpush1.msra.mxu0 0.0
    %898 = vmatprep.subr.mxu0 0.0
    %899 = vmatpush1.msra.mxu0 0.0
    %900 = vmatprep.subr.mxu0 0.0
    %901 = vmatpush1.msra.mxu0 0.0
    %902 = vmatprep.subr.mxu0 0.0
    %903 = vmatpush1.msra.mxu0 0.0
    %904 = vmatprep.subr.mxu0 0.0
    %905 = vmatpush1.msra.mxu0 0.0
    %906 = vmatprep.subr.mxu0 0.0
    %907 = vmatpush1.msra.mxu0 0.0
    %908 = vmatprep.subr.mxu0 0.0
    %909 = vmatpush1.msra.mxu0 0.0
    %910 = vmatprep.subr.mxu0 0.0
    %911 = vmatpush1.msra.mxu0 0.0
    %912 = vmatprep.subr.mxu0 0.0
    %913 = vmatpush1.msra.mxu0 0.0
    %914 = vmatprep.subr.mxu0 0.0
    %915 = vmatpush1.msra.mxu0 0.0
    %916 = vmatprep.subr.mxu0 0.0
    %917 = vmatpush1.msra.mxu0 0.0
    %918 = vmatprep.subr.mxu0 0.0
    %919 = vmatpush1.msra.mxu0 0.0
    %920 = vmatprep.subr.mxu0 0.0
    %921 = vmatpush1.msra.mxu0 0.0
    %922 = vmatprep.subr.mxu0 0.0
    %923 = vmatpush1.msra.mxu0 0.0
    %924 = vmatprep.subr.mxu0 0.0
    %925 = vmatpush1.msra.mxu0 0.0
    %926 = vmatprep.subr.mxu0 0.0
    %927 = vmatpush1.msra.mxu0 0.0
    %928 = vmatprep.subr.mxu0 0.0
    %929 = vmatpush1.msra.mxu0 0.0
    %930 = vmatprep.subr.mxu0 0.0
    %931 = vmatpush1.msra.mxu0 0.0
    %932 = vmatprep.subr.mxu0 0.0
    %933 = vmatpush1.msra.mxu0 0.0
    %934 = vmatprep.subr.mxu0 0.0
    %935 = vmatpush1.msra.mxu0 0.0
    %936 = vmatprep.subr.mxu0 0.0
    %937 = vmatpush1.msra.mxu0 0.0
    %938 = vmatprep.subr.mxu0 0.0
    %939 = vmatpush1.msra.mxu0 0.0
    %940 = vmatprep.subr.mxu0 0.0
    %941 = vmatpush1.msra.mxu0 0.0
    %942 = vmatprep.subr.mxu0 0.0
    %943 = vmatpush1.msra.mxu0 0.0
    %944 = vmatprep.subr.mxu0 0.0
    %945 = vmatpush1.msra.mxu0 0.0
    %946 = vmatprep.subr.mxu0 0.0
    %947 = vmatpush1.msra.mxu0 0.0
    %948 = vmatprep.mubr.f32.mxu0 0.0
    %v949 = vand.u32 %v65, 4294901760
    %950 = vmatmul.mubr.f32.gmra.mrb[0].mxu0 %v949
    %v951 = vpop.f32.mrb[0].mxu0
    %v952 = vadd.f32 %v758, %v951
    %v953 = vpop.f32.mrb[0].mxu0
    %954 = vmatprep.mubr.f32.mxu0 0.0
    %v955 = vand.u32 %v68, 4294901760
    %956 = vmatmul.mubr.f32.gmra.mrb[0].mxu0 %v955
    %v957 = vpop.f32.mrb[0].mxu0
    %v958 = vadd.f32 %v766, %v957
    %v959 = vpop.f32.mrb[0].mxu0
    %960 = vmatprep.mubr.f32.mxu0 0.0
    %v961 = vand.u32 %v71, 4294901760
    %962 = vmatmul.mubr.f32.gmra.mrb[0].mxu0 %v961
    %v963 = vpop.f32.mrb[0].mxu0
    %v964 = vadd.f32 %v774, %v963
    %v965 = vpop.f32.mrb[0].mxu0
    %966 = vmatprep.mubr.f32.mxu0 0.0
    %v967 = vand.u32 %v74, 4294901760
    %968 = vmatmul.mubr.f32.gmra.mrb[0].mxu0 %v967
    %v969 = vpop.f32.mrb[0].mxu0
    %v970 = vadd.f32 %v782, %v969
    %v971 = vpop.f32.mrb[0].mxu0
    %972 = vmatprep.mubr.f32.mxu0 0.0
    %v973 = vand.u32 %v77, 4294901760
    %974 = vmatmul.mubr.f32.gmra.mrb[0].mxu0 %v973
    %v975 = vpop.f32.mrb[0].mxu0
    %v976 = vadd.f32 %v790, %v975
    %v977 = vpop.f32.mrb[0].mxu0
    %978 = vmatprep.mubr.f32.mxu0 0.0
    %v979 = vand.u32 %v80, 4294901760
    %980 = vmatmul.mubr.f32.gmra.mrb[0].mxu0 %v979
    %v981 = vpop.f32.mrb[0].mxu0
    %v982 = vadd.f32 %v798, %v981
    %v983 = vpop.f32.mrb[0].mxu0
    %984 = vmatprep.mubr.f32.mxu0 0.0
    %v985 = vand.u32 %v83, 4294901760
    %986 = vmatmul.mubr.f32.gmra.mrb[0].mxu0 %v985
    %v987 = vpop.f32.mrb[0].mxu0
    %v988 = vadd.f32 %v806, %v987
    %v989 = vpop.f32.mrb[0].mxu0
    %990 = vmatprep.mubr.f32.mxu0 0.0
    %v991 = vand.u32 %v86, 4294901760
    %992 = vmatmul.mubr.f32.gmra.mrb[0].mxu0 %v991
    %v993 = vpop.f32.mrb[0].mxu0
    %v994 = vadd.f32 %v814, %v993
    %v995 = vpop.f32.mrb[0].mxu0
    %996 = vmatprep.mubr.f32.mxu0 0.0
    %v997 = vand.u32 %v89, 4294901760
    %998 = vmatmul.mubr.f32.gmra.mrb[0].mxu0 %v997
    %v999 = vpop.f32.mrb[0].mxu0
    %v1000 = vadd.f32 %v822, %v999
    %v1001 = vpop.f32.mrb[0].mxu0
    %1002 = vmatprep.mubr.f32.mxu0 0.0
    %v1003 = vand.u32 %v92, 4294901760
    %1004 = vmatmul.mubr.f32.gmra.mrb[0].mxu0 %v1003
    %v1005 = vpop.f32.mrb[0].mxu0
    %v1006 = vadd.f32 %v830, %v1005
    %v1007 = vpop.f32.mrb[0].mxu0
    %1008 = vmatprep.mubr.f32.mxu0 0.0
    %v1009 = vand.u32 %v95, 4294901760
    %1010 = vmatmul.mubr.f32.gmra.mrb[0].mxu0 %v1009
    %v1011 = vpop.f32.mrb[0].mxu0
    %v1012 = vadd.f32 %v838, %v1011
    %v1013 = vpop.f32.mrb[0].mxu0
    %1014 = vmatprep.mubr.f32.mxu0 0.0
    %v1015 = vand.u32 %v98, 4294901760
    %1016 = vmatmul.mubr.f32.gmra.mrb[0].mxu0 %v1015
    %v1017 = vpop.f32.mrb[0].mxu0
    %v1018 = vadd.f32 %v846, %v1017
    %v1019 = vpop.f32.mrb[0].mxu0
    %1020 = vmatprep.mubr.f32.mxu0 0.0
    %v1021 = vand.u32 %v101, 4294901760
    %1022 = vmatmul.mubr.f32.gmra.mrb[0].mxu0 %v1021
    %v1023 = vpop.f32.mrb[0].mxu0
    %v1024 = vadd.f32 %v854, %v1023
    %v1025 = vpop.f32.mrb[0].mxu0
    %1026 = vmatprep.mubr.f32.mxu0 0.0
    %v1027 = vand.u32 %v104, 4294901760
    %1028 = vmatmul.mubr.f32.gmra.mrb[0].mxu0 %v1027
    %v1029 = vpop.f32.mrb[0].mxu0
    %v1030 = vadd.f32 %v862, %v1029
    %v1031 = vpop.f32.mrb[0].mxu0
    %1032 = vmatprep.mubr.f32.mxu0 0.0
    %v1033 = vand.u32 %v107, 4294901760
    %1034 = vmatmul.mubr.f32.gmra.mrb[0].mxu0 %v1033
    %v1035 = vpop.f32.mrb[0].mxu0
    %v1036 = vadd.f32 %v870, %v1035
    %v1037 = vpop.f32.mrb[0].mxu0
    %1038 = vmatprep.mubr.f32.mxu0 0.0
    %v1039 = vand.u32 %v110, 4294901760
    %1040 = vmatmul.mubr.f32.gmra.mrb[0].mxu0 %v1039
    %v1041 = vpop.f32.mrb[0].mxu0
    %v1042 = vadd.f32 %v878, %v1041
    %v1043 = vpop.f32.mrb[0].mxu0
    %1044 = vdwg.mxu0
    %1045 = vmatprep.subr.mxu0 0.0
    %v1046 = vand.u32 %v114, 4294901760
    %1047 = vmatpush1.msra.mxu0 %v1046
    %1048 = vmatprep.subr.mxu0 0.0
    %1049 = vmatpush1.msra.mxu0 0.0
    %1050 = vmatprep.subr.mxu0 0.0
    %1051 = vmatpush1.msra.mxu0 0.0
    %1052 = vmatprep.subr.mxu0 0.0
    %1053 = vmatpush1.msra.mxu0 0.0
    %1054 = vmatprep.subr.mxu0 0.0
    %1055 = vmatpush1.msra.mxu0 0.0
    %1056 = vmatprep.subr.mxu0 0.0
    %1057 = vmatpush1.msra.mxu0 0.0
    %1058 = vmatprep.subr.mxu0 0.0
    %1059 = vmatpush1.msra.mxu0 0.0
    %1060 = vmatprep.subr.mxu0 0.0
    %1061 = vmatpush1.msra.mxu0 0.0
    %1062 = vmatprep.subr.mxu0 0.0
    %1063 = vmatpush1.msra.mxu0 0.0
    %1064 = vmatprep.subr.mxu0 0.0
    %1065 = vmatpush1.msra.mxu0 0.0
    %1066 = vmatprep.subr.mxu0 0.0
    %1067 = vmatpush1.msra.mxu0 0.0
    %1068 = vmatprep.subr.mxu0 0.0
    %1069 = vmatpush1.msra.mxu0 0.0
    %1070 = vmatprep.subr.mxu0 0.0
    %1071 = vmatpush1.msra.mxu0 0.0
    %1072 = vmatprep.subr.mxu0 0.0
    %1073 = vmatpush1.msra.mxu0 0.0
    %1074 = vmatprep.subr.mxu0 0.0
    %1075 = vmatpush1.msra.mxu0 0.0
    %1076 = vmatprep.subr.mxu0 0.0
    %1077 = vmatpush1.msra.mxu0 0.0
    %1078 = vmatprep.subr.mxu0 0.0
    %1079 = vmatpush1.msra.mxu0 0.0
    %1080 = vmatprep.subr.mxu0 0.0
    %1081 = vmatpush1.msra.mxu0 0.0
    %1082 = vmatprep.subr.mxu0 0.0
    %1083 = vmatpush1.msra.mxu0 0.0
    %1084 = vmatprep.subr.mxu0 0.0
    %1085 = vmatpush1.msra.mxu0 0.0
    %1086 = vmatprep.subr.mxu0 0.0
    %1087 = vmatpush1.msra.mxu0 0.0
    %1088 = vmatprep.subr.mxu0 0.0
    %1089 = vmatpush1.msra.mxu0 0.0
    %1090 = vmatprep.subr.mxu0 0.0
    %1091 = vmatpush1.msra.mxu0 0.0
    %1092 = vmatprep.subr.mxu0 0.0
    %1093 = vmatpush1.msra.mxu0 0.0
    %1094 = vmatprep.subr.mxu0 0.0
    %1095 = vmatpush1.msra.mxu0 0.0
    %1096 = vmatprep.subr.mxu0 0.0
    %1097 = vmatpush1.msra.mxu0 0.0
    %1098 = vmatprep.subr.mxu0 0.0
    %1099 = vmatpush1.msra.mxu0 0.0
    %1100 = vmatprep.subr.mxu0 0.0
    %1101 = vmatpush1.msra.mxu0 0.0
    %1102 = vmatprep.subr.mxu0 0.0
    %1103 = vmatpush1.msra.mxu0 0.0
    %1104 = vmatprep.subr.mxu0 0.0
    %1105 = vmatpush1.msra.mxu0 0.0
    %1106 = vmatprep.subr.mxu0 0.0
    %1107 = vmatpush1.msra.mxu0 0.0
    %1108 = vmatprep.subr.mxu0 0.0
    %1109 = vmatpush1.msra.mxu0 0.0
    %1110 = vmatprep.mubr.f32.mxu0 0.0
    %v1111 = vand.u32 %v65, 4294901760
    %1112 = vmatmul.mubr.f32.gmra.mrb[0].mxu0 %v1111
    %v1113 = vpop.f32.mrb[0].mxu0
    %v1114 = vadd.f32 %v952, %v1113
    %v1115 = vpop.f32.mrb[0].mxu0
    %1116 = vmatprep.mubr.f32.mxu0 0.0
    %v1117 = vand.u32 %v68, 4294901760
    %1118 = vmatmul.mubr.f32.gmra.mrb[0].mxu0 %v1117
    %v1119 = vpop.f32.mrb[0].mxu0
    %v1120 = vadd.f32 %v958, %v1119
    %v1121 = vpop.f32.mrb[0].mxu0
    %1122 = vmatprep.mubr.f32.mxu0 0.0
    %v1123 = vand.u32 %v71, 4294901760
    %1124 = vmatmul.mubr.f32.gmra.mrb[0].mxu0 %v1123
    %v1125 = vpop.f32.mrb[0].mxu0
    %v1126 = vadd.f32 %v964, %v1125
    %v1127 = vpop.f32.mrb[0].mxu0
    %1128 = vmatprep.mubr.f32.mxu0 0.0
    %v1129 = vand.u32 %v74, 4294901760
    %1130 = vmatmul.mubr.f32.gmra.mrb[0].mxu0 %v1129
    %v1131 = vpop.f32.mrb[0].mxu0
    %v1132 = vadd.f32 %v970, %v1131
    %v1133 = vpop.f32.mrb[0].mxu0
    %1134 = vmatprep.mubr.f32.mxu0 0.0
    %v1135 = vand.u32 %v77, 4294901760
    %1136 = vmatmul.mubr.f32.gmra.mrb[0].mxu0 %v1135
    %v1137 = vpop.f32.mrb[0].mxu0
    %v1138 = vadd.f32 %v976, %v1137
    %v1139 = vpop.f32.mrb[0].mxu0
    %1140 = vmatprep.mubr.f32.mxu0 0.0
    %v1141 = vand.u32 %v80, 4294901760
    %1142 = vmatmul.mubr.f32.gmra.mrb[0].mxu0 %v1141
    %v1143 = vpop.f32.mrb[0].mxu0
    %v1144 = vadd.f32 %v982, %v1143
    %v1145 = vpop.f32.mrb[0].mxu0
    %1146 = vmatprep.mubr.f32.mxu0 0.0
    %v1147 = vand.u32 %v83, 4294901760
    %1148 = vmatmul.mubr.f32.gmra.mrb[0].mxu0 %v1147
    %v1149 = vpop.f32.mrb[0].mxu0
    %v1150 = vadd.f32 %v988, %v1149
    %v1151 = vpop.f32.mrb[0].mxu0
    %1152 = vmatprep.mubr.f32.mxu0 0.0
    %v1153 = vand.u32 %v86, 4294901760
    %1154 = vmatmul.mubr.f32.gmra.mrb[0].mxu0 %v1153
    %v1155 = vpop.f32.mrb[0].mxu0
    %v1156 = vadd.f32 %v994, %v1155
    %v1157 = vpop.f32.mrb[0].mxu0
    %1158 = vmatprep.mubr.f32.mxu0 0.0
    %v1159 = vand.u32 %v89, 4294901760
    %1160 = vmatmul.mubr.f32.gmra.mrb[0].mxu0 %v1159
    %v1161 = vpop.f32.mrb[0].mxu0
    %v1162 = vadd.f32 %v1000, %v1161
    %v1163 = vpop.f32.mrb[0].mxu0
    %1164 = vmatprep.mubr.f32.mxu0 0.0
    %v1165 = vand.u32 %v92, 4294901760
    %1166 = vmatmul.mubr.f32.gmra.mrb[0].mxu0 %v1165
    %v1167 = vpop.f32.mrb[0].mxu0
    %v1168 = vadd.f32 %v1006, %v1167
    %v1169 = vpop.f32.mrb[0].mxu0
    %1170 = vmatprep.mubr.f32.mxu0 0.0
    %v1171 = vand.u32 %v95, 4294901760
    %1172 = vmatmul.mubr.f32.gmra.mrb[0].mxu0 %v1171
    %v1173 = vpop.f32.mrb[0].mxu0
    %v1174 = vadd.f32 %v1012, %v1173
    %v1175 = vpop.f32.mrb[0].mxu0
    %1176 = vmatprep.mubr.f32.mxu0 0.0
    %v1177 = vand.u32 %v98, 4294901760
    %1178 = vmatmul.mubr.f32.gmra.mrb[0].mxu0 %v1177
    %v1179 = vpop.f32.mrb[0].mxu0
    %v1180 = vadd.f32 %v1018, %v1179
    %v1181 = vpop.f32.mrb[0].mxu0
    %1182 = vmatprep.mubr.f32.mxu0 0.0
    %v1183 = vand.u32 %v101, 4294901760
    %1184 = vmatmul.mubr.f32.gmra.mrb[0].mxu0 %v1183
    %v1185 = vpop.f32.mrb[0].mxu0
    %v1186 = vadd.f32 %v1024, %v1185
    %v1187 = vpop.f32.mrb[0].mxu0
    %1188 = vmatprep.mubr.f32.mxu0 0.0
    %v1189 = vand.u32 %v104, 4294901760
    %1190 = vmatmul.mubr.f32.gmra.mrb[0].mxu0 %v1189
    %v1191 = vpop.f32.mrb[0].mxu0
    %v1192 = vadd.f32 %v1030, %v1191
    %v1193 = vpop.f32.mrb[0].mxu0
    %1194 = vmatprep.mubr.f32.mxu0 0.0
    %v1195 = vand.u32 %v107, 4294901760
    %1196 = vmatmul.mubr.f32.gmra.mrb[0].mxu0 %v1195
    %v1197 = vpop.f32.mrb[0].mxu0
    %v1198 = vadd.f32 %v1036, %v1197
    %v1199 = vpop.f32.mrb[0].mxu0
    %1200 = vmatprep.mubr.f32.mxu0 0.0
    %v1201 = vand.u32 %v110, 4294901760
    %1202 = vmatmul.mubr.f32.gmra.mrb[0].mxu0 %v1201
    %v1203 = vpop.f32.mrb[0].mxu0
    %v1204 = vadd.f32 %v1042, %v1203
    %v1205 = vpop.f32.mrb[0].mxu0
    %1206 = vdwg.mxu0
    %vm1207 = vcmask 130048
    %v1209 = vsel %vm1207, %v28, 0
    %v1212 = vsel %vm1207, %v29, 0
    %v1215 = vsel %vm1207, %v30, 0
    %v1218 = vsel %vm1207, %v31, 0
    %v1221 = vsel %vm1207, %v32, 0
    %v1224 = vsel %vm1207, %v33, 0
    %v1227 = vsel %vm1207, %v34, 0
    %v1230 = vsel %vm1207, %v35, 0
    %v1233 = vsel %vm1207, %v36, 0
    %v1236 = vsel %vm1207, %v37, 0
    %v1239 = vsel %vm1207, %v38, 0
    %v1242 = vsel %vm1207, %v39, 0
    %v1245 = vsel %vm1207, %v40, 0
    %v1248 = vsel %vm1207, %v41, 0
    %v1251 = vsel %vm1207, %v42, 0
    %v1254 = vsel %vm1207, %v43, 0
    %1256 = vmatprep.subr.mxu0 0.0
    %v1257 = vand.u32 %v60, 4294901760
    %1258 = vmatpush1.msra.mxu0 %v1257
    %1259 = vmatprep.subr.mxu0 0.0
    %v1260 = vand.u32 %v61, 4294901760
    %1261 = vmatpush1.msra.mxu0 %v1260
    %1262 = vmatprep.subr.mxu0 0.0
    %1263 = vmatpush1.msra.mxu0 0.0
    %1264 = vmatprep.subr.mxu0 0.0
    %1265 = vmatpush1.msra.mxu0 0.0
    %1266 = vmatprep.subr.mxu0 0.0
    %1267 = vmatpush1.msra.mxu0 0.0
    %1268 = vmatprep.subr.mxu0 0.0
    %1269 = vmatpush1.msra.mxu0 0.0
    %1270 = vmatprep.subr.mxu0 0.0
    %1271 = vmatpush1.msra.mxu0 0.0
    %1272 = vmatprep.subr.mxu0 0.0
    %1273 = vmatpush1.msra.mxu0 0.0
    %1274 = vmatprep.subr.mxu0 0.0
    %1275 = vmatpush1.msra.mxu0 0.0
    %1276 = vmatprep.subr.mxu0 0.0
    %1277 = vmatpush1.msra.mxu0 0.0
    %1278 = vmatprep.subr.mxu0 0.0
    %1279 = vmatpush1.msra.mxu0 0.0
    %1280 = vmatprep.subr.mxu0 0.0
    %1281 = vmatpush1.msra.mxu0 0.0
    %1282 = vmatprep.subr.mxu0 0.0
    %1283 = vmatpush1.msra.mxu0 0.0
    %1284 = vmatprep.subr.mxu0 0.0
    %1285 = vmatpush1.msra.mxu0 0.0
    %1286 = vmatprep.subr.mxu0 0.0
    %1287 = vmatpush1.msra.mxu0 0.0
    %1288 = vmatprep.subr.mxu0 0.0
    %1289 = vmatpush1.msra.mxu0 0.0
    %1290 = vmatprep.subr.mxu0 0.0
    %1291 = vmatpush1.msra.mxu0 0.0
    %1292 = vmatprep.subr.mxu0 0.0
    %1293 = vmatpush1.msra.mxu0 0.0
    %1294 = vmatprep.subr.mxu0 0.0
    %1295 = vmatpush1.msra.mxu0 0.0
    %1296 = vmatprep.subr.mxu0 0.0
    %1297 = vmatpush1.msra.mxu0 0.0
    %1298 = vmatprep.subr.mxu0 0.0
    %1299 = vmatpush1.msra.mxu0 0.0
    %1300 = vmatprep.subr.mxu0 0.0
    %1301 = vmatpush1.msra.mxu0 0.0
    %1302 = vmatprep.subr.mxu0 0.0
    %1303 = vmatpush1.msra.mxu0 0.0
    %1304 = vmatprep.subr.mxu0 0.0
    %1305 = vmatpush1.msra.mxu0 0.0
    %1306 = vmatprep.subr.mxu0 0.0
    %1307 = vmatpush1.msra.mxu0 0.0
    %1308 = vmatprep.subr.mxu0 0.0
    %1309 = vmatpush1.msra.mxu0 0.0
    %1310 = vmatprep.subr.mxu0 0.0
    %1311 = vmatpush1.msra.mxu0 0.0
    %1312 = vmatprep.subr.mxu0 0.0
    %1313 = vmatpush1.msra.mxu0 0.0
    %1314 = vmatprep.subr.mxu0 0.0
    %1315 = vmatpush1.msra.mxu0 0.0
    %1316 = vmatprep.subr.mxu0 0.0
    %1317 = vmatpush1.msra.mxu0 0.0
    %1318 = vmatprep.subr.mxu0 0.0
    %1319 = vmatpush1.msra.mxu0 0.0
    %1320 = vmatprep.subr.mxu0 0.0
    %1321 = vmatpush1.msra.mxu0 0.0
    %1322 = vmatprep.mubr.f32.mxu0 0.0
    %v1323 = vand.u32 %v1209, 4294901760
    %v1324 = vsub.f32 %v1209, %v1323
    %v1325 = vand.u32 %v1324, 4294901760
    %v1326 = vsub.f32 %v1324, %v1325
    %v1327 = vand.u32 %v1326, 4294901760
    %1328 = vmatmul.mubr.f32.gmra.mrb[0].mxu0 %v1327
    %v1329 = vpop.f32.mrb[0].mxu0
    %v1330 = vadd.f32 %v1114, %v1329
    %v1331 = vpop.f32.mrb[0].mxu0
    %1332 = vmatprep.mubr.f32.mxu0 0.0
    %v1333 = vand.u32 %v1212, 4294901760
    %v1334 = vsub.f32 %v1212, %v1333
    %v1335 = vand.u32 %v1334, 4294901760
    %v1336 = vsub.f32 %v1334, %v1335
    %v1337 = vand.u32 %v1336, 4294901760
    %1338 = vmatmul.mubr.f32.gmra.mrb[0].mxu0 %v1337
    %v1339 = vpop.f32.mrb[0].mxu0
    %v1340 = vadd.f32 %v1120, %v1339
    %v1341 = vpop.f32.mrb[0].mxu0
    %1342 = vmatprep.mubr.f32.mxu0 0.0
    %v1343 = vand.u32 %v1215, 4294901760
    %v1344 = vsub.f32 %v1215, %v1343
    %v1345 = vand.u32 %v1344, 4294901760
    %v1346 = vsub.f32 %v1344, %v1345
    %v1347 = vand.u32 %v1346, 4294901760
    %1348 = vmatmul.mubr.f32.gmra.mrb[0].mxu0 %v1347
    %v1349 = vpop.f32.mrb[0].mxu0
    %v1350 = vadd.f32 %v1126, %v1349
    %v1351 = vpop.f32.mrb[0].mxu0
    %1352 = vmatprep.mubr.f32.mxu0 0.0
    %v1353 = vand.u32 %v1218, 4294901760
    %v1354 = vsub.f32 %v1218, %v1353
    %v1355 = vand.u32 %v1354, 4294901760
    %v1356 = vsub.f32 %v1354, %v1355
    %v1357 = vand.u32 %v1356, 4294901760
    %1358 = vmatmul.mubr.f32.gmra.mrb[0].mxu0 %v1357
    %v1359 = vpop.f32.mrb[0].mxu0
    %v1360 = vadd.f32 %v1132, %v1359
    %v1361 = vpop.f32.mrb[0].mxu0
    %1362 = vmatprep.mubr.f32.mxu0 0.0
    %v1363 = vand.u32 %v1221, 4294901760
    %v1364 = vsub.f32 %v1221, %v1363
    %v1365 = vand.u32 %v1364, 4294901760
    %v1366 = vsub.f32 %v1364, %v1365
    %v1367 = vand.u32 %v1366, 4294901760
    %1368 = vmatmul.mubr.f32.gmra.mrb[0].mxu0 %v1367
    %v1369 = vpop.f32.mrb[0].mxu0
    %v1370 = vadd.f32 %v1138, %v1369
    %v1371 = vpop.f32.mrb[0].mxu0
    %1372 = vmatprep.mubr.f32.mxu0 0.0
    %v1373 = vand.u32 %v1224, 4294901760
    %v1374 = vsub.f32 %v1224, %v1373
    %v1375 = vand.u32 %v1374, 4294901760
    %v1376 = vsub.f32 %v1374, %v1375
    %v1377 = vand.u32 %v1376, 4294901760
    %1378 = vmatmul.mubr.f32.gmra.mrb[0].mxu0 %v1377
    %v1379 = vpop.f32.mrb[0].mxu0
    %v1380 = vadd.f32 %v1144, %v1379
    %v1381 = vpop.f32.mrb[0].mxu0
    %1382 = vmatprep.mubr.f32.mxu0 0.0
    %v1383 = vand.u32 %v1227, 4294901760
    %v1384 = vsub.f32 %v1227, %v1383
    %v1385 = vand.u32 %v1384, 4294901760
    %v1386 = vsub.f32 %v1384, %v1385
    %v1387 = vand.u32 %v1386, 4294901760
    %1388 = vmatmul.mubr.f32.gmra.mrb[0].mxu0 %v1387
    %v1389 = vpop.f32.mrb[0].mxu0
    %v1390 = vadd.f32 %v1150, %v1389
    %v1391 = vpop.f32.mrb[0].mxu0
    %1392 = vmatprep.mubr.f32.mxu0 0.0
    %v1393 = vand.u32 %v1230, 4294901760
    %v1394 = vsub.f32 %v1230, %v1393
    %v1395 = vand.u32 %v1394, 4294901760
    %v1396 = vsub.f32 %v1394, %v1395
    %v1397 = vand.u32 %v1396, 4294901760
    %1398 = vmatmul.mubr.f32.gmra.mrb[0].mxu0 %v1397
    %v1399 = vpop.f32.mrb[0].mxu0
    %v1400 = vadd.f32 %v1156, %v1399
    %v1401 = vpop.f32.mrb[0].mxu0
    %1402 = vmatprep.mubr.f32.mxu0 0.0
    %v1403 = vand.u32 %v1233, 4294901760
    %v1404 = vsub.f32 %v1233, %v1403
    %v1405 = vand.u32 %v1404, 4294901760
    %v1406 = vsub.f32 %v1404, %v1405
    %v1407 = vand.u32 %v1406, 4294901760
    %1408 = vmatmul.mubr.f32.gmra.mrb[0].mxu0 %v1407
    %v1409 = vpop.f32.mrb[0].mxu0
    %v1410 = vadd.f32 %v1162, %v1409
    %v1411 = vpop.f32.mrb[0].mxu0
    %1412 = vmatprep.mubr.f32.mxu0 0.0
    %v1413 = vand.u32 %v1236, 4294901760
    %v1414 = vsub.f32 %v1236, %v1413
    %v1415 = vand.u32 %v1414, 4294901760
    %v1416 = vsub.f32 %v1414, %v1415
    %v1417 = vand.u32 %v1416, 4294901760
    %1418 = vmatmul.mubr.f32.gmra.mrb[0].mxu0 %v1417
    %v1419 = vpop.f32.mrb[0].mxu0
    %v1420 = vadd.f32 %v1168, %v1419
    %v1421 = vpop.f32.mrb[0].mxu0
    %1422 = vmatprep.mubr.f32.mxu0 0.0
    %v1423 = vand.u32 %v1239, 4294901760
    %v1424 = vsub.f32 %v1239, %v1423
    %v1425 = vand.u32 %v1424, 4294901760
    %v1426 = vsub.f32 %v1424, %v1425
    %v1427 = vand.u32 %v1426, 4294901760
    %1428 = vmatmul.mubr.f32.gmra.mrb[0].mxu0 %v1427
    %v1429 = vpop.f32.mrb[0].mxu0
    %v1430 = vadd.f32 %v1174, %v1429
    %v1431 = vpop.f32.mrb[0].mxu0
    %1432 = vmatprep.mubr.f32.mxu0 0.0
    %v1433 = vand.u32 %v1242, 4294901760
    %v1434 = vsub.f32 %v1242, %v1433
    %v1435 = vand.u32 %v1434, 4294901760
    %v1436 = vsub.f32 %v1434, %v1435
    %v1437 = vand.u32 %v1436, 4294901760
    %1438 = vmatmul.mubr.f32.gmra.mrb[0].mxu0 %v1437
    %v1439 = vpop.f32.mrb[0].mxu0
    %v1440 = vadd.f32 %v1180, %v1439
    %v1441 = vpop.f32.mrb[0].mxu0
    %1442 = vmatprep.mubr.f32.mxu0 0.0
    %v1443 = vand.u32 %v1245, 4294901760
    %v1444 = vsub.f32 %v1245, %v1443
    %v1445 = vand.u32 %v1444, 4294901760
    %v1446 = vsub.f32 %v1444, %v1445
    %v1447 = vand.u32 %v1446, 4294901760
    %1448 = vmatmul.mubr.f32.gmra.mrb[0].mxu0 %v1447
    %v1449 = vpop.f32.mrb[0].mxu0
    %v1450 = vadd.f32 %v1186, %v1449
    %v1451 = vpop.f32.mrb[0].mxu0
    %1452 = vmatprep.mubr.f32.mxu0 0.0
    %v1453 = vand.u32 %v1248, 4294901760
    %v1454 = vsub.f32 %v1248, %v1453
    %v1455 = vand.u32 %v1454, 4294901760
    %v1456 = vsub.f32 %v1454, %v1455
    %v1457 = vand.u32 %v1456, 4294901760
    %1458 = vmatmul.mubr.f32.gmra.mrb[0].mxu0 %v1457
    %v1459 = vpop.f32.mrb[0].mxu0
    %v1460 = vadd.f32 %v1192, %v1459
    %v1461 = vpop.f32.mrb[0].mxu0
    %1462 = vmatprep.mubr.f32.mxu0 0.0
    %v1463 = vand.u32 %v1251, 4294901760
    %v1464 = vsub.f32 %v1251, %v1463
    %v1465 = vand.u32 %v1464, 4294901760
    %v1466 = vsub.f32 %v1464, %v1465
    %v1467 = vand.u32 %v1466, 4294901760
    %1468 = vmatmul.mubr.f32.gmra.mrb[0].mxu0 %v1467
    %v1469 = vpop.f32.mrb[0].mxu0
    %v1470 = vadd.f32 %v1198, %v1469
    %v1471 = vpop.f32.mrb[0].mxu0
    %1472 = vmatprep.mubr.f32.mxu0 0.0
    %v1473 = vand.u32 %v1254, 4294901760
    %v1474 = vsub.f32 %v1254, %v1473
    %v1475 = vand.u32 %v1474, 4294901760
    %v1476 = vsub.f32 %v1474, %v1475
    %v1477 = vand.u32 %v1476, 4294901760
    %1478 = vmatmul.mubr.f32.gmra.mrb[0].mxu0 %v1477
    %v1479 = vpop.f32.mrb[0].mxu0
    %v1480 = vadd.f32 %v1204, %v1479
    %v1481 = vpop.f32.mrb[0].mxu0
    %1482 = vdwg.mxu0
    %1483 = vmatprep.subr.mxu0 0.0
    %v1484 = vand.u32 %v60, 4294901760
    %v1485 = vsub.f32 %v60, %v1484
    %v1486 = vand.u32 %v1485, 4294901760
    %v1487 = vsub.f32 %v1485, %v1486
    %v1488 = vand.u32 %v1487, 4294901760
    %1489 = vmatpush1.msra.mxu0 %v1488
    %1490 = vmatprep.subr.mxu0 0.0
    %v1491 = vand.u32 %v61, 4294901760
    %v1492 = vsub.f32 %v61, %v1491
    %v1493 = vand.u32 %v1492, 4294901760
    %v1494 = vsub.f32 %v1492, %v1493
    %v1495 = vand.u32 %v1494, 4294901760
    %1496 = vmatpush1.msra.mxu0 %v1495
    %1497 = vmatprep.subr.mxu0 0.0
    %1498 = vmatpush1.msra.mxu0 0.0
    %1499 = vmatprep.subr.mxu0 0.0
    %1500 = vmatpush1.msra.mxu0 0.0
    %1501 = vmatprep.subr.mxu0 0.0
    %1502 = vmatpush1.msra.mxu0 0.0
    %1503 = vmatprep.subr.mxu0 0.0
    %1504 = vmatpush1.msra.mxu0 0.0
    %1505 = vmatprep.subr.mxu0 0.0
    %1506 = vmatpush1.msra.mxu0 0.0
    %1507 = vmatprep.subr.mxu0 0.0
    %1508 = vmatpush1.msra.mxu0 0.0
    %1509 = vmatprep.subr.mxu0 0.0
    %1510 = vmatpush1.msra.mxu0 0.0
    %1511 = vmatprep.subr.mxu0 0.0
    %1512 = vmatpush1.msra.mxu0 0.0
    %1513 = vmatprep.subr.mxu0 0.0
    %1514 = vmatpush1.msra.mxu0 0.0
    %1515 = vmatprep.subr.mxu0 0.0
    %1516 = vmatpush1.msra.mxu0 0.0
    %1517 = vmatprep.subr.mxu0 0.0
    %1518 = vmatpush1.msra.mxu0 0.0
    %1519 = vmatprep.subr.mxu0 0.0
    %1520 = vmatpush1.msra.mxu0 0.0
    %1521 = vmatprep.subr.mxu0 0.0
    %1522 = vmatpush1.msra.mxu0 0.0
    %1523 = vmatprep.subr.mxu0 0.0
    %1524 = vmatpush1.msra.mxu0 0.0
    %1525 = vmatprep.subr.mxu0 0.0
    %1526 = vmatpush1.msra.mxu0 0.0
    %1527 = vmatprep.subr.mxu0 0.0
    %1528 = vmatpush1.msra.mxu0 0.0
    %1529 = vmatprep.subr.mxu0 0.0
    %1530 = vmatpush1.msra.mxu0 0.0
    %1531 = vmatprep.subr.mxu0 0.0
    %1532 = vmatpush1.msra.mxu0 0.0
    %1533 = vmatprep.subr.mxu0 0.0
    %1534 = vmatpush1.msra.mxu0 0.0
    %1535 = vmatprep.subr.mxu0 0.0
    %1536 = vmatpush1.msra.mxu0 0.0
    %1537 = vmatprep.subr.mxu0 0.0
    %1538 = vmatpush1.msra.mxu0 0.0
    %1539 = vmatprep.subr.mxu0 0.0
    %1540 = vmatpush1.msra.mxu0 0.0
    %1541 = vmatprep.subr.mxu0 0.0
    %1542 = vmatpush1.msra.mxu0 0.0
    %1543 = vmatprep.subr.mxu0 0.0
    %1544 = vmatpush1.msra.mxu0 0.0
    %1545 = vmatprep.subr.mxu0 0.0
    %1546 = vmatpush1.msra.mxu0 0.0
    %1547 = vmatprep.subr.mxu0 0.0
    %1548 = vmatpush1.msra.mxu0 0.0
    %1549 = vmatprep.subr.mxu0 0.0
    %1550 = vmatpush1.msra.mxu0 0.0
    %1551 = vmatprep.subr.mxu0 0.0
    %1552 = vmatpush1.msra.mxu0 0.0
    %1553 = vmatprep.subr.mxu0 0.0
    %1554 = vmatpush1.msra.mxu0 0.0
    %1555 = vmatprep.subr.mxu0 0.0
    %1556 = vmatpush1.msra.mxu0 0.0
    %1557 = vmatprep.mubr.f32.mxu0 0.0
    %v1558 = vand.u32 %v1209, 4294901760
    %1559 = vmatmul.mubr.f32.gmra.mrb[0].mxu0 %v1558
    %v1560 = vpop.f32.mrb[0].mxu0
    %v1561 = vadd.f32 %v1330, %v1560
    %v1562 = vpop.f32.mrb[0].mxu0
    %1563 = vmatprep.mubr.f32.mxu0 0.0
    %v1564 = vand.u32 %v1212, 4294901760
    %1565 = vmatmul.mubr.f32.gmra.mrb[0].mxu0 %v1564
    %v1566 = vpop.f32.mrb[0].mxu0
    %v1567 = vadd.f32 %v1340, %v1566
    %v1568 = vpop.f32.mrb[0].mxu0
    %1569 = vmatprep.mubr.f32.mxu0 0.0
    %v1570 = vand.u32 %v1215, 4294901760
    %1571 = vmatmul.mubr.f32.gmra.mrb[0].mxu0 %v1570
    %v1572 = vpop.f32.mrb[0].mxu0
    %v1573 = vadd.f32 %v1350, %v1572
    %v1574 = vpop.f32.mrb[0].mxu0
    %1575 = vmatprep.mubr.f32.mxu0 0.0
    %v1576 = vand.u32 %v1218, 4294901760
    %1577 = vmatmul.mubr.f32.gmra.mrb[0].mxu0 %v1576
    %v1578 = vpop.f32.mrb[0].mxu0
    %v1579 = vadd.f32 %v1360, %v1578
    %v1580 = vpop.f32.mrb[0].mxu0
    %1581 = vmatprep.mubr.f32.mxu0 0.0
    %v1582 = vand.u32 %v1221, 4294901760
    %1583 = vmatmul.mubr.f32.gmra.mrb[0].mxu0 %v1582
    %v1584 = vpop.f32.mrb[0].mxu0
    %v1585 = vadd.f32 %v1370, %v1584
    %v1586 = vpop.f32.mrb[0].mxu0
    %1587 = vmatprep.mubr.f32.mxu0 0.0
    %v1588 = vand.u32 %v1224, 4294901760
    %1589 = vmatmul.mubr.f32.gmra.mrb[0].mxu0 %v1588
    %v1590 = vpop.f32.mrb[0].mxu0
    %v1591 = vadd.f32 %v1380, %v1590
    %v1592 = vpop.f32.mrb[0].mxu0
    %1593 = vmatprep.mubr.f32.mxu0 0.0
    %v1594 = vand.u32 %v1227, 4294901760
    %1595 = vmatmul.mubr.f32.gmra.mrb[0].mxu0 %v1594
    %v1596 = vpop.f32.mrb[0].mxu0
    %v1597 = vadd.f32 %v1390, %v1596
    %v1598 = vpop.f32.mrb[0].mxu0
    %1599 = vmatprep.mubr.f32.mxu0 0.0
    %v1600 = vand.u32 %v1230, 4294901760
    %1601 = vmatmul.mubr.f32.gmra.mrb[0].mxu0 %v1600
    %v1602 = vpop.f32.mrb[0].mxu0
    %v1603 = vadd.f32 %v1400, %v1602
    %v1604 = vpop.f32.mrb[0].mxu0
    %1605 = vmatprep.mubr.f32.mxu0 0.0
    %v1606 = vand.u32 %v1233, 4294901760
    %1607 = vmatmul.mubr.f32.gmra.mrb[0].mxu0 %v1606
    %v1608 = vpop.f32.mrb[0].mxu0
    %v1609 = vadd.f32 %v1410, %v1608
    %v1610 = vpop.f32.mrb[0].mxu0
    %1611 = vmatprep.mubr.f32.mxu0 0.0
    %v1612 = vand.u32 %v1236, 4294901760
    %1613 = vmatmul.mubr.f32.gmra.mrb[0].mxu0 %v1612
    %v1614 = vpop.f32.mrb[0].mxu0
    %v1615 = vadd.f32 %v1420, %v1614
    %v1616 = vpop.f32.mrb[0].mxu0
    %1617 = vmatprep.mubr.f32.mxu0 0.0
    %v1618 = vand.u32 %v1239, 4294901760
    %1619 = vmatmul.mubr.f32.gmra.mrb[0].mxu0 %v1618
    %v1620 = vpop.f32.mrb[0].mxu0
    %v1621 = vadd.f32 %v1430, %v1620
    %v1622 = vpop.f32.mrb[0].mxu0
    %1623 = vmatprep.mubr.f32.mxu0 0.0
    %v1624 = vand.u32 %v1242, 4294901760
    %1625 = vmatmul.mubr.f32.gmra.mrb[0].mxu0 %v1624
    %v1626 = vpop.f32.mrb[0].mxu0
    %v1627 = vadd.f32 %v1440, %v1626
    %v1628 = vpop.f32.mrb[0].mxu0
    %1629 = vmatprep.mubr.f32.mxu0 0.0
    %v1630 = vand.u32 %v1245, 4294901760
    %1631 = vmatmul.mubr.f32.gmra.mrb[0].mxu0 %v1630
    %v1632 = vpop.f32.mrb[0].mxu0
    %v1633 = vadd.f32 %v1450, %v1632
    %v1634 = vpop.f32.mrb[0].mxu0
    %1635 = vmatprep.mubr.f32.mxu0 0.0
    %v1636 = vand.u32 %v1248, 4294901760
    %1637 = vmatmul.mubr.f32.gmra.mrb[0].mxu0 %v1636
    %v1638 = vpop.f32.mrb[0].mxu0
    %v1639 = vadd.f32 %v1460, %v1638
    %v1640 = vpop.f32.mrb[0].mxu0
    %1641 = vmatprep.mubr.f32.mxu0 0.0
    %v1642 = vand.u32 %v1251, 4294901760
    %1643 = vmatmul.mubr.f32.gmra.mrb[0].mxu0 %v1642
    %v1644 = vpop.f32.mrb[0].mxu0
    %v1645 = vadd.f32 %v1470, %v1644
    %v1646 = vpop.f32.mrb[0].mxu0
    %1647 = vmatprep.mubr.f32.mxu0 0.0
    %v1648 = vand.u32 %v1254, 4294901760
    %1649 = vmatmul.mubr.f32.gmra.mrb[0].mxu0 %v1648
    %v1650 = vpop.f32.mrb[0].mxu0
    %v1651 = vadd.f32 %v1480, %v1650
    %v1652 = vpop.f32.mrb[0].mxu0
    %1653 = vdwg.mxu0
    %1654 = vmatprep.subr.mxu0 0.0
    %v1655 = vand.u32 %v60, 4294901760
    %v1656 = vsub.f32 %v60, %v1655
    %1657 = vmatpush1.msra.mxu0 %v1656
    %1658 = vmatprep.subr.mxu0 0.0
    %v1659 = vand.u32 %v61, 4294901760
    %v1660 = vsub.f32 %v61, %v1659
    %1661 = vmatpush1.msra.mxu0 %v1660
    %1662 = vmatprep.subr.mxu0 0.0
    %1663 = vmatpush1.msra.mxu0 0.0
    %1664 = vmatprep.subr.mxu0 0.0
    %1665 = vmatpush1.msra.mxu0 0.0
    %1666 = vmatprep.subr.mxu0 0.0
    %1667 = vmatpush1.msra.mxu0 0.0
    %1668 = vmatprep.subr.mxu0 0.0
    %1669 = vmatpush1.msra.mxu0 0.0
    %1670 = vmatprep.subr.mxu0 0.0
    %1671 = vmatpush1.msra.mxu0 0.0
    %1672 = vmatprep.subr.mxu0 0.0
    %1673 = vmatpush1.msra.mxu0 0.0
    %1674 = vmatprep.subr.mxu0 0.0
    %1675 = vmatpush1.msra.mxu0 0.0
    %1676 = vmatprep.subr.mxu0 0.0
    %1677 = vmatpush1.msra.mxu0 0.0
    %1678 = vmatprep.subr.mxu0 0.0
    %1679 = vmatpush1.msra.mxu0 0.0
    %1680 = vmatprep.subr.mxu0 0.0
    %1681 = vmatpush1.msra.mxu0 0.0
    %1682 = vmatprep.subr.mxu0 0.0
    %1683 = vmatpush1.msra.mxu0 0.0
    %1684 = vmatprep.subr.mxu0 0.0
    %1685 = vmatpush1.msra.mxu0 0.0
    %1686 = vmatprep.subr.mxu0 0.0
    %1687 = vmatpush1.msra.mxu0 0.0
    %1688 = vmatprep.subr.mxu0 0.0
    %1689 = vmatpush1.msra.mxu0 0.0
    %1690 = vmatprep.subr.mxu0 0.0
    %1691 = vmatpush1.msra.mxu0 0.0
    %1692 = vmatprep.subr.mxu0 0.0
    %1693 = vmatpush1.msra.mxu0 0.0
    %1694 = vmatprep.subr.mxu0 0.0
    %1695 = vmatpush1.msra.mxu0 0.0
    %1696 = vmatprep.subr.mxu0 0.0
    %1697 = vmatpush1.msra.mxu0 0.0
    %1698 = vmatprep.subr.mxu0 0.0
    %1699 = vmatpush1.msra.mxu0 0.0
    %1700 = vmatprep.subr.mxu0 0.0
    %1701 = vmatpush1.msra.mxu0 0.0
    %1702 = vmatprep.subr.mxu0 0.0
    %1703 = vmatpush1.msra.mxu0 0.0
    %1704 = vmatprep.subr.mxu0 0.0
    %1705 = vmatpush1.msra.mxu0 0.0
    %1706 = vmatprep.subr.mxu0 0.0
    %1707 = vmatpush1.msra.mxu0 0.0
    %1708 = vmatprep.subr.mxu0 0.0
    %1709 = vmatpush1.msra.mxu0 0.0
    %1710 = vmatprep.subr.mxu0 0.0
    %1711 = vmatpush1.msra.mxu0 0.0
    %1712 = vmatprep.subr.mxu0 0.0
    %1713 = vmatpush1.msra.mxu0 0.0
    %1714 = vmatprep.subr.mxu0 0.0
    %1715 = vmatpush1.msra.mxu0 0.0
    %1716 = vmatprep.subr.mxu0 0.0
    %1717 = vmatpush1.msra.mxu0 0.0
    %1718 = vmatprep.subr.mxu0 0.0
    %1719 = vmatpush1.msra.mxu0 0.0
    %1720 = vmatprep.subr.mxu0 0.0
    %1721 = vmatpush1.msra.mxu0 0.0
    %1722 = vmatprep.mubr.f32.mxu0 0.0
    %v1723 = vand.u32 %v1209, 4294901760
    %v1724 = vsub.f32 %v1209, %v1723
    %1725 = vmatmul.mubr.f32.gmra.mrb[0].mxu0 %v1724
    %v1726 = vpop.f32.mrb[0].mxu0
    %v1727 = vadd.f32 %v1561, %v1726
    %v1728 = vpop.f32.mrb[0].mxu0
    %1729 = vmatprep.mubr.f32.mxu0 0.0
    %v1730 = vand.u32 %v1212, 4294901760
    %v1731 = vsub.f32 %v1212, %v1730
    %1732 = vmatmul.mubr.f32.gmra.mrb[0].mxu0 %v1731
    %v1733 = vpop.f32.mrb[0].mxu0
    %v1734 = vadd.f32 %v1567, %v1733
    %v1735 = vpop.f32.mrb[0].mxu0
    %1736 = vmatprep.mubr.f32.mxu0 0.0
    %v1737 = vand.u32 %v1215, 4294901760
    %v1738 = vsub.f32 %v1215, %v1737
    %1739 = vmatmul.mubr.f32.gmra.mrb[0].mxu0 %v1738
    %v1740 = vpop.f32.mrb[0].mxu0
    %v1741 = vadd.f32 %v1573, %v1740
    %v1742 = vpop.f32.mrb[0].mxu0
    %1743 = vmatprep.mubr.f32.mxu0 0.0
    %v1744 = vand.u32 %v1218, 4294901760
    %v1745 = vsub.f32 %v1218, %v1744
    %1746 = vmatmul.mubr.f32.gmra.mrb[0].mxu0 %v1745
    %v1747 = vpop.f32.mrb[0].mxu0
    %v1748 = vadd.f32 %v1579, %v1747
    %v1749 = vpop.f32.mrb[0].mxu0
    %1750 = vmatprep.mubr.f32.mxu0 0.0
    %v1751 = vand.u32 %v1221, 4294901760
    %v1752 = vsub.f32 %v1221, %v1751
    %1753 = vmatmul.mubr.f32.gmra.mrb[0].mxu0 %v1752
    %v1754 = vpop.f32.mrb[0].mxu0
    %v1755 = vadd.f32 %v1585, %v1754
    %v1756 = vpop.f32.mrb[0].mxu0
    %1757 = vmatprep.mubr.f32.mxu0 0.0
    %v1758 = vand.u32 %v1224, 4294901760
    %v1759 = vsub.f32 %v1224, %v1758
    %1760 = vmatmul.mubr.f32.gmra.mrb[0].mxu0 %v1759
    %v1761 = vpop.f32.mrb[0].mxu0
    %v1762 = vadd.f32 %v1591, %v1761
    %v1763 = vpop.f32.mrb[0].mxu0
    %1764 = vmatprep.mubr.f32.mxu0 0.0
    %v1765 = vand.u32 %v1227, 4294901760
    %v1766 = vsub.f32 %v1227, %v1765
    %1767 = vmatmul.mubr.f32.gmra.mrb[0].mxu0 %v1766
    %v1768 = vpop.f32.mrb[0].mxu0
    %v1769 = vadd.f32 %v1597, %v1768
    %v1770 = vpop.f32.mrb[0].mxu0
    %1771 = vmatprep.mubr.f32.mxu0 0.0
    %v1772 = vand.u32 %v1230, 4294901760
    %v1773 = vsub.f32 %v1230, %v1772
    %1774 = vmatmul.mubr.f32.gmra.mrb[0].mxu0 %v1773
    %v1775 = vpop.f32.mrb[0].mxu0
    %v1776 = vadd.f32 %v1603, %v1775
    %v1777 = vpop.f32.mrb[0].mxu0
    %1778 = vmatprep.mubr.f32.mxu0 0.0
    %v1779 = vand.u32 %v1233, 4294901760
    %v1780 = vsub.f32 %v1233, %v1779
    %1781 = vmatmul.mubr.f32.gmra.mrb[0].mxu0 %v1780
    %v1782 = vpop.f32.mrb[0].mxu0
    %v1783 = vadd.f32 %v1609, %v1782
    %v1784 = vpop.f32.mrb[0].mxu0
    %1785 = vmatprep.mubr.f32.mxu0 0.0
    %v1786 = vand.u32 %v1236, 4294901760
    %v1787 = vsub.f32 %v1236, %v1786
    %1788 = vmatmul.mubr.f32.gmra.mrb[0].mxu0 %v1787
    %v1789 = vpop.f32.mrb[0].mxu0
    %v1790 = vadd.f32 %v1615, %v1789
    %v1791 = vpop.f32.mrb[0].mxu0
    %1792 = vmatprep.mubr.f32.mxu0 0.0
    %v1793 = vand.u32 %v1239, 4294901760
    %v1794 = vsub.f32 %v1239, %v1793
    %1795 = vmatmul.mubr.f32.gmra.mrb[0].mxu0 %v1794
    %v1796 = vpop.f32.mrb[0].mxu0
    %v1797 = vadd.f32 %v1621, %v1796
    %v1798 = vpop.f32.mrb[0].mxu0
    %1799 = vmatprep.mubr.f32.mxu0 0.0
    %v1800 = vand.u32 %v1242, 4294901760
    %v1801 = vsub.f32 %v1242, %v1800
    %1802 = vmatmul.mubr.f32.gmra.mrb[0].mxu0 %v1801
    %v1803 = vpop.f32.mrb[0].mxu0
    %v1804 = vadd.f32 %v1627, %v1803
    %v1805 = vpop.f32.mrb[0].mxu0
    %1806 = vmatprep.mubr.f32.mxu0 0.0
    %v1807 = vand.u32 %v1245, 4294901760
    %v1808 = vsub.f32 %v1245, %v1807
    %1809 = vmatmul.mubr.f32.gmra.mrb[0].mxu0 %v1808
    %v1810 = vpop.f32.mrb[0].mxu0
    %v1811 = vadd.f32 %v1633, %v1810
    %v1812 = vpop.f32.mrb[0].mxu0
    %1813 = vmatprep.mubr.f32.mxu0 0.0
    %v1814 = vand.u32 %v1248, 4294901760
    %v1815 = vsub.f32 %v1248, %v1814
    %1816 = vmatmul.mubr.f32.gmra.mrb[0].mxu0 %v1815
    %v1817 = vpop.f32.mrb[0].mxu0
    %v1818 = vadd.f32 %v1639, %v1817
    %v1819 = vpop.f32.mrb[0].mxu0
    %1820 = vmatprep.mubr.f32.mxu0 0.0
    %v1821 = vand.u32 %v1251, 4294901760
    %v1822 = vsub.f32 %v1251, %v1821
    %1823 = vmatmul.mubr.f32.gmra.mrb[0].mxu0 %v1822
    %v1824 = vpop.f32.mrb[0].mxu0
    %v1825 = vadd.f32 %v1645, %v1824
    %v1826 = vpop.f32.mrb[0].mxu0
    %1827 = vmatprep.mubr.f32.mxu0 0.0
    %v1828 = vand.u32 %v1254, 4294901760
    %v1829 = vsub.f32 %v1254, %v1828
    %1830 = vmatmul.mubr.f32.gmra.mrb[0].mxu0 %v1829
    %v1831 = vpop.f32.mrb[0].mxu0
    %v1832 = vadd.f32 %v1651, %v1831
    %v1833 = vpop.f32.mrb[0].mxu0
    %1834 = vdwg.mxu0
    %1835 = vmatprep.subr.mxu0 0.0
    %v1836 = vand.u32 %v60, 4294901760
    %1837 = vmatpush1.msra.mxu0 %v1836
    %1838 = vmatprep.subr.mxu0 0.0
    %v1839 = vand.u32 %v61, 4294901760
    %1840 = vmatpush1.msra.mxu0 %v1839
    %1841 = vmatprep.subr.mxu0 0.0
    %1842 = vmatpush1.msra.mxu0 0.0
    %1843 = vmatprep.subr.mxu0 0.0
    %1844 = vmatpush1.msra.mxu0 0.0
    %1845 = vmatprep.subr.mxu0 0.0
    %1846 = vmatpush1.msra.mxu0 0.0
    %1847 = vmatprep.subr.mxu0 0.0
    %1848 = vmatpush1.msra.mxu0 0.0
    %1849 = vmatprep.subr.mxu0 0.0
    %1850 = vmatpush1.msra.mxu0 0.0
    %1851 = vmatprep.subr.mxu0 0.0
    %1852 = vmatpush1.msra.mxu0 0.0
    %1853 = vmatprep.subr.mxu0 0.0
    %1854 = vmatpush1.msra.mxu0 0.0
    %1855 = vmatprep.subr.mxu0 0.0
    %1856 = vmatpush1.msra.mxu0 0.0
    %1857 = vmatprep.subr.mxu0 0.0
    %1858 = vmatpush1.msra.mxu0 0.0
    %1859 = vmatprep.subr.mxu0 0.0
    %1860 = vmatpush1.msra.mxu0 0.0
    %1861 = vmatprep.subr.mxu0 0.0
    %1862 = vmatpush1.msra.mxu0 0.0
    %1863 = vmatprep.subr.mxu0 0.0
    %1864 = vmatpush1.msra.mxu0 0.0
    %1865 = vmatprep.subr.mxu0 0.0
    %1866 = vmatpush1.msra.mxu0 0.0
    %1867 = vmatprep.subr.mxu0 0.0
    %1868 = vmatpush1.msra.mxu0 0.0
    %1869 = vmatprep.subr.mxu0 0.0
    %1870 = vmatpush1.msra.mxu0 0.0
    %1871 = vmatprep.subr.mxu0 0.0
    %1872 = vmatpush1.msra.mxu0 0.0
    %1873 = vmatprep.subr.mxu0 0.0
    %1874 = vmatpush1.msra.mxu0 0.0
    %1875 = vmatprep.subr.mxu0 0.0
    %1876 = vmatpush1.msra.mxu0 0.0
    %1877 = vmatprep.subr.mxu0 0.0
    %1878 = vmatpush1.msra.mxu0 0.0
    %1879 = vmatprep.subr.mxu0 0.0
    %1880 = vmatpush1.msra.mxu0 0.0
    %1881 = vmatprep.subr.mxu0 0.0
    %1882 = vmatpush1.msra.mxu0 0.0
    %1883 = vmatprep.subr.mxu0 0.0
    %1884 = vmatpush1.msra.mxu0 0.0
    %1885 = vmatprep.subr.mxu0 0.0
    %1886 = vmatpush1.msra.mxu0 0.0
    %1887 = vmatprep.subr.mxu0 0.0
    %1888 = vmatpush1.msra.mxu0 0.0
    %1889 = vmatprep.subr.mxu0 0.0
    %1890 = vmatpush1.msra.mxu0 0.0
    %1891 = vmatprep.subr.mxu0 0.0
    %1892 = vmatpush1.msra.mxu0 0.0
    %1893 = vmatprep.subr.mxu0 0.0
    %1894 = vmatpush1.msra.mxu0 0.0
    %1895 = vmatprep.subr.mxu0 0.0
    %1896 = vmatpush1.msra.mxu0 0.0
    %1897 = vmatprep.subr.mxu0 0.0
    %1898 = vmatpush1.msra.mxu0 0.0
    %1899 = vmatprep.subr.mxu0 0.0
    %1900 = vmatpush1.msra.mxu0 0.0
    %1901 = vmatprep.mubr.f32.mxu0 0.0
    %v1902 = vand.u32 %v1209, 4294901760
    %v1903 = vsub.f32 %v1209, %v1902
    %v1904 = vand.u32 %v1903, 4294901760
    %1905 = vmatmul.mubr.f32.gmra.mrb[0].mxu0 %v1904
    %v1906 = vpop.f32.mrb[0].mxu0
    %v1907 = vadd.f32 %v1727, %v1906
    %v1908 = vpop.f32.mrb[0].mxu0
    %1909 = vmatprep.mubr.f32.mxu0 0.0
    %v1910 = vand.u32 %v1212, 4294901760
    %v1911 = vsub.f32 %v1212, %v1910
    %v1912 = vand.u32 %v1911, 4294901760
    %1913 = vmatmul.mubr.f32.gmra.mrb[0].mxu0 %v1912
    %v1914 = vpop.f32.mrb[0].mxu0
    %v1915 = vadd.f32 %v1734, %v1914
    %v1916 = vpop.f32.mrb[0].mxu0
    %1917 = vmatprep.mubr.f32.mxu0 0.0
    %v1918 = vand.u32 %v1215, 4294901760
    %v1919 = vsub.f32 %v1215, %v1918
    %v1920 = vand.u32 %v1919, 4294901760
    %1921 = vmatmul.mubr.f32.gmra.mrb[0].mxu0 %v1920
    %v1922 = vpop.f32.mrb[0].mxu0
    %v1923 = vadd.f32 %v1741, %v1922
    %v1924 = vpop.f32.mrb[0].mxu0
    %1925 = vmatprep.mubr.f32.mxu0 0.0
    %v1926 = vand.u32 %v1218, 4294901760
    %v1927 = vsub.f32 %v1218, %v1926
    %v1928 = vand.u32 %v1927, 4294901760
    %1929 = vmatmul.mubr.f32.gmra.mrb[0].mxu0 %v1928
    %v1930 = vpop.f32.mrb[0].mxu0
    %v1931 = vadd.f32 %v1748, %v1930
    %v1932 = vpop.f32.mrb[0].mxu0
    %1933 = vmatprep.mubr.f32.mxu0 0.0
    %v1934 = vand.u32 %v1221, 4294901760
    %v1935 = vsub.f32 %v1221, %v1934
    %v1936 = vand.u32 %v1935, 4294901760
    %1937 = vmatmul.mubr.f32.gmra.mrb[0].mxu0 %v1936
    %v1938 = vpop.f32.mrb[0].mxu0
    %v1939 = vadd.f32 %v1755, %v1938
    %v1940 = vpop.f32.mrb[0].mxu0
    %1941 = vmatprep.mubr.f32.mxu0 0.0
    %v1942 = vand.u32 %v1224, 4294901760
    %v1943 = vsub.f32 %v1224, %v1942
    %v1944 = vand.u32 %v1943, 4294901760
    %1945 = vmatmul.mubr.f32.gmra.mrb[0].mxu0 %v1944
    %v1946 = vpop.f32.mrb[0].mxu0
    %v1947 = vadd.f32 %v1762, %v1946
    %v1948 = vpop.f32.mrb[0].mxu0
    %1949 = vmatprep.mubr.f32.mxu0 0.0
    %v1950 = vand.u32 %v1227, 4294901760
    %v1951 = vsub.f32 %v1227, %v1950
    %v1952 = vand.u32 %v1951, 4294901760
    %1953 = vmatmul.mubr.f32.gmra.mrb[0].mxu0 %v1952
    %v1954 = vpop.f32.mrb[0].mxu0
    %v1955 = vadd.f32 %v1769, %v1954
    %v1956 = vpop.f32.mrb[0].mxu0
    %1957 = vmatprep.mubr.f32.mxu0 0.0
    %v1958 = vand.u32 %v1230, 4294901760
    %v1959 = vsub.f32 %v1230, %v1958
    %v1960 = vand.u32 %v1959, 4294901760
    %1961 = vmatmul.mubr.f32.gmra.mrb[0].mxu0 %v1960
    %v1962 = vpop.f32.mrb[0].mxu0
    %v1963 = vadd.f32 %v1776, %v1962
    %v1964 = vpop.f32.mrb[0].mxu0
    %1965 = vmatprep.mubr.f32.mxu0 0.0
    %v1966 = vand.u32 %v1233, 4294901760
    %v1967 = vsub.f32 %v1233, %v1966
    %v1968 = vand.u32 %v1967, 4294901760
    %1969 = vmatmul.mubr.f32.gmra.mrb[0].mxu0 %v1968
    %v1970 = vpop.f32.mrb[0].mxu0
    %v1971 = vadd.f32 %v1783, %v1970
    %v1972 = vpop.f32.mrb[0].mxu0
    %1973 = vmatprep.mubr.f32.mxu0 0.0
    %v1974 = vand.u32 %v1236, 4294901760
    %v1975 = vsub.f32 %v1236, %v1974
    %v1976 = vand.u32 %v1975, 4294901760
    %1977 = vmatmul.mubr.f32.gmra.mrb[0].mxu0 %v1976
    %v1978 = vpop.f32.mrb[0].mxu0
    %v1979 = vadd.f32 %v1790, %v1978
    %v1980 = vpop.f32.mrb[0].mxu0
    %1981 = vmatprep.mubr.f32.mxu0 0.0
    %v1982 = vand.u32 %v1239, 4294901760
    %v1983 = vsub.f32 %v1239, %v1982
    %v1984 = vand.u32 %v1983, 4294901760
    %1985 = vmatmul.mubr.f32.gmra.mrb[0].mxu0 %v1984
    %v1986 = vpop.f32.mrb[0].mxu0
    %v1987 = vadd.f32 %v1797, %v1986
    %v1988 = vpop.f32.mrb[0].mxu0
    %1989 = vmatprep.mubr.f32.mxu0 0.0
    %v1990 = vand.u32 %v1242, 4294901760
    %v1991 = vsub.f32 %v1242, %v1990
    %v1992 = vand.u32 %v1991, 4294901760
    %1993 = vmatmul.mubr.f32.gmra.mrb[0].mxu0 %v1992
    %v1994 = vpop.f32.mrb[0].mxu0
    %v1995 = vadd.f32 %v1804, %v1994
    %v1996 = vpop.f32.mrb[0].mxu0
    %1997 = vmatprep.mubr.f32.mxu0 0.0
    %v1998 = vand.u32 %v1245, 4294901760
    %v1999 = vsub.f32 %v1245, %v1998
    %v2000 = vand.u32 %v1999, 4294901760
    %2001 = vmatmul.mubr.f32.gmra.mrb[0].mxu0 %v2000
    %v2002 = vpop.f32.mrb[0].mxu0
    %v2003 = vadd.f32 %v1811, %v2002
    %v2004 = vpop.f32.mrb[0].mxu0
    %2005 = vmatprep.mubr.f32.mxu0 0.0
    %v2006 = vand.u32 %v1248, 4294901760
    %v2007 = vsub.f32 %v1248, %v2006
    %v2008 = vand.u32 %v2007, 4294901760
    %2009 = vmatmul.mubr.f32.gmra.mrb[0].mxu0 %v2008
    %v2010 = vpop.f32.mrb[0].mxu0
    %v2011 = vadd.f32 %v1818, %v2010
    %v2012 = vpop.f32.mrb[0].mxu0
    %2013 = vmatprep.mubr.f32.mxu0 0.0
    %v2014 = vand.u32 %v1251, 4294901760
    %v2015 = vsub.f32 %v1251, %v2014
    %v2016 = vand.u32 %v2015, 4294901760
    %2017 = vmatmul.mubr.f32.gmra.mrb[0].mxu0 %v2016
    %v2018 = vpop.f32.mrb[0].mxu0
    %v2019 = vadd.f32 %v1825, %v2018
    %v2020 = vpop.f32.mrb[0].mxu0
    %2021 = vmatprep.mubr.f32.mxu0 0.0
    %v2022 = vand.u32 %v1254, 4294901760
    %v2023 = vsub.f32 %v1254, %v2022
    %v2024 = vand.u32 %v2023, 4294901760
    %2025 = vmatmul.mubr.f32.gmra.mrb[0].mxu0 %v2024
    %v2026 = vpop.f32.mrb[0].mxu0
    %v2027 = vadd.f32 %v1832, %v2026
    %v2028 = vpop.f32.mrb[0].mxu0
    %2029 = vdwg.mxu0
    %2030 = vmatprep.subr.mxu0 0.0
    %v2031 = vand.u32 %v60, 4294901760
    %v2032 = vsub.f32 %v60, %v2031
    %v2033 = vand.u32 %v2032, 4294901760
    %2034 = vmatpush1.msra.mxu0 %v2033
    %2035 = vmatprep.subr.mxu0 0.0
    %v2036 = vand.u32 %v61, 4294901760
    %v2037 = vsub.f32 %v61, %v2036
    %v2038 = vand.u32 %v2037, 4294901760
    %2039 = vmatpush1.msra.mxu0 %v2038
    %2040 = vmatprep.subr.mxu0 0.0
    %2041 = vmatpush1.msra.mxu0 0.0
    %2042 = vmatprep.subr.mxu0 0.0
    %2043 = vmatpush1.msra.mxu0 0.0
    %2044 = vmatprep.subr.mxu0 0.0
    %2045 = vmatpush1.msra.mxu0 0.0
    %2046 = vmatprep.subr.mxu0 0.0
    %2047 = vmatpush1.msra.mxu0 0.0
    %2048 = vmatprep.subr.mxu0 0.0
    %2049 = vmatpush1.msra.mxu0 0.0
    %2050 = vmatprep.subr.mxu0 0.0
    %2051 = vmatpush1.msra.mxu0 0.0
    %2052 = vmatprep.subr.mxu0 0.0
    %2053 = vmatpush1.msra.mxu0 0.0
    %2054 = vmatprep.subr.mxu0 0.0
    %2055 = vmatpush1.msra.mxu0 0.0
    %2056 = vmatprep.subr.mxu0 0.0
    %2057 = vmatpush1.msra.mxu0 0.0
    %2058 = vmatprep.subr.mxu0 0.0
    %2059 = vmatpush1.msra.mxu0 0.0
    %2060 = vmatprep.subr.mxu0 0.0
    %2061 = vmatpush1.msra.mxu0 0.0
    %2062 = vmatprep.subr.mxu0 0.0
    %2063 = vmatpush1.msra.mxu0 0.0
    %2064 = vmatprep.subr.mxu0 0.0
    %2065 = vmatpush1.msra.mxu0 0.0
    %2066 = vmatprep.subr.mxu0 0.0
    %2067 = vmatpush1.msra.mxu0 0.0
    %2068 = vmatprep.subr.mxu0 0.0
    %2069 = vmatpush1.msra.mxu0 0.0
    %2070 = vmatprep.subr.mxu0 0.0
    %2071 = vmatpush1.msra.mxu0 0.0
    %2072 = vmatprep.subr.mxu0 0.0
    %2073 = vmatpush1.msra.mxu0 0.0
    %2074 = vmatprep.subr.mxu0 0.0
    %2075 = vmatpush1.msra.mxu0 0.0
    %2076 = vmatprep.subr.mxu0 0.0
    %2077 = vmatpush1.msra.mxu0 0.0
    %2078 = vmatprep.subr.mxu0 0.0
    %2079 = vmatpush1.msra.mxu0 0.0
    %2080 = vmatprep.subr.mxu0 0.0
    %2081 = vmatpush1.msra.mxu0 0.0
    %2082 = vmatprep.subr.mxu0 0.0
    %2083 = vmatpush1.msra.mxu0 0.0
    %2084 = vmatprep.subr.mxu0 0.0
    %2085 = vmatpush1.msra.mxu0 0.0
    %2086 = vmatprep.subr.mxu0 0.0
    %2087 = vmatpush1.msra.mxu0 0.0
    %2088 = vmatprep.subr.mxu0 0.0
    %2089 = vmatpush1.msra.mxu0 0.0
    %2090 = vmatprep.subr.mxu0 0.0
    %2091 = vmatpush1.msra.mxu0 0.0
    %2092 = vmatprep.subr.mxu0 0.0
    %2093 = vmatpush1.msra.mxu0 0.0
    %2094 = vmatprep.subr.mxu0 0.0
    %2095 = vmatpush1.msra.mxu0 0.0
    %2096 = vmatprep.subr.mxu0 0.0
    %2097 = vmatpush1.msra.mxu0 0.0
    %2098 = vmatprep.subr.mxu0 0.0
    %2099 = vmatpush1.msra.mxu0 0.0
    %2100 = vmatprep.mubr.f32.mxu0 0.0
    %v2101 = vand.u32 %v1209, 4294901760
    %2102 = vmatmul.mubr.f32.gmra.mrb[0].mxu0 %v2101
    %v2103 = vpop.f32.mrb[0].mxu0
    %v2104 = vadd.f32 %v1907, %v2103
    %v2105 = vpop.f32.mrb[0].mxu0
    %2106 = vmatprep.mubr.f32.mxu0 0.0
    %v2107 = vand.u32 %v1212, 4294901760
    %2108 = vmatmul.mubr.f32.gmra.mrb[0].mxu0 %v2107
    %v2109 = vpop.f32.mrb[0].mxu0
    %v2110 = vadd.f32 %v1915, %v2109
    %v2111 = vpop.f32.mrb[0].mxu0
    %2112 = vmatprep.mubr.f32.mxu0 0.0
    %v2113 = vand.u32 %v1215, 4294901760
    %2114 = vmatmul.mubr.f32.gmra.mrb[0].mxu0 %v2113
    %v2115 = vpop.f32.mrb[0].mxu0
    %v2116 = vadd.f32 %v1923, %v2115
    %v2117 = vpop.f32.mrb[0].mxu0
    %2118 = vmatprep.mubr.f32.mxu0 0.0
    %v2119 = vand.u32 %v1218, 4294901760
    %2120 = vmatmul.mubr.f32.gmra.mrb[0].mxu0 %v2119
    %v2121 = vpop.f32.mrb[0].mxu0
    %v2122 = vadd.f32 %v1931, %v2121
    %v2123 = vpop.f32.mrb[0].mxu0
    %2124 = vmatprep.mubr.f32.mxu0 0.0
    %v2125 = vand.u32 %v1221, 4294901760
    %2126 = vmatmul.mubr.f32.gmra.mrb[0].mxu0 %v2125
    %v2127 = vpop.f32.mrb[0].mxu0
    %v2128 = vadd.f32 %v1939, %v2127
    %v2129 = vpop.f32.mrb[0].mxu0
    %2130 = vmatprep.mubr.f32.mxu0 0.0
    %v2131 = vand.u32 %v1224, 4294901760
    %2132 = vmatmul.mubr.f32.gmra.mrb[0].mxu0 %v2131
    %v2133 = vpop.f32.mrb[0].mxu0
    %v2134 = vadd.f32 %v1947, %v2133
    %v2135 = vpop.f32.mrb[0].mxu0
    %2136 = vmatprep.mubr.f32.mxu0 0.0
    %v2137 = vand.u32 %v1227, 4294901760
    %2138 = vmatmul.mubr.f32.gmra.mrb[0].mxu0 %v2137
    %v2139 = vpop.f32.mrb[0].mxu0
    %v2140 = vadd.f32 %v1955, %v2139
    %v2141 = vpop.f32.mrb[0].mxu0
    %2142 = vmatprep.mubr.f32.mxu0 0.0
    %v2143 = vand.u32 %v1230, 4294901760
    %2144 = vmatmul.mubr.f32.gmra.mrb[0].mxu0 %v2143
    %v2145 = vpop.f32.mrb[0].mxu0
    %v2146 = vadd.f32 %v1963, %v2145
    %v2147 = vpop.f32.mrb[0].mxu0
    %2148 = vmatprep.mubr.f32.mxu0 0.0
    %v2149 = vand.u32 %v1233, 4294901760
    %2150 = vmatmul.mubr.f32.gmra.mrb[0].mxu0 %v2149
    %v2151 = vpop.f32.mrb[0].mxu0
    %v2152 = vadd.f32 %v1971, %v2151
    %v2153 = vpop.f32.mrb[0].mxu0
    %2154 = vmatprep.mubr.f32.mxu0 0.0
    %v2155 = vand.u32 %v1236, 4294901760
    %2156 = vmatmul.mubr.f32.gmra.mrb[0].mxu0 %v2155
    %v2157 = vpop.f32.mrb[0].mxu0
    %v2158 = vadd.f32 %v1979, %v2157
    %v2159 = vpop.f32.mrb[0].mxu0
    %2160 = vmatprep.mubr.f32.mxu0 0.0
    %v2161 = vand.u32 %v1239, 4294901760
    %2162 = vmatmul.mubr.f32.gmra.mrb[0].mxu0 %v2161
    %v2163 = vpop.f32.mrb[0].mxu0
    %v2164 = vadd.f32 %v1987, %v2163
    %v2165 = vpop.f32.mrb[0].mxu0
    %2166 = vmatprep.mubr.f32.mxu0 0.0
    %v2167 = vand.u32 %v1242, 4294901760
    %2168 = vmatmul.mubr.f32.gmra.mrb[0].mxu0 %v2167
    %v2169 = vpop.f32.mrb[0].mxu0
    %v2170 = vadd.f32 %v1995, %v2169
    %v2171 = vpop.f32.mrb[0].mxu0
    %2172 = vmatprep.mubr.f32.mxu0 0.0
    %v2173 = vand.u32 %v1245, 4294901760
    %2174 = vmatmul.mubr.f32.gmra.mrb[0].mxu0 %v2173
    %v2175 = vpop.f32.mrb[0].mxu0
    %v2176 = vadd.f32 %v2003, %v2175
    %v2177 = vpop.f32.mrb[0].mxu0
    %2178 = vmatprep.mubr.f32.mxu0 0.0
    %v2179 = vand.u32 %v1248, 4294901760
    %2180 = vmatmul.mubr.f32.gmra.mrb[0].mxu0 %v2179
    %v2181 = vpop.f32.mrb[0].mxu0
    %v2182 = vadd.f32 %v2011, %v2181
    %v2183 = vpop.f32.mrb[0].mxu0
    %2184 = vmatprep.mubr.f32.mxu0 0.0
    %v2185 = vand.u32 %v1251, 4294901760
    %2186 = vmatmul.mubr.f32.gmra.mrb[0].mxu0 %v2185
    %v2187 = vpop.f32.mrb[0].mxu0
    %v2188 = vadd.f32 %v2019, %v2187
    %v2189 = vpop.f32.mrb[0].mxu0
    %2190 = vmatprep.mubr.f32.mxu0 0.0
    %v2191 = vand.u32 %v1254, 4294901760
    %2192 = vmatmul.mubr.f32.gmra.mrb[0].mxu0 %v2191
    %v2193 = vpop.f32.mrb[0].mxu0
    %v2194 = vadd.f32 %v2027, %v2193
    %v2195 = vpop.f32.mrb[0].mxu0
    %2196 = vdwg.mxu0
    %2197 = vmatprep.subr.mxu0 0.0
    %v2198 = vand.u32 %v60, 4294901760
    %2199 = vmatpush1.msra.mxu0 %v2198
    %2200 = vmatprep.subr.mxu0 0.0
    %v2201 = vand.u32 %v61, 4294901760
    %2202 = vmatpush1.msra.mxu0 %v2201
    %2203 = vmatprep.subr.mxu0 0.0
    %2204 = vmatpush1.msra.mxu0 0.0
    %2205 = vmatprep.subr.mxu0 0.0
    %2206 = vmatpush1.msra.mxu0 0.0
    %2207 = vmatprep.subr.mxu0 0.0
    %2208 = vmatpush1.msra.mxu0 0.0
    %2209 = vmatprep.subr.mxu0 0.0
    %2210 = vmatpush1.msra.mxu0 0.0
    %2211 = vmatprep.subr.mxu0 0.0
    %2212 = vmatpush1.msra.mxu0 0.0
    %2213 = vmatprep.subr.mxu0 0.0
    %2214 = vmatpush1.msra.mxu0 0.0
    %2215 = vmatprep.subr.mxu0 0.0
    %2216 = vmatpush1.msra.mxu0 0.0
    %2217 = vmatprep.subr.mxu0 0.0
    %2218 = vmatpush1.msra.mxu0 0.0
    %2219 = vmatprep.subr.mxu0 0.0
    %2220 = vmatpush1.msra.mxu0 0.0
    %2221 = vmatprep.subr.mxu0 0.0
    %2222 = vmatpush1.msra.mxu0 0.0
    %2223 = vmatprep.subr.mxu0 0.0
    %2224 = vmatpush1.msra.mxu0 0.0
    %2225 = vmatprep.subr.mxu0 0.0
    %2226 = vmatpush1.msra.mxu0 0.0
    %2227 = vmatprep.subr.mxu0 0.0
    %2228 = vmatpush1.msra.mxu0 0.0
    %2229 = vmatprep.subr.mxu0 0.0
    %2230 = vmatpush1.msra.mxu0 0.0
    %2231 = vmatprep.subr.mxu0 0.0
    %2232 = vmatpush1.msra.mxu0 0.0
    %2233 = vmatprep.subr.mxu0 0.0
    %2234 = vmatpush1.msra.mxu0 0.0
    %2235 = vmatprep.subr.mxu0 0.0
    %2236 = vmatpush1.msra.mxu0 0.0
    %2237 = vmatprep.subr.mxu0 0.0
    %2238 = vmatpush1.msra.mxu0 0.0
    %2239 = vmatprep.subr.mxu0 0.0
    %2240 = vmatpush1.msra.mxu0 0.0
    %2241 = vmatprep.subr.mxu0 0.0
    %2242 = vmatpush1.msra.mxu0 0.0
    %2243 = vmatprep.subr.mxu0 0.0
    %2244 = vmatpush1.msra.mxu0 0.0
    %2245 = vmatprep.subr.mxu0 0.0
    %2246 = vmatpush1.msra.mxu0 0.0
    %2247 = vmatprep.subr.mxu0 0.0
    %2248 = vmatpush1.msra.mxu0 0.0
    %2249 = vmatprep.subr.mxu0 0.0
    %2250 = vmatpush1.msra.mxu0 0.0
    %2251 = vmatprep.subr.mxu0 0.0
    %2252 = vmatpush1.msra.mxu0 0.0
    %2253 = vmatprep.subr.mxu0 0.0
    %2254 = vmatpush1.msra.mxu0 0.0
    %2255 = vmatprep.subr.mxu0 0.0
    %2256 = vmatpush1.msra.mxu0 0.0
    %2257 = vmatprep.subr.mxu0 0.0
    %2258 = vmatpush1.msra.mxu0 0.0
    %2259 = vmatprep.subr.mxu0 0.0
    %2260 = vmatpush1.msra.mxu0 0.0
    %2261 = vmatprep.subr.mxu0 0.0
    %2262 = vmatpush1.msra.mxu0 0.0
    %2263 = vmatprep.mubr.f32.mxu0 0.0
    %v2264 = vand.u32 %v1209, 4294901760
    %2265 = vmatmul.mubr.f32.gmra.mrb[0].mxu0 %v2264
    %v2266 = vpop.f32.mrb[0].mxu0
    %v2267 = vadd.f32 %v2104, %v2266
    %v2268 = vpop.f32.mrb[0].mxu0
    %2269 = vmatprep.mubr.f32.mxu0 0.0
    %v2270 = vand.u32 %v1212, 4294901760
    %2271 = vmatmul.mubr.f32.gmra.mrb[0].mxu0 %v2270
    %v2272 = vpop.f32.mrb[0].mxu0
    %v2273 = vadd.f32 %v2110, %v2272
    %v2274 = vpop.f32.mrb[0].mxu0
    %2275 = vmatprep.mubr.f32.mxu0 0.0
    %v2276 = vand.u32 %v1215, 4294901760
    %2277 = vmatmul.mubr.f32.gmra.mrb[0].mxu0 %v2276
    %v2278 = vpop.f32.mrb[0].mxu0
    %v2279 = vadd.f32 %v2116, %v2278
    %v2280 = vpop.f32.mrb[0].mxu0
    %2281 = vmatprep.mubr.f32.mxu0 0.0
    %v2282 = vand.u32 %v1218, 4294901760
    %2283 = vmatmul.mubr.f32.gmra.mrb[0].mxu0 %v2282
    %v2284 = vpop.f32.mrb[0].mxu0
    %v2285 = vadd.f32 %v2122, %v2284
    %v2286 = vpop.f32.mrb[0].mxu0
    %2287 = vmatprep.mubr.f32.mxu0 0.0
    %v2288 = vand.u32 %v1221, 4294901760
    %2289 = vmatmul.mubr.f32.gmra.mrb[0].mxu0 %v2288
    %v2290 = vpop.f32.mrb[0].mxu0
    %v2291 = vadd.f32 %v2128, %v2290
    %v2292 = vpop.f32.mrb[0].mxu0
    %2293 = vmatprep.mubr.f32.mxu0 0.0
    %v2294 = vand.u32 %v1224, 4294901760
    %2295 = vmatmul.mubr.f32.gmra.mrb[0].mxu0 %v2294
    %v2296 = vpop.f32.mrb[0].mxu0
    %v2297 = vadd.f32 %v2134, %v2296
    %v2298 = vpop.f32.mrb[0].mxu0
    %2299 = vmatprep.mubr.f32.mxu0 0.0
    %v2300 = vand.u32 %v1227, 4294901760
    %2301 = vmatmul.mubr.f32.gmra.mrb[0].mxu0 %v2300
    %v2302 = vpop.f32.mrb[0].mxu0
    %v2303 = vadd.f32 %v2140, %v2302
    %v2304 = vpop.f32.mrb[0].mxu0
    %2305 = vmatprep.mubr.f32.mxu0 0.0
    %v2306 = vand.u32 %v1230, 4294901760
    %2307 = vmatmul.mubr.f32.gmra.mrb[0].mxu0 %v2306
    %v2308 = vpop.f32.mrb[0].mxu0
    %v2309 = vadd.f32 %v2146, %v2308
    %v2310 = vpop.f32.mrb[0].mxu0
    %2311 = vmatprep.mubr.f32.mxu0 0.0
    %v2312 = vand.u32 %v1233, 4294901760
    %2313 = vmatmul.mubr.f32.gmra.mrb[0].mxu0 %v2312
    %v2314 = vpop.f32.mrb[0].mxu0
    %v2315 = vadd.f32 %v2152, %v2314
    %v2316 = vpop.f32.mrb[0].mxu0
    %2317 = vmatprep.mubr.f32.mxu0 0.0
    %v2318 = vand.u32 %v1236, 4294901760
    %2319 = vmatmul.mubr.f32.gmra.mrb[0].mxu0 %v2318
    %v2320 = vpop.f32.mrb[0].mxu0
    %v2321 = vadd.f32 %v2158, %v2320
    %v2322 = vpop.f32.mrb[0].mxu0
    %2323 = vmatprep.mubr.f32.mxu0 0.0
    %v2324 = vand.u32 %v1239, 4294901760
    %2325 = vmatmul.mubr.f32.gmra.mrb[0].mxu0 %v2324
    %v2326 = vpop.f32.mrb[0].mxu0
    %v2327 = vadd.f32 %v2164, %v2326
    %v2328 = vpop.f32.mrb[0].mxu0
    %2329 = vmatprep.mubr.f32.mxu0 0.0
    %v2330 = vand.u32 %v1242, 4294901760
    %2331 = vmatmul.mubr.f32.gmra.mrb[0].mxu0 %v2330
    %v2332 = vpop.f32.mrb[0].mxu0
    %v2333 = vadd.f32 %v2170, %v2332
    %v2334 = vpop.f32.mrb[0].mxu0
    %2335 = vmatprep.mubr.f32.mxu0 0.0
    %v2336 = vand.u32 %v1245, 4294901760
    %2337 = vmatmul.mubr.f32.gmra.mrb[0].mxu0 %v2336
    %v2338 = vpop.f32.mrb[0].mxu0
    %v2339 = vadd.f32 %v2176, %v2338
    %v2340 = vpop.f32.mrb[0].mxu0
    %2341 = vmatprep.mubr.f32.mxu0 0.0
    %v2342 = vand.u32 %v1248, 4294901760
    %2343 = vmatmul.mubr.f32.gmra.mrb[0].mxu0 %v2342
    %v2344 = vpop.f32.mrb[0].mxu0
    %v2345 = vadd.f32 %v2182, %v2344
    %v2346 = vpop.f32.mrb[0].mxu0
    %2347 = vmatprep.mubr.f32.mxu0 0.0
    %v2348 = vand.u32 %v1251, 4294901760
    %2349 = vmatmul.mubr.f32.gmra.mrb[0].mxu0 %v2348
    %v2350 = vpop.f32.mrb[0].mxu0
    %v2351 = vadd.f32 %v2188, %v2350
    %v2352 = vpop.f32.mrb[0].mxu0
    %2353 = vmatprep.mubr.f32.mxu0 0.0
    %v2354 = vand.u32 %v1254, 4294901760
    %2355 = vmatmul.mubr.f32.gmra.mrb[0].mxu0 %v2354
    %v2356 = vpop.f32.mrb[0].mxu0
    %v2357 = vadd.f32 %v2194, %v2356
    %v2358 = vpop.f32.mrb[0].mxu0
    %2359 = vdwg.mxu0
    %v2360 = vld [vmem:[%s4] sm:$0x1]
    %v2362 = vlaneseq
    %v2363 = vshrl.u32 %v2362, 7
    %v2364 = vsub.s32 0, %v2363
    %v2365 = vrot.slane %v2360, %v2364
    %v2367 = vadd.f32 %v2267, %v2365
    %v2368 = vadd.f32 %v2273, %v2365
    %v2369 = vadd.f32 %v2279, %v2365
    %v2370 = vadd.f32 %v2285, %v2365
    %v2371 = vadd.f32 %v2291, %v2365
    %v2372 = vadd.f32 %v2297, %v2365
    %v2373 = vadd.f32 %v2303, %v2365
    %v2374 = vadd.f32 %v2309, %v2365
    %v2375 = vadd.f32 %v2315, %v2365
    %v2376 = vadd.f32 %v2321, %v2365
    %v2377 = vadd.f32 %v2327, %v2365
    %v2378 = vadd.f32 %v2333, %v2365
    %v2379 = vadd.f32 %v2339, %v2365
    %v2380 = vadd.f32 %v2345, %v2365
    %v2381 = vadd.f32 %v2351, %v2365
    %v2382 = vadd.f32 %v2357, %v2365
    %v2383 = vmax.f32 %v2367, 0.0
    %v2384 = vmax.f32 %v2368, 0.0
    %v2385 = vmax.f32 %v2369, 0.0
    %v2386 = vmax.f32 %v2370, 0.0
    %v2387 = vmax.f32 %v2371, 0.0
    %v2388 = vmax.f32 %v2372, 0.0
    %v2389 = vmax.f32 %v2373, 0.0
    %v2390 = vmax.f32 %v2374, 0.0
    %v2391 = vmax.f32 %v2375, 0.0
    %v2392 = vmax.f32 %v2376, 0.0
    %v2393 = vmax.f32 %v2377, 0.0
    %v2394 = vmax.f32 %v2378, 0.0
    %v2395 = vmax.f32 %v2379, 0.0
    %v2396 = vmax.f32 %v2380, 0.0
    %v2397 = vmax.f32 %v2381, 0.0
    %v2398 = vmax.f32 %v2382, 0.0
    %v2399 = vld [vmem:[%s5] sm:$0xff]
    %s2400 = sld [smem:[#allocation2]]
    %v2401 = vstv %s2400
    %2402 = vmatprep.subr.mxu0 0.0
    %v2403 = vand.u32 %v2383, 4294901760
    %2404 = vmatpush1.xpose.msra.mxu0 %v2403
    %2405 = vmatprep.subr.mxu0 0.0
    %v2406 = vand.u32 %v2384, 4294901760
    %2407 = vmatpush1.xpose.msra.mxu0 %v2406
    %2408 = vmatprep.subr.mxu0 0.0
    %v2409 = vand.u32 %v2385, 4294901760
    %2410 = vmatpush1.xpose.msra.mxu0 %v2409
    %2411 = vmatprep.subr.mxu0 0.0
    %v2412 = vand.u32 %v2386, 4294901760
    %2413 = vmatpush1.xpose.msra.mxu0 %v2412
    %2414 = vmatprep.subr.mxu0 0.0
    %v2415 = vand.u32 %v2387, 4294901760
    %2416 = vmatpush1.xpose.msra.mxu0 %v2415
    %2417 = vmatprep.subr.mxu0 0.0
    %v2418 = vand.u32 %v2388, 4294901760
    %2419 = vmatpush1.xpose.msra.mxu0 %v2418
    %2420 = vmatprep.subr.mxu0 0.0
    %v2421 = vand.u32 %v2389, 4294901760
    %2422 = vmatpush1.xpose.msra.mxu0 %v2421
    %2423 = vmatprep.subr.mxu0 0.0
    %v2424 = vand.u32 %v2390, 4294901760
    %2425 = vmatpush1.xpose.msra.mxu0 %v2424
    %2426 = vmatprep.subr.mxu0 0.0
    %v2427 = vand.u32 %v2391, 4294901760
    %2428 = vmatpush1.xpose.msra.mxu0 %v2427
    %2429 = vmatprep.subr.mxu0 0.0
    %v2430 = vand.u32 %v2392, 4294901760
    %2431 = vmatpush1.xpose.msra.mxu0 %v2430
    %2432 = vmatprep.subr.mxu0 0.0
    %v2433 = vand.u32 %v2393, 4294901760
    %2434 = vmatpush1.xpose.msra.mxu0 %v2433
    %2435 = vmatprep.subr.mxu0 0.0
    %v2436 = vand.u32 %v2394, 4294901760
    %2437 = vmatpush1.xpose.msra.mxu0 %v2436
    %2438 = vmatprep.subr.mxu0 0.0
    %v2439 = vand.u32 %v2395, 4294901760
    %2440 = vmatpush1.xpose.msra.mxu0 %v2439
    %2441 = vmatprep.subr.mxu0 0.0
    %v2442 = vand.u32 %v2396, 4294901760
    %2443 = vmatpush1.xpose.msra.mxu0 %v2442
    %2444 = vmatprep.subr.mxu0 0.0
    %v2445 = vand.u32 %v2397, 4294901760
    %2446 = vmatpush1.xpose.msra.mxu0 %v2445
    %2447 = vmatprep.subr.mxu0 0.0
    %v2448 = vand.u32 %v2398, 4294901760
    %2449 = vmatpush1.xpose.msra.mxu0 %v2448
    %2450 = vmatprep.subr.mxu0 0.0
    %2451 = vmatpush1.xpose.msra.mxu0 0.0
    %2452 = vmatprep.subr.mxu0 0.0
    %2453 = vmatpush1.xpose.msra.mxu0 0.0
    %2454 = vmatprep.subr.mxu0 0.0
    %2455 = vmatpush1.xpose.msra.mxu0 0.0
    %2456 = vmatprep.subr.mxu0 0.0
    %2457 = vmatpush1.xpose.msra.mxu0 0.0
    %2458 = vmatprep.subr.mxu0 0.0
    %2459 = vmatpush1.xpose.msra.mxu0 0.0
    %2460 = vmatprep.subr.mxu0 0.0
    %2461 = vmatpush1.xpose.msra.mxu0 0.0
    %2462 = vmatprep.subr.mxu0 0.0
    %2463 = vmatpush1.xpose.msra.mxu0 0.0
    %2464 = vmatprep.subr.mxu0 0.0
    %2465 = vmatpush1.xpose.msra.mxu0 0.0
    %2466 = vmatprep.subr.mxu0 0.0
    %2467 = vmatpush1.xpose.msra.mxu0 0.0
    %2468 = vmatprep.subr.mxu0 0.0
    %2469 = vmatpush1.xpose.msra.mxu0 0.0
    %2470 = vmatprep.subr.mxu0 0.0
    %2471 = vmatpush1.xpose.msra.mxu0 0.0
    %2472 = vmatprep.subr.mxu0 0.0
    %2473 = vmatpush1.xpose.msra.mxu0 0.0
    %2474 = vmatprep.subr.mxu0 0.0
    %2475 = vmatpush1.xpose.msra.mxu0 0.0
    %2476 = vmatprep.subr.mxu0 0.0
    %2477 = vmatpush1.xpose.msra.mxu0 0.0
    %2478 = vmatprep.subr.mxu0 0.0
    %2479 = vmatpush1.xpose.msra.mxu0 0.0
    %2480 = vmatprep.subr.mxu0 0.0
    %2481 = vmatpush1.xpose.msra.mxu0 0.0
    %2482 = vmatprep.mubr.f32.mxu0 0.0
    %v2483 = vand.u32 %v2399, 4294901760
    %v2484 = vsub.f32 %v2399, %v2483
    %v2485 = vand.u32 %v2484, 4294901760
    %v2486 = vsub.f32 %v2484, %v2485
    %v2487 = vand.u32 %v2486, 4294901760
    %2488 = vmatmul.mubr.f32.gmra.mrb[0].mxu0 %v2487
    %v2489 = vpop.f32.mrb[0].mxu0
    %v2490 = vadd.f32 %v2401, %v2489
    %v2491 = vpop.f32.mrb[0].mxu0
    %2492 = vdwg.mxu0
    %2493 = vmatprep.subr.mxu0 0.0
    %v2494 = vand.u32 %v2383, 4294901760
    %v2495 = vsub.f32 %v2383, %v2494
    %v2496 = vand.u32 %v2495, 4294901760
    %v2497 = vsub.f32 %v2495, %v2496
    %v2498 = vand.u32 %v2497, 4294901760
    %2499 = vmatpush1.xpose.msra.mxu0 %v2498
    %2500 = vmatprep.subr.mxu0 0.0
    %v2501 = vand.u32 %v2384, 4294901760
    %v2502 = vsub.f32 %v2384, %v2501
    %v2503 = vand.u32 %v2502, 4294901760
    %v2504 = vsub.f32 %v2502, %v2503
    %v2505 = vand.u32 %v2504, 4294901760
    %2506 = vmatpush1.xpose.msra.mxu0 %v2505
    %2507 = vmatprep.subr.mxu0 0.0
    %v2508 = vand.u32 %v2385, 4294901760
    %v2509 = vsub.f32 %v2385, %v2508
    %v2510 = vand.u32 %v2509, 4294901760
    %v2511 = vsub.f32 %v2509, %v2510
    %v2512 = vand.u32 %v2511, 4294901760
    %2513 = vmatpush1.xpose.msra.mxu0 %v2512
    %2514 = vmatprep.subr.mxu0 0.0
    %v2515 = vand.u32 %v2386, 4294901760
    %v2516 = vsub.f32 %v2386, %v2515
    %v2517 = vand.u32 %v2516, 4294901760
    %v2518 = vsub.f32 %v2516, %v2517
    %v2519 = vand.u32 %v2518, 4294901760
    %2520 = vmatpush1.xpose.msra.mxu0 %v2519
    %2521 = vmatprep.subr.mxu0 0.0
    %v2522 = vand.u32 %v2387, 4294901760
    %v2523 = vsub.f32 %v2387, %v2522
    %v2524 = vand.u32 %v2523, 4294901760
    %v2525 = vsub.f32 %v2523, %v2524
    %v2526 = vand.u32 %v2525, 4294901760
    %2527 = vmatpush1.xpose.msra.mxu0 %v2526
    %2528 = vmatprep.subr.mxu0 0.0
    %v2529 = vand.u32 %v2388, 4294901760
    %v2530 = vsub.f32 %v2388, %v2529
    %v2531 = vand.u32 %v2530, 4294901760
    %v2532 = vsub.f32 %v2530, %v2531
    %v2533 = vand.u32 %v2532, 4294901760
    %2534 = vmatpush1.xpose.msra.mxu0 %v2533
    %2535 = vmatprep.subr.mxu0 0.0
    %v2536 = vand.u32 %v2389, 4294901760
    %v2537 = vsub.f32 %v2389, %v2536
    %v2538 = vand.u32 %v2537, 4294901760
    %v2539 = vsub.f32 %v2537, %v2538
    %v2540 = vand.u32 %v2539, 4294901760
    %2541 = vmatpush1.xpose.msra.mxu0 %v2540
    %2542 = vmatprep.subr.mxu0 0.0
    %v2543 = vand.u32 %v2390, 4294901760
    %v2544 = vsub.f32 %v2390, %v2543
    %v2545 = vand.u32 %v2544, 4294901760
    %v2546 = vsub.f32 %v2544, %v2545
    %v2547 = vand.u32 %v2546, 4294901760
    %2548 = vmatpush1.xpose.msra.mxu0 %v2547
    %2549 = vmatprep.subr.mxu0 0.0
    %v2550 = vand.u32 %v2391, 4294901760
    %v2551 = vsub.f32 %v2391, %v2550
    %v2552 = vand.u32 %v2551, 4294901760
    %v2553 = vsub.f32 %v2551, %v2552
    %v2554 = vand.u32 %v2553, 4294901760
    %2555 = vmatpush1.xpose.msra.mxu0 %v2554
    %2556 = vmatprep.subr.mxu0 0.0
    %v2557 = vand.u32 %v2392, 4294901760
    %v2558 = vsub.f32 %v2392, %v2557
    %v2559 = vand.u32 %v2558, 4294901760
    %v2560 = vsub.f32 %v2558, %v2559
    %v2561 = vand.u32 %v2560, 4294901760
    %2562 = vmatpush1.xpose.msra.mxu0 %v2561
    %2563 = vmatprep.subr.mxu0 0.0
    %v2564 = vand.u32 %v2393, 4294901760
    %v2565 = vsub.f32 %v2393, %v2564
    %v2566 = vand.u32 %v2565, 4294901760
    %v2567 = vsub.f32 %v2565, %v2566
    %v2568 = vand.u32 %v2567, 4294901760
    %2569 = vmatpush1.xpose.msra.mxu0 %v2568
    %2570 = vmatprep.subr.mxu0 0.0
    %v2571 = vand.u32 %v2394, 4294901760
    %v2572 = vsub.f32 %v2394, %v2571
    %v2573 = vand.u32 %v2572, 4294901760
    %v2574 = vsub.f32 %v2572, %v2573
    %v2575 = vand.u32 %v2574, 4294901760
    %2576 = vmatpush1.xpose.msra.mxu0 %v2575
    %2577 = vmatprep.subr.mxu0 0.0
    %v2578 = vand.u32 %v2395, 4294901760
    %v2579 = vsub.f32 %v2395, %v2578
    %v2580 = vand.u32 %v2579, 4294901760
    %v2581 = vsub.f32 %v2579, %v2580
    %v2582 = vand.u32 %v2581, 4294901760
    %2583 = vmatpush1.xpose.msra.mxu0 %v2582
    %2584 = vmatprep.subr.mxu0 0.0
    %v2585 = vand.u32 %v2396, 4294901760
    %v2586 = vsub.f32 %v2396, %v2585
    %v2587 = vand.u32 %v2586, 4294901760
    %v2588 = vsub.f32 %v2586, %v2587
    %v2589 = vand.u32 %v2588, 4294901760
    %2590 = vmatpush1.xpose.msra.mxu0 %v2589
    %2591 = vmatprep.subr.mxu0 0.0
    %v2592 = vand.u32 %v2397, 4294901760
    %v2593 = vsub.f32 %v2397, %v2592
    %v2594 = vand.u32 %v2593, 4294901760
    %v2595 = vsub.f32 %v2593, %v2594
    %v2596 = vand.u32 %v2595, 4294901760
    %2597 = vmatpush1.xpose.msra.mxu0 %v2596
    %2598 = vmatprep.subr.mxu0 0.0
    %v2599 = vand.u32 %v2398, 4294901760
    %v2600 = vsub.f32 %v2398, %v2599
    %v2601 = vand.u32 %v2600, 4294901760
    %v2602 = vsub.f32 %v2600, %v2601
    %v2603 = vand.u32 %v2602, 4294901760
    %2604 = vmatpush1.xpose.msra.mxu0 %v2603
    %2605 = vmatprep.subr.mxu0 0.0
    %2606 = vmatpush1.xpose.msra.mxu0 0.0
    %2607 = vmatprep.subr.mxu0 0.0
    %2608 = vmatpush1.xpose.msra.mxu0 0.0
    %2609 = vmatprep.subr.mxu0 0.0
    %2610 = vmatpush1.xpose.msra.mxu0 0.0
    %2611 = vmatprep.subr.mxu0 0.0
    %2612 = vmatpush1.xpose.msra.mxu0 0.0
    %2613 = vmatprep.subr.mxu0 0.0
    %2614 = vmatpush1.xpose.msra.mxu0 0.0
    %2615 = vmatprep.subr.mxu0 0.0
    %2616 = vmatpush1.xpose.msra.mxu0 0.0
    %2617 = vmatprep.subr.mxu0 0.0
    %2618 = vmatpush1.xpose.msra.mxu0 0.0
    %2619 = vmatprep.subr.mxu0 0.0
    %2620 = vmatpush1.xpose.msra.mxu0 0.0
    %2621 = vmatprep.subr.mxu0 0.0
    %2622 = vmatpush1.xpose.msra.mxu0 0.0
    %2623 = vmatprep.subr.mxu0 0.0
    %2624 = vmatpush1.xpose.msra.mxu0 0.0
    %2625 = vmatprep.subr.mxu0 0.0
    %2626 = vmatpush1.xpose.msra.mxu0 0.0
    %2627 = vmatprep.subr.mxu0 0.0
    %2628 = vmatpush1.xpose.msra.mxu0 0.0
    %2629 = vmatprep.subr.mxu0 0.0
    %2630 = vmatpush1.xpose.msra.mxu0 0.0
    %2631 = vmatprep.subr.mxu0 0.0
    %2632 = vmatpush1.xpose.msra.mxu0 0.0
    %2633 = vmatprep.subr.mxu0 0.0
    %2634 = vmatpush1.xpose.msra.mxu0 0.0
    %2635 = vmatprep.subr.mxu0 0.0
    %2636 = vmatpush1.xpose.msra.mxu0 0.0
    %2637 = vmatprep.mubr.f32.mxu0 0.0
    %v2638 = vand.u32 %v2399, 4294901760
    %2639 = vmatmul.mubr.f32.gmra.mrb[0].mxu0 %v2638
    %v2640 = vpop.f32.mrb[0].mxu0
    %v2641 = vadd.f32 %v2490, %v2640
    %v2642 = vpop.f32.mrb[0].mxu0
    %2643 = vdwg.mxu0
    %2644 = vmatprep.subr.mxu0 0.0
    %v2645 = vand.u32 %v2383, 4294901760
    %v2646 = vsub.f32 %v2383, %v2645
    %2647 = vmatpush1.xpose.msra.mxu0 %v2646
    %2648 = vmatprep.subr.mxu0 0.0
    %v2649 = vand.u32 %v2384, 4294901760
    %v2650 = vsub.f32 %v2384, %v2649
    %2651 = vmatpush1.xpose.msra.mxu0 %v2650
    %2652 = vmatprep.subr.mxu0 0.0
    %v2653 = vand.u32 %v2385, 4294901760
    %v2654 = vsub.f32 %v2385, %v2653
    %2655 = vmatpush1.xpose.msra.mxu0 %v2654
    %2656 = vmatprep.subr.mxu0 0.0
    %v2657 = vand.u32 %v2386, 4294901760
    %v2658 = vsub.f32 %v2386, %v2657
    %2659 = vmatpush1.xpose.msra.mxu0 %v2658
    %2660 = vmatprep.subr.mxu0 0.0
    %v2661 = vand.u32 %v2387, 4294901760
    %v2662 = vsub.f32 %v2387, %v2661
    %2663 = vmatpush1.xpose.msra.mxu0 %v2662
    %2664 = vmatprep.subr.mxu0 0.0
    %v2665 = vand.u32 %v2388, 4294901760
    %v2666 = vsub.f32 %v2388, %v2665
    %2667 = vmatpush1.xpose.msra.mxu0 %v2666
    %2668 = vmatprep.subr.mxu0 0.0
    %v2669 = vand.u32 %v2389, 4294901760
    %v2670 = vsub.f32 %v2389, %v2669
    %2671 = vmatpush1.xpose.msra.mxu0 %v2670
    %2672 = vmatprep.subr.mxu0 0.0
    %v2673 = vand.u32 %v2390, 4294901760
    %v2674 = vsub.f32 %v2390, %v2673
    %2675 = vmatpush1.xpose.msra.mxu0 %v2674
    %2676 = vmatprep.subr.mxu0 0.0
    %v2677 = vand.u32 %v2391, 4294901760
    %v2678 = vsub.f32 %v2391, %v2677
    %2679 = vmatpush1.xpose.msra.mxu0 %v2678
    %2680 = vmatprep.subr.mxu0 0.0
    %v2681 = vand.u32 %v2392, 4294901760
    %v2682 = vsub.f32 %v2392, %v2681
    %2683 = vmatpush1.xpose.msra.mxu0 %v2682
    %2684 = vmatprep.subr.mxu0 0.0
    %v2685 = vand.u32 %v2393, 4294901760
    %v2686 = vsub.f32 %v2393, %v2685
    %2687 = vmatpush1.xpose.msra.mxu0 %v2686
    %2688 = vmatprep.subr.mxu0 0.0
    %v2689 = vand.u32 %v2394, 4294901760
    %v2690 = vsub.f32 %v2394, %v2689
    %2691 = vmatpush1.xpose.msra.mxu0 %v2690
    %2692 = vmatprep.subr.mxu0 0.0
    %v2693 = vand.u32 %v2395, 4294901760
    %v2694 = vsub.f32 %v2395, %v2693
    %2695 = vmatpush1.xpose.msra.mxu0 %v2694
    %2696 = vmatprep.subr.mxu0 0.0
    %v2697 = vand.u32 %v2396, 4294901760
    %v2698 = vsub.f32 %v2396, %v2697
    %2699 = vmatpush1.xpose.msra.mxu0 %v2698
    %2700 = vmatprep.subr.mxu0 0.0
    %v2701 = vand.u32 %v2397, 4294901760
    %v2702 = vsub.f32 %v2397, %v2701
    %2703 = vmatpush1.xpose.msra.mxu0 %v2702
    %2704 = vmatprep.subr.mxu0 0.0
    %v2705 = vand.u32 %v2398, 4294901760
    %v2706 = vsub.f32 %v2398, %v2705
    %2707 = vmatpush1.xpose.msra.mxu0 %v2706
    %2708 = vmatprep.subr.mxu0 0.0
    %2709 = vmatpush1.xpose.msra.mxu0 0.0
    %2710 = vmatprep.subr.mxu0 0.0
    %2711 = vmatpush1.xpose.msra.mxu0 0.0
    %2712 = vmatprep.subr.mxu0 0.0
    %2713 = vmatpush1.xpose.msra.mxu0 0.0
    %2714 = vmatprep.subr.mxu0 0.0
    %2715 = vmatpush1.xpose.msra.mxu0 0.0
    %2716 = vmatprep.subr.mxu0 0.0
    %2717 = vmatpush1.xpose.msra.mxu0 0.0
    %2718 = vmatprep.subr.mxu0 0.0
    %2719 = vmatpush1.xpose.msra.mxu0 0.0
    %2720 = vmatprep.subr.mxu0 0.0
    %2721 = vmatpush1.xpose.msra.mxu0 0.0
    %2722 = vmatprep.subr.mxu0 0.0
    %2723 = vmatpush1.xpose.msra.mxu0 0.0
    %2724 = vmatprep.subr.mxu0 0.0
    %2725 = vmatpush1.xpose.msra.mxu0 0.0
    %2726 = vmatprep.subr.mxu0 0.0
    %2727 = vmatpush1.xpose.msra.mxu0 0.0
    %2728 = vmatprep.subr.mxu0 0.0
    %2729 = vmatpush1.xpose.msra.mxu0 0.0
    %2730 = vmatprep.subr.mxu0 0.0
    %2731 = vmatpush1.xpose.msra.mxu0 0.0
    %2732 = vmatprep.subr.mxu0 0.0
    %2733 = vmatpush1.xpose.msra.mxu0 0.0
    %2734 = vmatprep.subr.mxu0 0.0
    %2735 = vmatpush1.xpose.msra.mxu0 0.0
    %2736 = vmatprep.subr.mxu0 0.0
    %2737 = vmatpush1.xpose.msra.mxu0 0.0
    %2738 = vmatprep.subr.mxu0 0.0
    %2739 = vmatpush1.xpose.msra.mxu0 0.0
    %2740 = vmatprep.mubr.f32.mxu0 0.0
    %v2741 = vand.u32 %v2399, 4294901760
    %v2742 = vsub.f32 %v2399, %v2741
    %2743 = vmatmul.mubr.f32.gmra.mrb[0].mxu0 %v2742
    %v2744 = vpop.f32.mrb[0].mxu0
    %v2745 = vadd.f32 %v2641, %v2744
    %v2746 = vpop.f32.mrb[0].mxu0
    %2747 = vdwg.mxu0
    %2748 = vmatprep.subr.mxu0 0.0
    %v2749 = vand.u32 %v2383, 4294901760
    %2750 = vmatpush1.xpose.msra.mxu0 %v2749
    %2751 = vmatprep.subr.mxu0 0.0
    %v2752 = vand.u32 %v2384, 4294901760
    %2753 = vmatpush1.xpose.msra.mxu0 %v2752
    %2754 = vmatprep.subr.mxu0 0.0
    %v2755 = vand.u32 %v2385, 4294901760
    %2756 = vmatpush1.xpose.msra.mxu0 %v2755
    %2757 = vmatprep.subr.mxu0 0.0
    %v2758 = vand.u32 %v2386, 4294901760
    %2759 = vmatpush1.xpose.msra.mxu0 %v2758
    %2760 = vmatprep.subr.mxu0 0.0
    %v2761 = vand.u32 %v2387, 4294901760
    %2762 = vmatpush1.xpose.msra.mxu0 %v2761
    %2763 = vmatprep.subr.mxu0 0.0
    %v2764 = vand.u32 %v2388, 4294901760
    %2765 = vmatpush1.xpose.msra.mxu0 %v2764
    %2766 = vmatprep.subr.mxu0 0.0
    %v2767 = vand.u32 %v2389, 4294901760
    %2768 = vmatpush1.xpose.msra.mxu0 %v2767
    %2769 = vmatprep.subr.mxu0 0.0
    %v2770 = vand.u32 %v2390, 4294901760
    %2771 = vmatpush1.xpose.msra.mxu0 %v2770
    %2772 = vmatprep.subr.mxu0 0.0
    %v2773 = vand.u32 %v2391, 4294901760
    %2774 = vmatpush1.xpose.msra.mxu0 %v2773
    %2775 = vmatprep.subr.mxu0 0.0
    %v2776 = vand.u32 %v2392, 4294901760
    %2777 = vmatpush1.xpose.msra.mxu0 %v2776
    %2778 = vmatprep.subr.mxu0 0.0
    %v2779 = vand.u32 %v2393, 4294901760
    %2780 = vmatpush1.xpose.msra.mxu0 %v2779
    %2781 = vmatprep.subr.mxu0 0.0
    %v2782 = vand.u32 %v2394, 4294901760
    %2783 = vmatpush1.xpose.msra.mxu0 %v2782
    %2784 = vmatprep.subr.mxu0 0.0
    %v2785 = vand.u32 %v2395, 4294901760
    %2786 = vmatpush1.xpose.msra.mxu0 %v2785
    %2787 = vmatprep.subr.mxu0 0.0
    %v2788 = vand.u32 %v2396, 4294901760
    %2789 = vmatpush1.xpose.msra.mxu0 %v2788
    %2790 = vmatprep.subr.mxu0 0.0
    %v2791 = vand.u32 %v2397, 4294901760
    %2792 = vmatpush1.xpose.msra.mxu0 %v2791
    %2793 = vmatprep.subr.mxu0 0.0
    %v2794 = vand.u32 %v2398, 4294901760
    %2795 = vmatpush1.xpose.msra.mxu0 %v2794
    %2796 = vmatprep.subr.mxu0 0.0
    %2797 = vmatpush1.xpose.msra.mxu0 0.0
    %2798 = vmatprep.subr.mxu0 0.0
    %2799 = vmatpush1.xpose.msra.mxu0 0.0
    %2800 = vmatprep.subr.mxu0 0.0
    %2801 = vmatpush1.xpose.msra.mxu0 0.0
    %2802 = vmatprep.subr.mxu0 0.0
    %2803 = vmatpush1.xpose.msra.mxu0 0.0
    %2804 = vmatprep.subr.mxu0 0.0
    %2805 = vmatpush1.xpose.msra.mxu0 0.0
    %2806 = vmatprep.subr.mxu0 0.0
    %2807 = vmatpush1.xpose.msra.mxu0 0.0
    %2808 = vmatprep.subr.mxu0 0.0
    %2809 = vmatpush1.xpose.msra.mxu0 0.0
    %2810 = vmatprep.subr.mxu0 0.0
    %2811 = vmatpush1.xpose.msra.mxu0 0.0
    %2812 = vmatprep.subr.mxu0 0.0
    %2813 = vmatpush1.xpose.msra.mxu0 0.0
    %2814 = vmatprep.subr.mxu0 0.0
    %2815 = vmatpush1.xpose.msra.mxu0 0.0
    %2816 = vmatprep.subr.mxu0 0.0
    %2817 = vmatpush1.xpose.msra.mxu0 0.0
    %2818 = vmatprep.subr.mxu0 0.0
    %2819 = vmatpush1.xpose.msra.mxu0 0.0
    %2820 = vmatprep.subr.mxu0 0.0
    %2821 = vmatpush1.xpose.msra.mxu0 0.0
    %2822 = vmatprep.subr.mxu0 0.0
    %2823 = vmatpush1.xpose.msra.mxu0 0.0
    %2824 = vmatprep.subr.mxu0 0.0
    %2825 = vmatpush1.xpose.msra.mxu0 0.0
    %2826 = vmatprep.subr.mxu0 0.0
    %2827 = vmatpush1.xpose.msra.mxu0 0.0
    %2828 = vmatprep.mubr.f32.mxu0 0.0
    %v2829 = vand.u32 %v2399, 4294901760
    %v2830 = vsub.f32 %v2399, %v2829
    %v2831 = vand.u32 %v2830, 4294901760
    %2832 = vmatmul.mubr.f32.gmra.mrb[0].mxu0 %v2831
    %v2833 = vpop.f32.mrb[0].mxu0
    %v2834 = vadd.f32 %v2745, %v2833
    %v2835 = vpop.f32.mrb[0].mxu0
    %2836 = vdwg.mxu0
    %2837 = vmatprep.subr.mxu0 0.0
    %v2838 = vand.u32 %v2383, 4294901760
    %v2839 = vsub.f32 %v2383, %v2838
    %v2840 = vand.u32 %v2839, 4294901760
    %2841 = vmatpush1.xpose.msra.mxu0 %v2840
    %2842 = vmatprep.subr.mxu0 0.0
    %v2843 = vand.u32 %v2384, 4294901760
    %v2844 = vsub.f32 %v2384, %v2843
    %v2845 = vand.u32 %v2844, 4294901760
    %2846 = vmatpush1.xpose.msra.mxu0 %v2845
    %2847 = vmatprep.subr.mxu0 0.0
    %v2848 = vand.u32 %v2385, 4294901760
    %v2849 = vsub.f32 %v2385, %v2848
    %v2850 = vand.u32 %v2849, 4294901760
    %2851 = vmatpush1.xpose.msra.mxu0 %v2850
    %2852 = vmatprep.subr.mxu0 0.0
    %v2853 = vand.u32 %v2386, 4294901760
    %v2854 = vsub.f32 %v2386, %v2853
    %v2855 = vand.u32 %v2854, 4294901760
    %2856 = vmatpush1.xpose.msra.mxu0 %v2855
    %2857 = vmatprep.subr.mxu0 0.0
    %v2858 = vand.u32 %v2387, 4294901760
    %v2859 = vsub.f32 %v2387, %v2858
    %v2860 = vand.u32 %v2859, 4294901760
    %2861 = vmatpush1.xpose.msra.mxu0 %v2860
    %2862 = vmatprep.subr.mxu0 0.0
    %v2863 = vand.u32 %v2388, 4294901760
    %v2864 = vsub.f32 %v2388, %v2863
    %v2865 = vand.u32 %v2864, 4294901760
    %2866 = vmatpush1.xpose.msra.mxu0 %v2865
    %2867 = vmatprep.subr.mxu0 0.0
    %v2868 = vand.u32 %v2389, 4294901760
    %v2869 = vsub.f32 %v2389, %v2868
    %v2870 = vand.u32 %v2869, 4294901760
    %2871 = vmatpush1.xpose.msra.mxu0 %v2870
    %2872 = vmatprep.subr.mxu0 0.0
    %v2873 = vand.u32 %v2390, 4294901760
    %v2874 = vsub.f32 %v2390, %v2873
    %v2875 = vand.u32 %v2874, 4294901760
    %2876 = vmatpush1.xpose.msra.mxu0 %v2875
    %2877 = vmatprep.subr.mxu0 0.0
    %v2878 = vand.u32 %v2391, 4294901760
    %v2879 = vsub.f32 %v2391, %v2878
    %v2880 = vand.u32 %v2879, 4294901760
    %2881 = vmatpush1.xpose.msra.mxu0 %v2880
    %2882 = vmatprep.subr.mxu0 0.0
    %v2883 = vand.u32 %v2392, 4294901760
    %v2884 = vsub.f32 %v2392, %v2883
    %v2885 = vand.u32 %v2884, 4294901760
    %2886 = vmatpush1.xpose.msra.mxu0 %v2885
    %2887 = vmatprep.subr.mxu0 0.0
    %v2888 = vand.u32 %v2393, 4294901760
    %v2889 = vsub.f32 %v2393, %v2888
    %v2890 = vand.u32 %v2889, 4294901760
    %2891 = vmatpush1.xpose.msra.mxu0 %v2890
    %2892 = vmatprep.subr.mxu0 0.0
    %v2893 = vand.u32 %v2394, 4294901760
    %v2894 = vsub.f32 %v2394, %v2893
    %v2895 = vand.u32 %v2894, 4294901760
    %2896 = vmatpush1.xpose.msra.mxu0 %v2895
    %2897 = vmatprep.subr.mxu0 0.0
    %v2898 = vand.u32 %v2395, 4294901760
    %v2899 = vsub.f32 %v2395, %v2898
    %v2900 = vand.u32 %v2899, 4294901760
    %2901 = vmatpush1.xpose.msra.mxu0 %v2900
    %2902 = vmatprep.subr.mxu0 0.0
    %v2903 = vand.u32 %v2396, 4294901760
    %v2904 = vsub.f32 %v2396, %v2903
    %v2905 = vand.u32 %v2904, 4294901760
    %2906 = vmatpush1.xpose.msra.mxu0 %v2905
    %2907 = vmatprep.subr.mxu0 0.0
    %v2908 = vand.u32 %v2397, 4294901760
    %v2909 = vsub.f32 %v2397, %v2908
    %v2910 = vand.u32 %v2909, 4294901760
    %2911 = vmatpush1.xpose.msra.mxu0 %v2910
    %2912 = vmatprep.subr.mxu0 0.0
    %v2913 = vand.u32 %v2398, 4294901760
    %v2914 = vsub.f32 %v2398, %v2913
    %v2915 = vand.u32 %v2914, 4294901760
    %2916 = vmatpush1.xpose.msra.mxu0 %v2915
    %2917 = vmatprep.subr.mxu0 0.0
    %2918 = vmatpush1.xpose.msra.mxu0 0.0
    %2919 = vmatprep.subr.mxu0 0.0
    %2920 = vmatpush1.xpose.msra.mxu0 0.0
    %2921 = vmatprep.subr.mxu0 0.0
    %2922 = vmatpush1.xpose.msra.mxu0 0.0
    %2923 = vmatprep.subr.mxu0 0.0
    %2924 = vmatpush1.xpose.msra.mxu0 0.0
    %2925 = vmatprep.subr.mxu0 0.0
    %2926 = vmatpush1.xpose.msra.mxu0 0.0
    %2927 = vmatprep.subr.mxu0 0.0
    %2928 = vmatpush1.xpose.msra.mxu0 0.0
    %2929 = vmatprep.subr.mxu0 0.0
    %2930 = vmatpush1.xpose.msra.mxu0 0.0
    %2931 = vmatprep.subr.mxu0 0.0
    %2932 = vmatpush1.xpose.msra.mxu0 0.0
    %2933 = vmatprep.subr.mxu0 0.0
    %2934 = vmatpush1.xpose.msra.mxu0 0.0
    %2935 = vmatprep.subr.mxu0 0.0
    %2936 = vmatpush1.xpose.msra.mxu0 0.0
    %2937 = vmatprep.subr.mxu0 0.0
    %2938 = vmatpush1.xpose.msra.mxu0 0.0
    %2939 = vmatprep.subr.mxu0 0.0
    %2940 = vmatpush1.xpose.msra.mxu0 0.0
    %2941 = vmatprep.subr.mxu0 0.0
    %2942 = vmatpush1.xpose.msra.mxu0 0.0
    %2943 = vmatprep.subr.mxu0 0.0
    %2944 = vmatpush1.xpose.msra.mxu0 0.0
    %2945 = vmatprep.subr.mxu0 0.0
    %2946 = vmatpush1.xpose.msra.mxu0 0.0
    %2947 = vmatprep.subr.mxu0 0.0
    %2948 = vmatpush1.xpose.msra.mxu0 0.0
    %2949 = vmatprep.mubr.f32.mxu0 0.0
    %v2950 = vand.u32 %v2399, 4294901760
    %2951 = vmatmul.mubr.f32.gmra.mrb[0].mxu0 %v2950
    %v2952 = vpop.f32.mrb[0].mxu0
    %v2953 = vadd.f32 %v2834, %v2952
    %v2954 = vpop.f32.mrb[0].mxu0
    %2955 = vdwg.mxu0
    %2956 = vmatprep.subr.mxu0 0.0
    %v2957 = vand.u32 %v2383, 4294901760
    %2958 = vmatpush1.xpose.msra.mxu0 %v2957
    %2959 = vmatprep.subr.mxu0 0.0
    %v2960 = vand.u32 %v2384, 4294901760
    %2961 = vmatpush1.xpose.msra.mxu0 %v2960
    %2962 = vmatprep.subr.mxu0 0.0
    %v2963 = vand.u32 %v2385, 4294901760
    %2964 = vmatpush1.xpose.msra.mxu0 %v2963
    %2965 = vmatprep.subr.mxu0 0.0
    %v2966 = vand.u32 %v2386, 4294901760
    %2967 = vmatpush1.xpose.msra.mxu0 %v2966
    %2968 = vmatprep.subr.mxu0 0.0
    %v2969 = vand.u32 %v2387, 4294901760
    %2970 = vmatpush1.xpose.msra.mxu0 %v2969
    %2971 = vmatprep.subr.mxu0 0.0
    %v2972 = vand.u32 %v2388, 4294901760
    %2973 = vmatpush1.xpose.msra.mxu0 %v2972
    %2974 = vmatprep.subr.mxu0 0.0
    %v2975 = vand.u32 %v2389, 4294901760
    %2976 = vmatpush1.xpose.msra.mxu0 %v2975
    %2977 = vmatprep.subr.mxu0 0.0
    %v2978 = vand.u32 %v2390, 4294901760
    %2979 = vmatpush1.xpose.msra.mxu0 %v2978
    %2980 = vmatprep.subr.mxu0 0.0
    %v2981 = vand.u32 %v2391, 4294901760
    %2982 = vmatpush1.xpose.msra.mxu0 %v2981
    %2983 = vmatprep.subr.mxu0 0.0
    %v2984 = vand.u32 %v2392, 4294901760
    %2985 = vmatpush1.xpose.msra.mxu0 %v2984
    %2986 = vmatprep.subr.mxu0 0.0
    %v2987 = vand.u32 %v2393, 4294901760
    %2988 = vmatpush1.xpose.msra.mxu0 %v2987
    %2989 = vmatprep.subr.mxu0 0.0
    %v2990 = vand.u32 %v2394, 4294901760
    %2991 = vmatpush1.xpose.msra.mxu0 %v2990
    %2992 = vmatprep.subr.mxu0 0.0
    %v2993 = vand.u32 %v2395, 4294901760
    %2994 = vmatpush1.xpose.msra.mxu0 %v2993
    %2995 = vmatprep.subr.mxu0 0.0
    %v2996 = vand.u32 %v2396, 4294901760
    %2997 = vmatpush1.xpose.msra.mxu0 %v2996
    %2998 = vmatprep.subr.mxu0 0.0
    %v2999 = vand.u32 %v2397, 4294901760
    %3000 = vmatpush1.xpose.msra.mxu0 %v2999
    %3001 = vmatprep.subr.mxu0 0.0
    %v3002 = vand.u32 %v2398, 4294901760
    %3003 = vmatpush1.xpose.msra.mxu0 %v3002
    %3004 = vmatprep.subr.mxu0 0.0
    %3005 = vmatpush1.xpose.msra.mxu0 0.0
    %3006 = vmatprep.subr.mxu0 0.0
    %3007 = vmatpush1.xpose.msra.mxu0 0.0
    %3008 = vmatprep.subr.mxu0 0.0
    %3009 = vmatpush1.xpose.msra.mxu0 0.0
    %3010 = vmatprep.subr.mxu0 0.0
    %3011 = vmatpush1.xpose.msra.mxu0 0.0
    %3012 = vmatprep.subr.mxu0 0.0
    %3013 = vmatpush1.xpose.msra.mxu0 0.0
    %3014 = vmatprep.subr.mxu0 0.0
    %3015 = vmatpush1.xpose.msra.mxu0 0.0
    %3016 = vmatprep.subr.mxu0 0.0
    %3017 = vmatpush1.xpose.msra.mxu0 0.0
    %3018 = vmatprep.subr.mxu0 0.0
    %3019 = vmatpush1.xpose.msra.mxu0 0.0
    %3020 = vmatprep.subr.mxu0 0.0
    %3021 = vmatpush1.xpose.msra.mxu0 0.0
    %3022 = vmatprep.subr.mxu0 0.0
    %3023 = vmatpush1.xpose.msra.mxu0 0.0
    %3024 = vmatprep.subr.mxu0 0.0
    %3025 = vmatpush1.xpose.msra.mxu0 0.0
    %3026 = vmatprep.subr.mxu0 0.0
    %3027 = vmatpush1.xpose.msra.mxu0 0.0
    %3028 = vmatprep.subr.mxu0 0.0
    %3029 = vmatpush1.xpose.msra.mxu0 0.0
    %3030 = vmatprep.subr.mxu0 0.0
    %3031 = vmatpush1.xpose.msra.mxu0 0.0
    %3032 = vmatprep.subr.mxu0 0.0
    %3033 = vmatpush1.xpose.msra.mxu0 0.0
    %3034 = vmatprep.subr.mxu0 0.0
    %3035 = vmatpush1.xpose.msra.mxu0 0.0
    %3036 = vmatprep.mubr.f32.mxu0 0.0
    %v3037 = vand.u32 %v2399, 4294901760
    %3038 = vmatmul.mubr.f32.gmra.mrb[0].mxu0 %v3037
    %v3039 = vpop.f32.mrb[0].mxu0
    %v3040 = vadd.f32 %v2953, %v3039
    %v3041 = vpop.f32.mrb[0].mxu0
    %3042 = vdwg.mxu0
    %3043 = vst [vmem:[#allocation3] sm:$0xff] %v3040
    // Predicated region
    $region30: #{tpu_custom_call.1} parent=1 // pred_check
      _
    $region31: #{tpu_custom_call.1} parent=1 // pred_check_branch
      %3045 = sbr.rel (0) target = $region33
    $region32: #{tpu_custom_call.1} parent=1 // pred_region
      %s3047 = ssub.s32 128, 128
      %3048 = vsyncadd [#allocation4], %s3047
      %s3050 = sshll.u32 [#allocation3], 4
      %s3051 = int_to_ptr.vmem [resolvable:$true] %s3050
      %3053 = dma.vmem_to_hbm [thread:$0]  %s3051, 128, %s7, [#allocation4]
    $region33: #{tpu_custom_call.1} parent=1 // pred_fallthru
      _
    // Predicated region
    $region34: #{tpu_custom_call.1} parent=1 // pred_check
      _
    $region35: #{tpu_custom_call.1} parent=1 // pred_check_branch
      %3055 = sbr.rel (0) target = $region37
    $region36: #{tpu_custom_call.1} parent=1 // pred_region
      %3056 = dma.done [#allocation4], 128
    $region37: #{tpu_custom_call.1} parent=1 // pred_fallthru
      _
    %3057 = vsyncpa [#allocation4], 1

</llo_original>
